<compile_context>
chip_gen: v7x
topology: tpu7x:2x2x1
jax: 0.10.0
libtpu: 0.0.40
codegen_flags: <defaults>
</compile_context>

<pallas_src>
import numpy as np

import jax
import jax.numpy as jnp
from jax.experimental import pallas as pl
from jax.experimental.pallas import tpu as pltpu

# ---- small, forward-consistent ViT hyper-params -----------------------------
B = 2            # batch
C = 3            # input channels (RGB chest x-ray)
IMG = 16         # spatial size
P = 4            # patch size
N = (IMG // P) ** 2          # 16 patches
S = N + 1                    # +cls token -> 17
SP = 24                      # sequence padded to a sublane multiple (8 | 24)
BSP = B * SP                 # flattened (batch, seq) rows
D = 32           # embed dim
HEADS = 4
HD = D // HEADS              # 8
MLP = 4 * D                  # 128
DEPTH = 2
OUT_DIM = 11     # RANZCR: 11 classes (self.model.head = nn.Linear(in_features, 11))
OUT_PAD = 128    # lane-dense padded output width
PD = C * P * P               # flattened patch dim = 48
LN_EPS = 1e-6
SCALE = HD ** -0.5


# ------------------------------ Pallas kernel --------------------------------
def vit_kernel(patches_ref, pe_w_ref, base_ref, mask_ref,
               ln1_w_ref, ln1_b_ref, qkv_w_ref, qkv_b_ref,
               proj_w_ref, proj_b_ref, ln2_w_ref, ln2_b_ref,
               fc1_w_ref, fc1_b_ref, fc2_w_ref, fc2_b_ref,
               lnf_w_ref, lnf_b_ref, head_w_ref, head_b_ref,
               out_ref):
    f32 = jnp.float32

    def layer_norm(t, w, b):
        mu = jnp.mean(t, axis=-1, keepdims=True)
        var = jnp.mean((t - mu) ** 2, axis=-1, keepdims=True)
        return (t - mu) * jax.lax.rsqrt(var + LN_EPS) * w + b

    def gelu(t):
        # TODO(synk): timm's nn.GELU is exact (erf-based); tanh approximation used here.
        c = 0.7978845608028654  # sqrt(2/pi)
        return 0.5 * t * (1.0 + jnp.tanh(c * (t + 0.044715 * t * t * t)))

    # ---- patch embedding (conv-as-matmul) on the whole batch at once --------
    # cls token, positional embedding and patch-embed bias are pre-folded into
    # `base`; padded rows of both base and patches are zero.
    x = base_ref[...] + jnp.dot(patches_ref[...], pe_w_ref[...],
                                preferred_element_type=f32)        # (BSP, D)
    mask_bias = mask_ref[...]                                      # (BSP, BSP)

    # ---- transformer blocks --------------------------------------------------
    for d in range(DEPTH):
        # --- attention sub-block (SCALE pre-folded into the Q part of qkv) ---
        h = layer_norm(x, ln1_w_ref[d], ln1_b_ref[d])
        qkv = jnp.dot(h, qkv_w_ref[d],
                      preferred_element_type=f32) + qkv_b_ref[d]   # (BSP, 3D)
        q = qkv[:, 0 * D:1 * D]
        k = qkv[:, 1 * D:2 * D]
        v = qkv[:, 2 * D:3 * D]
        pw = proj_w_ref[d]                                         # (D, D)

        attn = jnp.zeros_like(x)
        for hh in range(HEADS):
            lo, hi = hh * HD, (hh + 1) * HD
            s = jax.lax.dot_general(q[:, lo:hi], k[:, lo:hi],
                                    (((1,), (1,)), ((), ())),
                                    preferred_element_type=f32)    # (BSP, BSP)
            # block-diagonal (per-image) + key-padding mask, already additive.
            s = s + mask_bias
            s = s - jnp.max(s, axis=-1, keepdims=True)
            p = jnp.exp(s)
            p = p * pl.reciprocal(jnp.sum(p, axis=-1, keepdims=True), approx=True)
            oh = jnp.dot(p, v[:, lo:hi], preferred_element_type=f32)  # (BSP, HD)
            # fold the per-head output straight into the projection (no concat)
            attn = attn + jnp.dot(oh, pw[lo:hi, :], preferred_element_type=f32)
        x = x + attn + proj_b_ref[d]

        # --- MLP sub-block ---
        h2 = layer_norm(x, ln2_w_ref[d], ln2_b_ref[d])
        h2 = jnp.dot(h2, fc1_w_ref[d],
                     preferred_element_type=f32) + fc1_b_ref[d]    # (BSP, MLP)
        h2 = gelu(h2)
        h2 = jnp.dot(h2, fc2_w_ref[d],
                     preferred_element_type=f32) + fc2_b_ref[d]    # (BSP, D)
        x = x + h2

    # ---- final norm on the cls rows + lane-padded linear head ---------------
    cls = jnp.concatenate([x[b * SP:b * SP + 1, :] for b in range(B)], axis=0)
    cls = layer_norm(cls, lnf_w_ref[...], lnf_b_ref[...])          # (B, D)
    out_ref[...] = jnp.dot(cls, head_w_ref[...],
                           preferred_element_type=f32) + head_b_ref[...]


# ------------------------------ wrapper / glue --------------------------------
def extract_patches(x):
    """NCHW -> (B, N, C*P*P), pixel order (C, Ph, Pw) matching conv weight flatten."""
    b, c, hh, ww = x.shape
    hn, wn = hh // P, ww // P
    x = x.reshape(b, c, hn, P, wn, P)
    x = x.transpose(0, 2, 4, 1, 3, 5)          # (B, Hn, Wn, C, P, P)
    return x.reshape(b, hn * wn, c * P * P)


def prepare_kernel_params(params):
    """Fold/pad parameters into the layout the kernel expects (done once)."""
    # base_pad: row 0 = cls + pos[0]; rows 1..N = pos[1:] + pe_b; rest zero.
    base_pad = jnp.zeros((SP, D), jnp.float32)
    base_pad = base_pad.at[0].set(params["base"][0])
    base_pad = base_pad.at[1:S].set(params["base"][1:] + params["pe_b"][0])

    # fold attention scale into the Q columns of qkv weight/bias.
    qkv_w = params["qkv_w"].at[:, :, :D].multiply(SCALE)
    qkv_b = params["qkv_b"].at[:, :, :D].multiply(SCALE)

    # lane-pad the head so the output store is lane-dense (128 wide).
    head_w = jnp.zeros((D, OUT_PAD), jnp.float32).at[:, :OUT_DIM].set(params["head_w"])
    head_b = jnp.zeros((1, OUT_PAD), jnp.float32).at[:, :OUT_DIM].set(params["head_b"])

    # additive attention mask: same image only, and key column must be a real token.
    r = np.arange(BSP)
    same = (r[:, None] // SP) == (r[None, :] // SP)
    valid = (r[None, :] % SP) < S
    mask = jnp.asarray(np.where(same & valid, 0.0, -1e30).astype(np.float32))

    return dict(
        pe_w=params["pe_w"], base_pad=base_pad, mask=mask,
        ln1_w=params["ln1_w"], ln1_b=params["ln1_b"],
        qkv_w=qkv_w, qkv_b=qkv_b,
        proj_w=params["proj_w"], proj_b=params["proj_b"],
        ln2_w=params["ln2_w"], ln2_b=params["ln2_b"],
        fc1_w=params["fc1_w"], fc1_b=params["fc1_b"],
        fc2_w=params["fc2_w"], fc2_b=params["fc2_b"],
        lnf_w=params["lnf_w"], lnf_b=params["lnf_b"],
        head_w=head_w, head_b=head_b,
    )


def ranzcr_vit_forward(x, params):
    assert x.shape[0] == B, "kernel is specialized for the module's batch size"
    kp = prepare_kernel_params(params)

    patches = extract_patches(x)                                    # (B, N, PD)
    pf = jnp.zeros((B, SP, PD), jnp.float32).at[:, 1:1 + N, :].set(patches)
    pf = pf.reshape(BSP, PD)                                        # flat rows
    base_tiled = jnp.tile(kp["base_pad"], (B, 1))                   # (BSP, D)

    full = lambda shape: pl.BlockSpec(shape, lambda i: (0,) * len(shape))

    in_specs = [
        full((BSP, PD)),                                  # patches (padded, flat)
        full((PD, D)),                                    # pe_w
        full((BSP, D)),                                   # base (folded, tiled)
        full((BSP, BSP)),                                 # additive attn mask
        full((DEPTH, 1, D)), full((DEPTH, 1, D)),         # ln1 w/b
        full((DEPTH, D, 3 * D)), full((DEPTH, 1, 3 * D)), # qkv w/b (q pre-scaled)
        full((DEPTH, D, D)), full((DEPTH, 1, D)),         # proj w/b
        full((DEPTH, 1, D)), full((DEPTH, 1, D)),         # ln2 w/b
        full((DEPTH, D, MLP)), full((DEPTH, 1, MLP)),     # fc1 w/b
        full((DEPTH, MLP, D)), full((DEPTH, 1, D)),       # fc2 w/b
        full((1, D)), full((1, D)),                       # lnf w/b
        full((D, OUT_PAD)), full((1, OUT_PAD)),           # head w/b (lane padded)
    ]
    out_spec = full((B, OUT_PAD))

    fn = pl.pallas_call(
        vit_kernel,
        out_shape=jax.ShapeDtypeStruct((B, OUT_PAD), jnp.float32),
        grid_spec=pltpu.PrefetchScalarGridSpec(
            num_scalar_prefetch=0,
            grid=(1,),                     # whole batch in a single invocation
            in_specs=in_specs,
            out_specs=out_spec,
        ),
        compiler_params=pltpu.CompilerParams(
            dimension_semantics=("arbitrary",)),
    )
    out = fn(pf, kp["pe_w"], base_tiled, kp["mask"],
             kp["ln1_w"], kp["ln1_b"], kp["qkv_w"], kp["qkv_b"],
             kp["proj_w"], kp["proj_b"], kp["ln2_w"], kp["ln2_b"],
             kp["fc1_w"], kp["fc1_b"], kp["fc2_w"], kp["fc2_b"],
             kp["lnf_w"], kp["lnf_b"], kp["head_w"], kp["head_b"])
    return out[:, :OUT_DIM]


# --------------------------- pure-JAX reference -------------------------------
def reference_forward(x, params):
    patches = extract_patches(x)
    pe = patches @ params["pe_w"] + params["pe_b"]                    # (B, N, D)
    base = params["base"]
    tok = jnp.concatenate(
        [jnp.broadcast_to(base[:1], (x.shape[0], 1, D)), base[1:] + pe], axis=1)

    def ln(t, w, b):
        mu = jnp.mean(t, -1, keepdims=True)
        var = jnp.mean((t - mu) ** 2, -1, keepdims=True)
        return (t - mu) * jax.lax.rsqrt(var + LN_EPS) * w + b

    def gelu(t):
        c = 0.7978845608028654
        return 0.5 * t * (1.0 + jnp.tanh(c * (t + 0.044715 * t ** 3)))

    h = tok
    for d in range(DEPTH):
        y = ln(h, params["ln1_w"][d], params["ln1_b"][d])
        qkv = y @ params["qkv_w"][d] + params["qkv_b"][d]
        q, k, v = jnp.split(qkv, 3, axis=-1)
        q = q.reshape(-1, S, HEADS, HD).transpose(0, 2, 1, 3)
        k = k.reshape(-1, S, HEADS, HD).transpose(0, 2, 1, 3)
        v = v.reshape(-1, S, HEADS, HD).transpose(0, 2, 1, 3)
        s = jnp.einsum("bhqd,bhkd->bhqk", q, k) * SCALE
        p = jax.nn.softmax(s, axis=-1)
        a = jnp.einsum("bhqk,bhkd->bhqd", p, v).transpose(0, 2, 1, 3).reshape(-1, S, D)
        h = h + (a @ params["proj_w"][d] + params["proj_b"][d])
        y = ln(h, params["ln2_w"][d], params["ln2_b"][d])
        y = gelu(y @ params["fc1_w"][d] + params["fc1_b"][d])
        h = h + (y @ params["fc2_w"][d] + params["fc2_b"][d])
    h = ln(h, params["lnf_w"], params["lnf_b"])
    return h[:, 0, :] @ params["head_w"] + params["head_b"]


# ------------------------------ parameter init --------------------------------
def init_params(key):
    ks = jax.random.split(key, 16)
    nrm = lambda k, shape: (0.02 * jax.random.normal(k, shape)).astype(jnp.float32)
    zeros = lambda shape: jnp.zeros(shape, jnp.float32)
    ones = lambda shape: jnp.ones(shape, jnp.float32)

    cls = nrm(ks[0], (1, D))
    pos = nrm(ks[1], (S, D))
    base = pos.at[0].add(cls[0])          # row 0 = cls + pos[0]; rows 1: = pos[1:]

    return dict(
        pe_w=nrm(ks[2], (PD, D)), pe_b=zeros((1, D)),
        base=base,
        ln1_w=ones((DEPTH, 1, D)), ln1_b=zeros((DEPTH, 1, D)),
        qkv_w=nrm(ks[3], (DEPTH, D, 3 * D)), qkv_b=zeros((DEPTH, 1, 3 * D)),
        proj_w=nrm(ks[4], (DEPTH, D, D)), proj_b=zeros((DEPTH, 1, D)),
        ln2_w=ones((DEPTH, 1, D)), ln2_b=zeros((DEPTH, 1, D)),
        fc1_w=nrm(ks[5], (DEPTH, D, MLP)), fc1_b=zeros((DEPTH, 1, MLP)),
        fc2_w=nrm(ks[6], (DEPTH, MLP, D)), fc2_b=zeros((DEPTH, 1, D)),
        lnf_w=ones((1, D)), lnf_b=zeros((1, D)),
        head_w=nrm(ks[7], (D, OUT_DIM)), head_b=zeros((1, OUT_DIM)),
    )


if __name__ == "__main__":
    key = jax.random.PRNGKey(0)
    kx, kp = jax.random.split(key)
    x = jax.random.normal(kx, (B, C, IMG, IMG), dtype=jnp.float32)  # NCHW like PyTorch
    params = init_params(kp)

    out = ranzcr_vit_forward(x, params)
    out = jax.block_until_ready(out)

    ref = reference_forward(x, params)
    assert out.shape == (B, OUT_DIM)
    # tolerance accounts for the EUP approximate-reciprocal softmax normalization
    assert jnp.allclose(out, ref, rtol=2e-3, atol=2e-3), "mismatch vs JAX reference"
    print("KERNEL_OK")
</pallas_src>

<mosaic_0001>
module attributes {stable_mosaic.version = 11 : i64} {
  func.func @vit_kernel(%arg0: i32, %arg1: memref<48x48xf32, #tpu.memory_space<vmem>>, %arg2: memref<48x32xf32, #tpu.memory_space<vmem>>, %arg3: memref<48x32xf32, #tpu.memory_space<vmem>>, %arg4: memref<48x48xf32, #tpu.memory_space<vmem>>, %arg5: memref<2x1x32xf32, #tpu.memory_space<vmem>>, %arg6: memref<2x1x32xf32, #tpu.memory_space<vmem>>, %arg7: memref<2x32x96xf32, #tpu.memory_space<vmem>>, %arg8: memref<2x1x96xf32, #tpu.memory_space<vmem>>, %arg9: memref<2x32x32xf32, #tpu.memory_space<vmem>>, %arg10: memref<2x1x32xf32, #tpu.memory_space<vmem>>, %arg11: memref<2x1x32xf32, #tpu.memory_space<vmem>>, %arg12: memref<2x1x32xf32, #tpu.memory_space<vmem>>, %arg13: memref<2x32x128xf32, #tpu.memory_space<vmem>>, %arg14: memref<2x1x128xf32, #tpu.memory_space<vmem>>, %arg15: memref<2x128x32xf32, #tpu.memory_space<vmem>>, %arg16: memref<2x1x32xf32, #tpu.memory_space<vmem>>, %arg17: memref<1x32xf32, #tpu.memory_space<vmem>>, %arg18: memref<1x32xf32, #tpu.memory_space<vmem>>, %arg19: memref<32x128xf32, #tpu.memory_space<vmem>>, %arg20: memref<1x128xf32, #tpu.memory_space<vmem>>, %arg21: memref<2x128xf32, #tpu.memory_space<vmem>>) attributes {dimension_semantics = [#tpu.dimension_semantics<arbitrary>], iteration_bounds = array<i64: 1>, scalar_prefetch = 0 : i64, scratch_operands = 0 : i64, tpu.core_type = #tpu.core_type<tc>, window_params = [{pipeline_mode = #tpu.pipeline_mode<synchronous>, transform_indices = @transform_0, window_bounds = array<i64: 48, 48>}, {pipeline_mode = #tpu.pipeline_mode<synchronous>, transform_indices = @transform_1, window_bounds = array<i64: 48, 32>}, {pipeline_mode = #tpu.pipeline_mode<synchronous>, transform_indices = @transform_2, window_bounds = array<i64: 48, 32>}, {pipeline_mode = #tpu.pipeline_mode<synchronous>, transform_indices = @transform_3, window_bounds = array<i64: 48, 48>}, {pipeline_mode = #tpu.pipeline_mode<synchronous>, transform_indices = @transform_4, window_bounds = array<i64: 2, 1, 32>}, {pipeline_mode = #tpu.pipeline_mode<synchronous>, transform_indices = @transform_5, window_bounds = array<i64: 2, 1, 32>}, {pipeline_mode = #tpu.pipeline_mode<synchronous>, transform_indices = @transform_6, window_bounds = array<i64: 2, 32, 96>}, {pipeline_mode = #tpu.pipeline_mode<synchronous>, transform_indices = @transform_7, window_bounds = array<i64: 2, 1, 96>}, {pipeline_mode = #tpu.pipeline_mode<synchronous>, transform_indices = @transform_8, window_bounds = array<i64: 2, 32, 32>}, {pipeline_mode = #tpu.pipeline_mode<synchronous>, transform_indices = @transform_9, window_bounds = array<i64: 2, 1, 32>}, {pipeline_mode = #tpu.pipeline_mode<synchronous>, transform_indices = @transform_10, window_bounds = array<i64: 2, 1, 32>}, {pipeline_mode = #tpu.pipeline_mode<synchronous>, transform_indices = @transform_11, window_bounds = array<i64: 2, 1, 32>}, {pipeline_mode = #tpu.pipeline_mode<synchronous>, transform_indices = @transform_12, window_bounds = array<i64: 2, 32, 128>}, {pipeline_mode = #tpu.pipeline_mode<synchronous>, transform_indices = @transform_13, window_bounds = array<i64: 2, 1, 128>}, {pipeline_mode = #tpu.pipeline_mode<synchronous>, transform_indices = @transform_14, window_bounds = array<i64: 2, 128, 32>}, {pipeline_mode = #tpu.pipeline_mode<synchronous>, transform_indices = @transform_15, window_bounds = array<i64: 2, 1, 32>}, {pipeline_mode = #tpu.pipeline_mode<synchronous>, transform_indices = @transform_16, window_bounds = array<i64: 1, 32>}, {pipeline_mode = #tpu.pipeline_mode<synchronous>, transform_indices = @transform_17, window_bounds = array<i64: 1, 32>}, {pipeline_mode = #tpu.pipeline_mode<synchronous>, transform_indices = @transform_18, window_bounds = array<i64: 32, 128>}, {pipeline_mode = #tpu.pipeline_mode<synchronous>, transform_indices = @transform_19, window_bounds = array<i64: 1, 128>}, {pipeline_mode = #tpu.pipeline_mode<synchronous>, transform_indices = @transform_20, window_bounds = array<i64: 2, 128>}]} {
    %c0 = arith.constant 0 : index
    %c0_0 = arith.constant 0 : index
    %0 = vector.load %arg3[%c0, %c0_0] : memref<48x32xf32, #tpu.memory_space<vmem>>, vector<48x32xf32>
    %c0_1 = arith.constant 0 : index
    %c0_2 = arith.constant 0 : index
    %1 = vector.load %arg1[%c0_1, %c0_2] : memref<48x48xf32, #tpu.memory_space<vmem>>, vector<48x48xf32>
    %c0_3 = arith.constant 0 : index
    %c0_4 = arith.constant 0 : index
    %2 = vector.load %arg2[%c0_3, %c0_4] : memref<48x32xf32, #tpu.memory_space<vmem>>, vector<48x32xf32>
    %cst = arith.constant dense<0.000000e+00> : vector<48x32xf32>
    %3 = tpu.matmul %1, %2, %cst {dimension_numbers = #tpu.dot_dimension_numbers<[1], [0], [0], [1], [0, 0, 1, 1], [], []>} : vector<48x48xf32>, vector<48x32xf32>, vector<48x32xf32> -> vector<48x32xf32>
    %4 = arith.addf %0, %3 : vector<48x32xf32>
    %c0_5 = arith.constant 0 : index
    %c0_6 = arith.constant 0 : index
    %5 = vector.load %arg4[%c0_5, %c0_6] : memref<48x48xf32, #tpu.memory_space<vmem>>, vector<48x48xf32>
    %c0_7 = arith.constant 0 : index
    %c0_8 = arith.constant 0 : index
    %c0_9 = arith.constant 0 : index
    %6 = vector.load %arg5[%c0_7, %c0_8, %c0_9] : memref<2x1x32xf32, #tpu.memory_space<vmem>>, vector<1x1x32xf32>
    %7 = vector.shape_cast %6 : vector<1x1x32xf32> to vector<1x32xf32>
    %c0_10 = arith.constant 0 : index
    %c0_11 = arith.constant 0 : index
    %c0_12 = arith.constant 0 : index
    %8 = vector.load %arg6[%c0_10, %c0_11, %c0_12] : memref<2x1x32xf32, #tpu.memory_space<vmem>>, vector<1x1x32xf32>
    %9 = vector.shape_cast %8 : vector<1x1x32xf32> to vector<1x32xf32>
    %cst_13 = arith.constant dense<0.000000e+00> : vector<48xf32>
    %10 = vector.multi_reduction <add>, %4, %cst_13 [1] : vector<48x32xf32> to vector<48xf32>
    %11 = vector.shape_cast %10 : vector<48xf32> to vector<48x1xf32>
    %cst_14 = arith.constant 3.200000e+01 : f32
    %12 = vector.broadcast %cst_14 : f32 to vector<48x1xf32>
    %13 = arith.divf %11, %12 : vector<48x1xf32>
    %14 = vector.broadcast %13 : vector<48x1xf32> to vector<48x32xf32>
    %15 = arith.subf %4, %14 : vector<48x32xf32>
    %16 = arith.mulf %15, %15 : vector<48x32xf32>
    %cst_15 = arith.constant dense<0.000000e+00> : vector<48xf32>
    %17 = vector.multi_reduction <add>, %16, %cst_15 [1] : vector<48x32xf32> to vector<48xf32>
    %18 = vector.shape_cast %17 : vector<48xf32> to vector<48x1xf32>
    %cst_16 = arith.constant 3.200000e+01 : f32
    %19 = vector.broadcast %cst_16 : f32 to vector<48x1xf32>
    %20 = arith.divf %18, %19 : vector<48x1xf32>
    %21 = vector.broadcast %13 : vector<48x1xf32> to vector<48x32xf32>
    %22 = arith.subf %4, %21 : vector<48x32xf32>
    %cst_17 = arith.constant 9.99999997E-7 : f32
    %23 = vector.broadcast %cst_17 : f32 to vector<48x1xf32>
    %24 = arith.addf %20, %23 : vector<48x1xf32>
    %25 = math.rsqrt %24 : vector<48x1xf32>
    %26 = vector.broadcast %25 : vector<48x1xf32> to vector<48x32xf32>
    %27 = arith.mulf %22, %26 : vector<48x32xf32>
    %28 = vector.broadcast %7 : vector<1x32xf32> to vector<48x32xf32>
    %29 = arith.mulf %27, %28 : vector<48x32xf32>
    %30 = vector.broadcast %9 : vector<1x32xf32> to vector<48x32xf32>
    %31 = arith.addf %29, %30 : vector<48x32xf32>
    %c0_18 = arith.constant 0 : index
    %c0_19 = arith.constant 0 : index
    %c0_20 = arith.constant 0 : index
    %32 = vector.load %arg7[%c0_18, %c0_19, %c0_20] : memref<2x32x96xf32, #tpu.memory_space<vmem>>, vector<1x32x96xf32>
    %33 = vector.shape_cast %32 : vector<1x32x96xf32> to vector<32x96xf32>
    %cst_21 = arith.constant dense<0.000000e+00> : vector<48x96xf32>
    %34 = tpu.matmul %31, %33, %cst_21 {dimension_numbers = #tpu.dot_dimension_numbers<[1], [0], [0], [1], [0, 0, 1, 1], [], []>} : vector<48x32xf32>, vector<32x96xf32>, vector<48x96xf32> -> vector<48x96xf32>
    %c0_22 = arith.constant 0 : index
    %c0_23 = arith.constant 0 : index
    %c0_24 = arith.constant 0 : index
    %35 = vector.load %arg8[%c0_22, %c0_23, %c0_24] : memref<2x1x96xf32, #tpu.memory_space<vmem>>, vector<1x1x96xf32>
    %36 = vector.shape_cast %35 : vector<1x1x96xf32> to vector<1x96xf32>
    %37 = vector.broadcast %36 : vector<1x96xf32> to vector<48x96xf32>
    %38 = arith.addf %34, %37 : vector<48x96xf32>
    %39 = vector.extract_strided_slice %38 {offsets = [0, 0], sizes = [48, 32], strides = [1, 1]} : vector<48x96xf32> to vector<48x32xf32>
    %40 = vector.extract_strided_slice %38 {offsets = [0, 32], sizes = [48, 32], strides = [1, 1]} : vector<48x96xf32> to vector<48x32xf32>
    %41 = vector.extract_strided_slice %38 {offsets = [0, 64], sizes = [48, 32], strides = [1, 1]} : vector<48x96xf32> to vector<48x32xf32>
    %c0_25 = arith.constant 0 : index
    %c0_26 = arith.constant 0 : index
    %c0_27 = arith.constant 0 : index
    %42 = vector.load %arg9[%c0_25, %c0_26, %c0_27] : memref<2x32x32xf32, #tpu.memory_space<vmem>>, vector<1x32x32xf32>
    %43 = vector.shape_cast %42 : vector<1x32x32xf32> to vector<32x32xf32>
    %cst_28 = arith.constant 0.000000e+00 : f32
    %44 = vector.broadcast %cst_28 : f32 to vector<48x32xf32>
    %45 = vector.extract_strided_slice %39 {offsets = [0, 0], sizes = [48, 8], strides = [1, 1]} : vector<48x32xf32> to vector<48x8xf32>
    %46 = vector.extract_strided_slice %40 {offsets = [0, 0], sizes = [48, 8], strides = [1, 1]} : vector<48x32xf32> to vector<48x8xf32>
    %cst_29 = arith.constant dense<0.000000e+00> : vector<48x48xf32>
    %47 = tpu.matmul %45, %46, %cst_29 {dimension_numbers = #tpu.dot_dimension_numbers<[1], [1], [0], [0], [0, 0, 1, 0], [], []>} : vector<48x8xf32>, vector<48x8xf32>, vector<48x48xf32> -> vector<48x48xf32>
    %48 = arith.addf %47, %5 : vector<48x48xf32>
    %cst_30 = arith.constant dense<0xFF800000> : vector<48xf32>
    %49 = vector.multi_reduction <maximumf>, %48, %cst_30 [1] : vector<48x48xf32> to vector<48xf32>
    %50 = vector.shape_cast %49 : vector<48xf32> to vector<48x1xf32>
    %51 = vector.broadcast %50 : vector<48x1xf32> to vector<48x48xf32>
    %52 = arith.subf %48, %51 : vector<48x48xf32>
    %53 = math.exp %52 : vector<48x48xf32>
    %cst_31 = arith.constant dense<0.000000e+00> : vector<48xf32>
    %54 = vector.multi_reduction <add>, %53, %cst_31 [1] : vector<48x48xf32> to vector<48xf32>
    %55 = vector.shape_cast %54 : vector<48xf32> to vector<48x1xf32>
    %56 = tpu.reciprocal %55 {approx = true} : vector<48x1xf32> -> vector<48x1xf32>
    %57 = vector.broadcast %56 : vector<48x1xf32> to vector<48x48xf32>
    %58 = arith.mulf %53, %57 : vector<48x48xf32>
    %59 = vector.extract_strided_slice %41 {offsets = [0, 0], sizes = [48, 8], strides = [1, 1]} : vector<48x32xf32> to vector<48x8xf32>
    %cst_32 = arith.constant dense<0.000000e+00> : vector<48x8xf32>
    %60 = tpu.matmul %58, %59, %cst_32 {dimension_numbers = #tpu.dot_dimension_numbers<[1], [0], [0], [1], [0, 0, 1, 1], [], []>} : vector<48x48xf32>, vector<48x8xf32>, vector<48x8xf32> -> vector<48x8xf32>
    %61 = vector.extract_strided_slice %43 {offsets = [0, 0], sizes = [8, 32], strides = [1, 1]} : vector<32x32xf32> to vector<8x32xf32>
    %cst_33 = arith.constant dense<0.000000e+00> : vector<48x32xf32>
    %62 = tpu.matmul %60, %61, %cst_33 {dimension_numbers = #tpu.dot_dimension_numbers<[1], [0], [0], [1], [0, 0, 1, 1], [], []>} : vector<48x8xf32>, vector<8x32xf32>, vector<48x32xf32> -> vector<48x32xf32>
    %63 = arith.addf %44, %62 : vector<48x32xf32>
    %64 = vector.extract_strided_slice %39 {offsets = [0, 8], sizes = [48, 8], strides = [1, 1]} : vector<48x32xf32> to vector<48x8xf32>
    %65 = vector.extract_strided_slice %40 {offsets = [0, 8], sizes = [48, 8], strides = [1, 1]} : vector<48x32xf32> to vector<48x8xf32>
    %cst_34 = arith.constant dense<0.000000e+00> : vector<48x48xf32>
    %66 = tpu.matmul %64, %65, %cst_34 {dimension_numbers = #tpu.dot_dimension_numbers<[1], [1], [0], [0], [0, 0, 1, 0], [], []>} : vector<48x8xf32>, vector<48x8xf32>, vector<48x48xf32> -> vector<48x48xf32>
    %67 = arith.addf %66, %5 : vector<48x48xf32>
    %cst_35 = arith.constant dense<0xFF800000> : vector<48xf32>
    %68 = vector.multi_reduction <maximumf>, %67, %cst_35 [1] : vector<48x48xf32> to vector<48xf32>
    %69 = vector.shape_cast %68 : vector<48xf32> to vector<48x1xf32>
    %70 = vector.broadcast %69 : vector<48x1xf32> to vector<48x48xf32>
    %71 = arith.subf %67, %70 : vector<48x48xf32>
    %72 = math.exp %71 : vector<48x48xf32>
    %cst_36 = arith.constant dense<0.000000e+00> : vector<48xf32>
    %73 = vector.multi_reduction <add>, %72, %cst_36 [1] : vector<48x48xf32> to vector<48xf32>
    %74 = vector.shape_cast %73 : vector<48xf32> to vector<48x1xf32>
    %75 = tpu.reciprocal %74 {approx = true} : vector<48x1xf32> -> vector<48x1xf32>
    %76 = vector.broadcast %75 : vector<48x1xf32> to vector<48x48xf32>
    %77 = arith.mulf %72, %76 : vector<48x48xf32>
    %78 = vector.extract_strided_slice %41 {offsets = [0, 8], sizes = [48, 8], strides = [1, 1]} : vector<48x32xf32> to vector<48x8xf32>
    %cst_37 = arith.constant dense<0.000000e+00> : vector<48x8xf32>
    %79 = tpu.matmul %77, %78, %cst_37 {dimension_numbers = #tpu.dot_dimension_numbers<[1], [0], [0], [1], [0, 0, 1, 1], [], []>} : vector<48x48xf32>, vector<48x8xf32>, vector<48x8xf32> -> vector<48x8xf32>
    %80 = vector.extract_strided_slice %43 {offsets = [8, 0], sizes = [8, 32], strides = [1, 1]} : vector<32x32xf32> to vector<8x32xf32>
    %cst_38 = arith.constant dense<0.000000e+00> : vector<48x32xf32>
    %81 = tpu.matmul %79, %80, %cst_38 {dimension_numbers = #tpu.dot_dimension_numbers<[1], [0], [0], [1], [0, 0, 1, 1], [], []>} : vector<48x8xf32>, vector<8x32xf32>, vector<48x32xf32> -> vector<48x32xf32>
    %82 = arith.addf %63, %81 : vector<48x32xf32>
    %83 = vector.extract_strided_slice %39 {offsets = [0, 16], sizes = [48, 8], strides = [1, 1]} : vector<48x32xf32> to vector<48x8xf32>
    %84 = vector.extract_strided_slice %40 {offsets = [0, 16], sizes = [48, 8], strides = [1, 1]} : vector<48x32xf32> to vector<48x8xf32>
    %cst_39 = arith.constant dense<0.000000e+00> : vector<48x48xf32>
    %85 = tpu.matmul %83, %84, %cst_39 {dimension_numbers = #tpu.dot_dimension_numbers<[1], [1], [0], [0], [0, 0, 1, 0], [], []>} : vector<48x8xf32>, vector<48x8xf32>, vector<48x48xf32> -> vector<48x48xf32>
    %86 = arith.addf %85, %5 : vector<48x48xf32>
    %cst_40 = arith.constant dense<0xFF800000> : vector<48xf32>
    %87 = vector.multi_reduction <maximumf>, %86, %cst_40 [1] : vector<48x48xf32> to vector<48xf32>
    %88 = vector.shape_cast %87 : vector<48xf32> to vector<48x1xf32>
    %89 = vector.broadcast %88 : vector<48x1xf32> to vector<48x48xf32>
    %90 = arith.subf %86, %89 : vector<48x48xf32>
    %91 = math.exp %90 : vector<48x48xf32>
    %cst_41 = arith.constant dense<0.000000e+00> : vector<48xf32>
    %92 = vector.multi_reduction <add>, %91, %cst_41 [1] : vector<48x48xf32> to vector<48xf32>
    %93 = vector.shape_cast %92 : vector<48xf32> to vector<48x1xf32>
    %94 = tpu.reciprocal %93 {approx = true} : vector<48x1xf32> -> vector<48x1xf32>
    %95 = vector.broadcast %94 : vector<48x1xf32> to vector<48x48xf32>
    %96 = arith.mulf %91, %95 : vector<48x48xf32>
    %97 = vector.extract_strided_slice %41 {offsets = [0, 16], sizes = [48, 8], strides = [1, 1]} : vector<48x32xf32> to vector<48x8xf32>
    %cst_42 = arith.constant dense<0.000000e+00> : vector<48x8xf32>
    %98 = tpu.matmul %96, %97, %cst_42 {dimension_numbers = #tpu.dot_dimension_numbers<[1], [0], [0], [1], [0, 0, 1, 1], [], []>} : vector<48x48xf32>, vector<48x8xf32>, vector<48x8xf32> -> vector<48x8xf32>
    %99 = vector.extract_strided_slice %43 {offsets = [16, 0], sizes = [8, 32], strides = [1, 1]} : vector<32x32xf32> to vector<8x32xf32>
    %cst_43 = arith.constant dense<0.000000e+00> : vector<48x32xf32>
    %100 = tpu.matmul %98, %99, %cst_43 {dimension_numbers = #tpu.dot_dimension_numbers<[1], [0], [0], [1], [0, 0, 1, 1], [], []>} : vector<48x8xf32>, vector<8x32xf32>, vector<48x32xf32> -> vector<48x32xf32>
    %101 = arith.addf %82, %100 : vector<48x32xf32>
    %102 = vector.extract_strided_slice %39 {offsets = [0, 24], sizes = [48, 8], strides = [1, 1]} : vector<48x32xf32> to vector<48x8xf32>
    %103 = vector.extract_strided_slice %40 {offsets = [0, 24], sizes = [48, 8], strides = [1, 1]} : vector<48x32xf32> to vector<48x8xf32>
    %cst_44 = arith.constant dense<0.000000e+00> : vector<48x48xf32>
    %104 = tpu.matmul %102, %103, %cst_44 {dimension_numbers = #tpu.dot_dimension_numbers<[1], [1], [0], [0], [0, 0, 1, 0], [], []>} : vector<48x8xf32>, vector<48x8xf32>, vector<48x48xf32> -> vector<48x48xf32>
    %105 = arith.addf %104, %5 : vector<48x48xf32>
    %cst_45 = arith.constant dense<0xFF800000> : vector<48xf32>
    %106 = vector.multi_reduction <maximumf>, %105, %cst_45 [1] : vector<48x48xf32> to vector<48xf32>
    %107 = vector.shape_cast %106 : vector<48xf32> to vector<48x1xf32>
    %108 = vector.broadcast %107 : vector<48x1xf32> to vector<48x48xf32>
    %109 = arith.subf %105, %108 : vector<48x48xf32>
    %110 = math.exp %109 : vector<48x48xf32>
    %cst_46 = arith.constant dense<0.000000e+00> : vector<48xf32>
    %111 = vector.multi_reduction <add>, %110, %cst_46 [1] : vector<48x48xf32> to vector<48xf32>
    %112 = vector.shape_cast %111 : vector<48xf32> to vector<48x1xf32>
    %113 = tpu.reciprocal %112 {approx = true} : vector<48x1xf32> -> vector<48x1xf32>
    %114 = vector.broadcast %113 : vector<48x1xf32> to vector<48x48xf32>
    %115 = arith.mulf %110, %114 : vector<48x48xf32>
    %116 = vector.extract_strided_slice %41 {offsets = [0, 24], sizes = [48, 8], strides = [1, 1]} : vector<48x32xf32> to vector<48x8xf32>
    %cst_47 = arith.constant dense<0.000000e+00> : vector<48x8xf32>
    %117 = tpu.matmul %115, %116, %cst_47 {dimension_numbers = #tpu.dot_dimension_numbers<[1], [0], [0], [1], [0, 0, 1, 1], [], []>} : vector<48x48xf32>, vector<48x8xf32>, vector<48x8xf32> -> vector<48x8xf32>
    %118 = vector.extract_strided_slice %43 {offsets = [24, 0], sizes = [8, 32], strides = [1, 1]} : vector<32x32xf32> to vector<8x32xf32>
    %cst_48 = arith.constant dense<0.000000e+00> : vector<48x32xf32>
    %119 = tpu.matmul %117, %118, %cst_48 {dimension_numbers = #tpu.dot_dimension_numbers<[1], [0], [0], [1], [0, 0, 1, 1], [], []>} : vector<48x8xf32>, vector<8x32xf32>, vector<48x32xf32> -> vector<48x32xf32>
    %120 = arith.addf %101, %119 : vector<48x32xf32>
    %121 = arith.addf %4, %120 : vector<48x32xf32>
    %c0_49 = arith.constant 0 : index
    %c0_50 = arith.constant 0 : index
    %c0_51 = arith.constant 0 : index
    %122 = vector.load %arg10[%c0_49, %c0_50, %c0_51] : memref<2x1x32xf32, #tpu.memory_space<vmem>>, vector<1x1x32xf32>
    %123 = vector.shape_cast %122 : vector<1x1x32xf32> to vector<1x32xf32>
    %124 = vector.broadcast %123 : vector<1x32xf32> to vector<48x32xf32>
    %125 = arith.addf %121, %124 : vector<48x32xf32>
    %c0_52 = arith.constant 0 : index
    %c0_53 = arith.constant 0 : index
    %c0_54 = arith.constant 0 : index
    %126 = vector.load %arg11[%c0_52, %c0_53, %c0_54] : memref<2x1x32xf32, #tpu.memory_space<vmem>>, vector<1x1x32xf32>
    %127 = vector.shape_cast %126 : vector<1x1x32xf32> to vector<1x32xf32>
    %c0_55 = arith.constant 0 : index
    %c0_56 = arith.constant 0 : index
    %c0_57 = arith.constant 0 : index
    %128 = vector.load %arg12[%c0_55, %c0_56, %c0_57] : memref<2x1x32xf32, #tpu.memory_space<vmem>>, vector<1x1x32xf32>
    %129 = vector.shape_cast %128 : vector<1x1x32xf32> to vector<1x32xf32>
    %cst_58 = arith.constant dense<0.000000e+00> : vector<48xf32>
    %130 = vector.multi_reduction <add>, %125, %cst_58 [1] : vector<48x32xf32> to vector<48xf32>
    %131 = vector.shape_cast %130 : vector<48xf32> to vector<48x1xf32>
    %cst_59 = arith.constant 3.200000e+01 : f32
    %132 = vector.broadcast %cst_59 : f32 to vector<48x1xf32>
    %133 = arith.divf %131, %132 : vector<48x1xf32>
    %134 = vector.broadcast %133 : vector<48x1xf32> to vector<48x32xf32>
    %135 = arith.subf %125, %134 : vector<48x32xf32>
    %136 = arith.mulf %135, %135 : vector<48x32xf32>
    %cst_60 = arith.constant dense<0.000000e+00> : vector<48xf32>
    %137 = vector.multi_reduction <add>, %136, %cst_60 [1] : vector<48x32xf32> to vector<48xf32>
    %138 = vector.shape_cast %137 : vector<48xf32> to vector<48x1xf32>
    %cst_61 = arith.constant 3.200000e+01 : f32
    %139 = vector.broadcast %cst_61 : f32 to vector<48x1xf32>
    %140 = arith.divf %138, %139 : vector<48x1xf32>
    %141 = vector.broadcast %133 : vector<48x1xf32> to vector<48x32xf32>
    %142 = arith.subf %125, %141 : vector<48x32xf32>
    %cst_62 = arith.constant 9.99999997E-7 : f32
    %143 = vector.broadcast %cst_62 : f32 to vector<48x1xf32>
    %144 = arith.addf %140, %143 : vector<48x1xf32>
    %145 = math.rsqrt %144 : vector<48x1xf32>
    %146 = vector.broadcast %145 : vector<48x1xf32> to vector<48x32xf32>
    %147 = arith.mulf %142, %146 : vector<48x32xf32>
    %148 = vector.broadcast %127 : vector<1x32xf32> to vector<48x32xf32>
    %149 = arith.mulf %147, %148 : vector<48x32xf32>
    %150 = vector.broadcast %129 : vector<1x32xf32> to vector<48x32xf32>
    %151 = arith.addf %149, %150 : vector<48x32xf32>
    %c0_63 = arith.constant 0 : index
    %c0_64 = arith.constant 0 : index
    %c0_65 = arith.constant 0 : index
    %152 = vector.load %arg13[%c0_63, %c0_64, %c0_65] : memref<2x32x128xf32, #tpu.memory_space<vmem>>, vector<1x32x128xf32>
    %153 = vector.shape_cast %152 : vector<1x32x128xf32> to vector<32x128xf32>
    %cst_66 = arith.constant dense<0.000000e+00> : vector<48x128xf32>
    %154 = tpu.matmul %151, %153, %cst_66 {dimension_numbers = #tpu.dot_dimension_numbers<[1], [0], [0], [1], [0, 0, 1, 1], [], []>} : vector<48x32xf32>, vector<32x128xf32>, vector<48x128xf32> -> vector<48x128xf32>
    %c0_67 = arith.constant 0 : index
    %c0_68 = arith.constant 0 : index
    %c0_69 = arith.constant 0 : index
    %155 = vector.load %arg14[%c0_67, %c0_68, %c0_69] : memref<2x1x128xf32, #tpu.memory_space<vmem>>, vector<1x1x128xf32>
    %156 = vector.shape_cast %155 : vector<1x1x128xf32> to vector<1x128xf32>
    %157 = vector.broadcast %156 : vector<1x128xf32> to vector<48x128xf32>
    %158 = arith.addf %154, %157 : vector<48x128xf32>
    %cst_70 = arith.constant 5.000000e-01 : f32
    %159 = vector.broadcast %cst_70 : f32 to vector<48x128xf32>
    %160 = arith.mulf %159, %158 : vector<48x128xf32>
    %cst_71 = arith.constant 4.471500e-02 : f32
    %161 = vector.broadcast %cst_71 : f32 to vector<48x128xf32>
    %162 = arith.mulf %161, %158 : vector<48x128xf32>
    %163 = arith.mulf %162, %158 : vector<48x128xf32>
    %164 = arith.mulf %163, %158 : vector<48x128xf32>
    %165 = arith.addf %158, %164 : vector<48x128xf32>
    %cst_72 = arith.constant 0.797884583 : f32
    %166 = vector.broadcast %cst_72 : f32 to vector<48x128xf32>
    %167 = arith.mulf %166, %165 : vector<48x128xf32>
    %168 = math.tanh %167 : vector<48x128xf32>
    %cst_73 = arith.constant 1.000000e+00 : f32
    %169 = vector.broadcast %cst_73 : f32 to vector<48x128xf32>
    %170 = arith.addf %169, %168 : vector<48x128xf32>
    %171 = arith.mulf %160, %170 : vector<48x128xf32>
    %c0_74 = arith.constant 0 : index
    %c0_75 = arith.constant 0 : index
    %c0_76 = arith.constant 0 : index
    %172 = vector.load %arg15[%c0_74, %c0_75, %c0_76] : memref<2x128x32xf32, #tpu.memory_space<vmem>>, vector<1x128x32xf32>
    %173 = vector.shape_cast %172 : vector<1x128x32xf32> to vector<128x32xf32>
    %cst_77 = arith.constant dense<0.000000e+00> : vector<48x32xf32>
    %174 = tpu.matmul %171, %173, %cst_77 {dimension_numbers = #tpu.dot_dimension_numbers<[1], [0], [0], [1], [0, 0, 1, 1], [], []>} : vector<48x128xf32>, vector<128x32xf32>, vector<48x32xf32> -> vector<48x32xf32>
    %c0_78 = arith.constant 0 : index
    %c0_79 = arith.constant 0 : index
    %c0_80 = arith.constant 0 : index
    %175 = vector.load %arg16[%c0_78, %c0_79, %c0_80] : memref<2x1x32xf32, #tpu.memory_space<vmem>>, vector<1x1x32xf32>
    %176 = vector.shape_cast %175 : vector<1x1x32xf32> to vector<1x32xf32>
    %177 = vector.broadcast %176 : vector<1x32xf32> to vector<48x32xf32>
    %178 = arith.addf %174, %177 : vector<48x32xf32>
    %179 = arith.addf %125, %178 : vector<48x32xf32>
    %c1 = arith.constant 1 : index
    %c0_81 = arith.constant 0 : index
    %c0_82 = arith.constant 0 : index
    %180 = vector.load %arg5[%c1, %c0_81, %c0_82] : memref<2x1x32xf32, #tpu.memory_space<vmem>>, vector<1x1x32xf32>
    %181 = vector.shape_cast %180 : vector<1x1x32xf32> to vector<1x32xf32>
    %c1_83 = arith.constant 1 : index
    %c0_84 = arith.constant 0 : index
    %c0_85 = arith.constant 0 : index
    %182 = vector.load %arg6[%c1_83, %c0_84, %c0_85] : memref<2x1x32xf32, #tpu.memory_space<vmem>>, vector<1x1x32xf32>
    %183 = vector.shape_cast %182 : vector<1x1x32xf32> to vector<1x32xf32>
    %cst_86 = arith.constant dense<0.000000e+00> : vector<48xf32>
    %184 = vector.multi_reduction <add>, %179, %cst_86 [1] : vector<48x32xf32> to vector<48xf32>
    %185 = vector.shape_cast %184 : vector<48xf32> to vector<48x1xf32>
    %cst_87 = arith.constant 3.200000e+01 : f32
    %186 = vector.broadcast %cst_87 : f32 to vector<48x1xf32>
    %187 = arith.divf %185, %186 : vector<48x1xf32>
    %188 = vector.broadcast %187 : vector<48x1xf32> to vector<48x32xf32>
    %189 = arith.subf %179, %188 : vector<48x32xf32>
    %190 = arith.mulf %189, %189 : vector<48x32xf32>
    %cst_88 = arith.constant dense<0.000000e+00> : vector<48xf32>
    %191 = vector.multi_reduction <add>, %190, %cst_88 [1] : vector<48x32xf32> to vector<48xf32>
    %192 = vector.shape_cast %191 : vector<48xf32> to vector<48x1xf32>
    %cst_89 = arith.constant 3.200000e+01 : f32
    %193 = vector.broadcast %cst_89 : f32 to vector<48x1xf32>
    %194 = arith.divf %192, %193 : vector<48x1xf32>
    %195 = vector.broadcast %187 : vector<48x1xf32> to vector<48x32xf32>
    %196 = arith.subf %179, %195 : vector<48x32xf32>
    %cst_90 = arith.constant 9.99999997E-7 : f32
    %197 = vector.broadcast %cst_90 : f32 to vector<48x1xf32>
    %198 = arith.addf %194, %197 : vector<48x1xf32>
    %199 = math.rsqrt %198 : vector<48x1xf32>
    %200 = vector.broadcast %199 : vector<48x1xf32> to vector<48x32xf32>
    %201 = arith.mulf %196, %200 : vector<48x32xf32>
    %202 = vector.broadcast %181 : vector<1x32xf32> to vector<48x32xf32>
    %203 = arith.mulf %201, %202 : vector<48x32xf32>
    %204 = vector.broadcast %183 : vector<1x32xf32> to vector<48x32xf32>
    %205 = arith.addf %203, %204 : vector<48x32xf32>
    %c1_91 = arith.constant 1 : index
    %c0_92 = arith.constant 0 : index
    %c0_93 = arith.constant 0 : index
    %206 = vector.load %arg7[%c1_91, %c0_92, %c0_93] : memref<2x32x96xf32, #tpu.memory_space<vmem>>, vector<1x32x96xf32>
    %207 = vector.shape_cast %206 : vector<1x32x96xf32> to vector<32x96xf32>
    %cst_94 = arith.constant dense<0.000000e+00> : vector<48x96xf32>
    %208 = tpu.matmul %205, %207, %cst_94 {dimension_numbers = #tpu.dot_dimension_numbers<[1], [0], [0], [1], [0, 0, 1, 1], [], []>} : vector<48x32xf32>, vector<32x96xf32>, vector<48x96xf32> -> vector<48x96xf32>
    %c1_95 = arith.constant 1 : index
    %c0_96 = arith.constant 0 : index
    %c0_97 = arith.constant 0 : index
    %209 = vector.load %arg8[%c1_95, %c0_96, %c0_97] : memref<2x1x96xf32, #tpu.memory_space<vmem>>, vector<1x1x96xf32>
    %210 = vector.shape_cast %209 : vector<1x1x96xf32> to vector<1x96xf32>
    %211 = vector.broadcast %210 : vector<1x96xf32> to vector<48x96xf32>
    %212 = arith.addf %208, %211 : vector<48x96xf32>
    %213 = vector.extract_strided_slice %212 {offsets = [0, 0], sizes = [48, 32], strides = [1, 1]} : vector<48x96xf32> to vector<48x32xf32>
    %214 = vector.extract_strided_slice %212 {offsets = [0, 32], sizes = [48, 32], strides = [1, 1]} : vector<48x96xf32> to vector<48x32xf32>
    %215 = vector.extract_strided_slice %212 {offsets = [0, 64], sizes = [48, 32], strides = [1, 1]} : vector<48x96xf32> to vector<48x32xf32>
    %c1_98 = arith.constant 1 : index
    %c0_99 = arith.constant 0 : index
    %c0_100 = arith.constant 0 : index
    %216 = vector.load %arg9[%c1_98, %c0_99, %c0_100] : memref<2x32x32xf32, #tpu.memory_space<vmem>>, vector<1x32x32xf32>
    %217 = vector.shape_cast %216 : vector<1x32x32xf32> to vector<32x32xf32>
    %cst_101 = arith.constant 0.000000e+00 : f32
    %218 = vector.broadcast %cst_101 : f32 to vector<48x32xf32>
    %219 = vector.extract_strided_slice %213 {offsets = [0, 0], sizes = [48, 8], strides = [1, 1]} : vector<48x32xf32> to vector<48x8xf32>
    %220 = vector.extract_strided_slice %214 {offsets = [0, 0], sizes = [48, 8], strides = [1, 1]} : vector<48x32xf32> to vector<48x8xf32>
    %cst_102 = arith.constant dense<0.000000e+00> : vector<48x48xf32>
    %221 = tpu.matmul %219, %220, %cst_102 {dimension_numbers = #tpu.dot_dimension_numbers<[1], [1], [0], [0], [0, 0, 1, 0], [], []>} : vector<48x8xf32>, vector<48x8xf32>, vector<48x48xf32> -> vector<48x48xf32>
    %222 = arith.addf %221, %5 : vector<48x48xf32>
    %cst_103 = arith.constant dense<0xFF800000> : vector<48xf32>
    %223 = vector.multi_reduction <maximumf>, %222, %cst_103 [1] : vector<48x48xf32> to vector<48xf32>
    %224 = vector.shape_cast %223 : vector<48xf32> to vector<48x1xf32>
    %225 = vector.broadcast %224 : vector<48x1xf32> to vector<48x48xf32>
    %226 = arith.subf %222, %225 : vector<48x48xf32>
    %227 = math.exp %226 : vector<48x48xf32>
    %cst_104 = arith.constant dense<0.000000e+00> : vector<48xf32>
    %228 = vector.multi_reduction <add>, %227, %cst_104 [1] : vector<48x48xf32> to vector<48xf32>
    %229 = vector.shape_cast %228 : vector<48xf32> to vector<48x1xf32>
    %230 = tpu.reciprocal %229 {approx = true} : vector<48x1xf32> -> vector<48x1xf32>
    %231 = vector.broadcast %230 : vector<48x1xf32> to vector<48x48xf32>
    %232 = arith.mulf %227, %231 : vector<48x48xf32>
    %233 = vector.extract_strided_slice %215 {offsets = [0, 0], sizes = [48, 8], strides = [1, 1]} : vector<48x32xf32> to vector<48x8xf32>
    %cst_105 = arith.constant dense<0.000000e+00> : vector<48x8xf32>
    %234 = tpu.matmul %232, %233, %cst_105 {dimension_numbers = #tpu.dot_dimension_numbers<[1], [0], [0], [1], [0, 0, 1, 1], [], []>} : vector<48x48xf32>, vector<48x8xf32>, vector<48x8xf32> -> vector<48x8xf32>
    %235 = vector.extract_strided_slice %217 {offsets = [0, 0], sizes = [8, 32], strides = [1, 1]} : vector<32x32xf32> to vector<8x32xf32>
    %cst_106 = arith.constant dense<0.000000e+00> : vector<48x32xf32>
    %236 = tpu.matmul %234, %235, %cst_106 {dimension_numbers = #tpu.dot_dimension_numbers<[1], [0], [0], [1], [0, 0, 1, 1], [], []>} : vector<48x8xf32>, vector<8x32xf32>, vector<48x32xf32> -> vector<48x32xf32>
    %237 = arith.addf %218, %236 : vector<48x32xf32>
    %238 = vector.extract_strided_slice %213 {offsets = [0, 8], sizes = [48, 8], strides = [1, 1]} : vector<48x32xf32> to vector<48x8xf32>
    %239 = vector.extract_strided_slice %214 {offsets = [0, 8], sizes = [48, 8], strides = [1, 1]} : vector<48x32xf32> to vector<48x8xf32>
    %cst_107 = arith.constant dense<0.000000e+00> : vector<48x48xf32>
    %240 = tpu.matmul %238, %239, %cst_107 {dimension_numbers = #tpu.dot_dimension_numbers<[1], [1], [0], [0], [0, 0, 1, 0], [], []>} : vector<48x8xf32>, vector<48x8xf32>, vector<48x48xf32> -> vector<48x48xf32>
    %241 = arith.addf %240, %5 : vector<48x48xf32>
    %cst_108 = arith.constant dense<0xFF800000> : vector<48xf32>
    %242 = vector.multi_reduction <maximumf>, %241, %cst_108 [1] : vector<48x48xf32> to vector<48xf32>
    %243 = vector.shape_cast %242 : vector<48xf32> to vector<48x1xf32>
    %244 = vector.broadcast %243 : vector<48x1xf32> to vector<48x48xf32>
    %245 = arith.subf %241, %244 : vector<48x48xf32>
    %246 = math.exp %245 : vector<48x48xf32>
    %cst_109 = arith.constant dense<0.000000e+00> : vector<48xf32>
    %247 = vector.multi_reduction <add>, %246, %cst_109 [1] : vector<48x48xf32> to vector<48xf32>
    %248 = vector.shape_cast %247 : vector<48xf32> to vector<48x1xf32>
    %249 = tpu.reciprocal %248 {approx = true} : vector<48x1xf32> -> vector<48x1xf32>
    %250 = vector.broadcast %249 : vector<48x1xf32> to vector<48x48xf32>
    %251 = arith.mulf %246, %250 : vector<48x48xf32>
    %252 = vector.extract_strided_slice %215 {offsets = [0, 8], sizes = [48, 8], strides = [1, 1]} : vector<48x32xf32> to vector<48x8xf32>
    %cst_110 = arith.constant dense<0.000000e+00> : vector<48x8xf32>
    %253 = tpu.matmul %251, %252, %cst_110 {dimension_numbers = #tpu.dot_dimension_numbers<[1], [0], [0], [1], [0, 0, 1, 1], [], []>} : vector<48x48xf32>, vector<48x8xf32>, vector<48x8xf32> -> vector<48x8xf32>
    %254 = vector.extract_strided_slice %217 {offsets = [8, 0], sizes = [8, 32], strides = [1, 1]} : vector<32x32xf32> to vector<8x32xf32>
    %cst_111 = arith.constant dense<0.000000e+00> : vector<48x32xf32>
    %255 = tpu.matmul %253, %254, %cst_111 {dimension_numbers = #tpu.dot_dimension_numbers<[1], [0], [0], [1], [0, 0, 1, 1], [], []>} : vector<48x8xf32>, vector<8x32xf32>, vector<48x32xf32> -> vector<48x32xf32>
    %256 = arith.addf %237, %255 : vector<48x32xf32>
    %257 = vector.extract_strided_slice %213 {offsets = [0, 16], sizes = [48, 8], strides = [1, 1]} : vector<48x32xf32> to vector<48x8xf32>
    %258 = vector.extract_strided_slice %214 {offsets = [0, 16], sizes = [48, 8], strides = [1, 1]} : vector<48x32xf32> to vector<48x8xf32>
    %cst_112 = arith.constant dense<0.000000e+00> : vector<48x48xf32>
    %259 = tpu.matmul %257, %258, %cst_112 {dimension_numbers = #tpu.dot_dimension_numbers<[1], [1], [0], [0], [0, 0, 1, 0], [], []>} : vector<48x8xf32>, vector<48x8xf32>, vector<48x48xf32> -> vector<48x48xf32>
    %260 = arith.addf %259, %5 : vector<48x48xf32>
    %cst_113 = arith.constant dense<0xFF800000> : vector<48xf32>
    %261 = vector.multi_reduction <maximumf>, %260, %cst_113 [1] : vector<48x48xf32> to vector<48xf32>
    %262 = vector.shape_cast %261 : vector<48xf32> to vector<48x1xf32>
    %263 = vector.broadcast %262 : vector<48x1xf32> to vector<48x48xf32>
    %264 = arith.subf %260, %263 : vector<48x48xf32>
    %265 = math.exp %264 : vector<48x48xf32>
    %cst_114 = arith.constant dense<0.000000e+00> : vector<48xf32>
    %266 = vector.multi_reduction <add>, %265, %cst_114 [1] : vector<48x48xf32> to vector<48xf32>
    %267 = vector.shape_cast %266 : vector<48xf32> to vector<48x1xf32>
    %268 = tpu.reciprocal %267 {approx = true} : vector<48x1xf32> -> vector<48x1xf32>
    %269 = vector.broadcast %268 : vector<48x1xf32> to vector<48x48xf32>
    %270 = arith.mulf %265, %269 : vector<48x48xf32>
    %271 = vector.extract_strided_slice %215 {offsets = [0, 16], sizes = [48, 8], strides = [1, 1]} : vector<48x32xf32> to vector<48x8xf32>
    %cst_115 = arith.constant dense<0.000000e+00> : vector<48x8xf32>
    %272 = tpu.matmul %270, %271, %cst_115 {dimension_numbers = #tpu.dot_dimension_numbers<[1], [0], [0], [1], [0, 0, 1, 1], [], []>} : vector<48x48xf32>, vector<48x8xf32>, vector<48x8xf32> -> vector<48x8xf32>
    %273 = vector.extract_strided_slice %217 {offsets = [16, 0], sizes = [8, 32], strides = [1, 1]} : vector<32x32xf32> to vector<8x32xf32>
    %cst_116 = arith.constant dense<0.000000e+00> : vector<48x32xf32>
    %274 = tpu.matmul %272, %273, %cst_116 {dimension_numbers = #tpu.dot_dimension_numbers<[1], [0], [0], [1], [0, 0, 1, 1], [], []>} : vector<48x8xf32>, vector<8x32xf32>, vector<48x32xf32> -> vector<48x32xf32>
    %275 = arith.addf %256, %274 : vector<48x32xf32>
    %276 = vector.extract_strided_slice %213 {offsets = [0, 24], sizes = [48, 8], strides = [1, 1]} : vector<48x32xf32> to vector<48x8xf32>
    %277 = vector.extract_strided_slice %214 {offsets = [0, 24], sizes = [48, 8], strides = [1, 1]} : vector<48x32xf32> to vector<48x8xf32>
    %cst_117 = arith.constant dense<0.000000e+00> : vector<48x48xf32>
    %278 = tpu.matmul %276, %277, %cst_117 {dimension_numbers = #tpu.dot_dimension_numbers<[1], [1], [0], [0], [0, 0, 1, 0], [], []>} : vector<48x8xf32>, vector<48x8xf32>, vector<48x48xf32> -> vector<48x48xf32>
    %279 = arith.addf %278, %5 : vector<48x48xf32>
    %cst_118 = arith.constant dense<0xFF800000> : vector<48xf32>
    %280 = vector.multi_reduction <maximumf>, %279, %cst_118 [1] : vector<48x48xf32> to vector<48xf32>
    %281 = vector.shape_cast %280 : vector<48xf32> to vector<48x1xf32>
    %282 = vector.broadcast %281 : vector<48x1xf32> to vector<48x48xf32>
    %283 = arith.subf %279, %282 : vector<48x48xf32>
    %284 = math.exp %283 : vector<48x48xf32>
    %cst_119 = arith.constant dense<0.000000e+00> : vector<48xf32>
    %285 = vector.multi_reduction <add>, %284, %cst_119 [1] : vector<48x48xf32> to vector<48xf32>
    %286 = vector.shape_cast %285 : vector<48xf32> to vector<48x1xf32>
    %287 = tpu.reciprocal %286 {approx = true} : vector<48x1xf32> -> vector<48x1xf32>
    %288 = vector.broadcast %287 : vector<48x1xf32> to vector<48x48xf32>
    %289 = arith.mulf %284, %288 : vector<48x48xf32>
    %290 = vector.extract_strided_slice %215 {offsets = [0, 24], sizes = [48, 8], strides = [1, 1]} : vector<48x32xf32> to vector<48x8xf32>
    %cst_120 = arith.constant dense<0.000000e+00> : vector<48x8xf32>
    %291 = tpu.matmul %289, %290, %cst_120 {dimension_numbers = #tpu.dot_dimension_numbers<[1], [0], [0], [1], [0, 0, 1, 1], [], []>} : vector<48x48xf32>, vector<48x8xf32>, vector<48x8xf32> -> vector<48x8xf32>
    %292 = vector.extract_strided_slice %217 {offsets = [24, 0], sizes = [8, 32], strides = [1, 1]} : vector<32x32xf32> to vector<8x32xf32>
    %cst_121 = arith.constant dense<0.000000e+00> : vector<48x32xf32>
    %293 = tpu.matmul %291, %292, %cst_121 {dimension_numbers = #tpu.dot_dimension_numbers<[1], [0], [0], [1], [0, 0, 1, 1], [], []>} : vector<48x8xf32>, vector<8x32xf32>, vector<48x32xf32> -> vector<48x32xf32>
    %294 = arith.addf %275, %293 : vector<48x32xf32>
    %295 = arith.addf %179, %294 : vector<48x32xf32>
    %c1_122 = arith.constant 1 : index
    %c0_123 = arith.constant 0 : index
    %c0_124 = arith.constant 0 : index
    %296 = vector.load %arg10[%c1_122, %c0_123, %c0_124] : memref<2x1x32xf32, #tpu.memory_space<vmem>>, vector<1x1x32xf32>
    %297 = vector.shape_cast %296 : vector<1x1x32xf32> to vector<1x32xf32>
    %298 = vector.broadcast %297 : vector<1x32xf32> to vector<48x32xf32>
    %299 = arith.addf %295, %298 : vector<48x32xf32>
    %c1_125 = arith.constant 1 : index
    %c0_126 = arith.constant 0 : index
    %c0_127 = arith.constant 0 : index
    %300 = vector.load %arg11[%c1_125, %c0_126, %c0_127] : memref<2x1x32xf32, #tpu.memory_space<vmem>>, vector<1x1x32xf32>
    %301 = vector.shape_cast %300 : vector<1x1x32xf32> to vector<1x32xf32>
    %c1_128 = arith.constant 1 : index
    %c0_129 = arith.constant 0 : index
    %c0_130 = arith.constant 0 : index
    %302 = vector.load %arg12[%c1_128, %c0_129, %c0_130] : memref<2x1x32xf32, #tpu.memory_space<vmem>>, vector<1x1x32xf32>
    %303 = vector.shape_cast %302 : vector<1x1x32xf32> to vector<1x32xf32>
    %cst_131 = arith.constant dense<0.000000e+00> : vector<48xf32>
    %304 = vector.multi_reduction <add>, %299, %cst_131 [1] : vector<48x32xf32> to vector<48xf32>
    %305 = vector.shape_cast %304 : vector<48xf32> to vector<48x1xf32>
    %cst_132 = arith.constant 3.200000e+01 : f32
    %306 = vector.broadcast %cst_132 : f32 to vector<48x1xf32>
    %307 = arith.divf %305, %306 : vector<48x1xf32>
    %308 = vector.broadcast %307 : vector<48x1xf32> to vector<48x32xf32>
    %309 = arith.subf %299, %308 : vector<48x32xf32>
    %310 = arith.mulf %309, %309 : vector<48x32xf32>
    %cst_133 = arith.constant dense<0.000000e+00> : vector<48xf32>
    %311 = vector.multi_reduction <add>, %310, %cst_133 [1] : vector<48x32xf32> to vector<48xf32>
    %312 = vector.shape_cast %311 : vector<48xf32> to vector<48x1xf32>
    %cst_134 = arith.constant 3.200000e+01 : f32
    %313 = vector.broadcast %cst_134 : f32 to vector<48x1xf32>
    %314 = arith.divf %312, %313 : vector<48x1xf32>
    %315 = vector.broadcast %307 : vector<48x1xf32> to vector<48x32xf32>
    %316 = arith.subf %299, %315 : vector<48x32xf32>
    %cst_135 = arith.constant 9.99999997E-7 : f32
    %317 = vector.broadcast %cst_135 : f32 to vector<48x1xf32>
    %318 = arith.addf %314, %317 : vector<48x1xf32>
    %319 = math.rsqrt %318 : vector<48x1xf32>
    %320 = vector.broadcast %319 : vector<48x1xf32> to vector<48x32xf32>
    %321 = arith.mulf %316, %320 : vector<48x32xf32>
    %322 = vector.broadcast %301 : vector<1x32xf32> to vector<48x32xf32>
    %323 = arith.mulf %321, %322 : vector<48x32xf32>
    %324 = vector.broadcast %303 : vector<1x32xf32> to vector<48x32xf32>
    %325 = arith.addf %323, %324 : vector<48x32xf32>
    %c1_136 = arith.constant 1 : index
    %c0_137 = arith.constant 0 : index
    %c0_138 = arith.constant 0 : index
    %326 = vector.load %arg13[%c1_136, %c0_137, %c0_138] : memref<2x32x128xf32, #tpu.memory_space<vmem>>, vector<1x32x128xf32>
    %327 = vector.shape_cast %326 : vector<1x32x128xf32> to vector<32x128xf32>
    %cst_139 = arith.constant dense<0.000000e+00> : vector<48x128xf32>
    %328 = tpu.matmul %325, %327, %cst_139 {dimension_numbers = #tpu.dot_dimension_numbers<[1], [0], [0], [1], [0, 0, 1, 1], [], []>} : vector<48x32xf32>, vector<32x128xf32>, vector<48x128xf32> -> vector<48x128xf32>
    %c1_140 = arith.constant 1 : index
    %c0_141 = arith.constant 0 : index
    %c0_142 = arith.constant 0 : index
    %329 = vector.load %arg14[%c1_140, %c0_141, %c0_142] : memref<2x1x128xf32, #tpu.memory_space<vmem>>, vector<1x1x128xf32>
    %330 = vector.shape_cast %329 : vector<1x1x128xf32> to vector<1x128xf32>
    %331 = vector.broadcast %330 : vector<1x128xf32> to vector<48x128xf32>
    %332 = arith.addf %328, %331 : vector<48x128xf32>
    %cst_143 = arith.constant 5.000000e-01 : f32
    %333 = vector.broadcast %cst_143 : f32 to vector<48x128xf32>
    %334 = arith.mulf %333, %332 : vector<48x128xf32>
    %cst_144 = arith.constant 4.471500e-02 : f32
    %335 = vector.broadcast %cst_144 : f32 to vector<48x128xf32>
    %336 = arith.mulf %335, %332 : vector<48x128xf32>
    %337 = arith.mulf %336, %332 : vector<48x128xf32>
    %338 = arith.mulf %337, %332 : vector<48x128xf32>
    %339 = arith.addf %332, %338 : vector<48x128xf32>
    %cst_145 = arith.constant 0.797884583 : f32
    %340 = vector.broadcast %cst_145 : f32 to vector<48x128xf32>
    %341 = arith.mulf %340, %339 : vector<48x128xf32>
    %342 = math.tanh %341 : vector<48x128xf32>
    %cst_146 = arith.constant 1.000000e+00 : f32
    %343 = vector.broadcast %cst_146 : f32 to vector<48x128xf32>
    %344 = arith.addf %343, %342 : vector<48x128xf32>
    %345 = arith.mulf %334, %344 : vector<48x128xf32>
    %c1_147 = arith.constant 1 : index
    %c0_148 = arith.constant 0 : index
    %c0_149 = arith.constant 0 : index
    %346 = vector.load %arg15[%c1_147, %c0_148, %c0_149] : memref<2x128x32xf32, #tpu.memory_space<vmem>>, vector<1x128x32xf32>
    %347 = vector.shape_cast %346 : vector<1x128x32xf32> to vector<128x32xf32>
    %cst_150 = arith.constant dense<0.000000e+00> : vector<48x32xf32>
    %348 = tpu.matmul %345, %347, %cst_150 {dimension_numbers = #tpu.dot_dimension_numbers<[1], [0], [0], [1], [0, 0, 1, 1], [], []>} : vector<48x128xf32>, vector<128x32xf32>, vector<48x32xf32> -> vector<48x32xf32>
    %c1_151 = arith.constant 1 : index
    %c0_152 = arith.constant 0 : index
    %c0_153 = arith.constant 0 : index
    %349 = vector.load %arg16[%c1_151, %c0_152, %c0_153] : memref<2x1x32xf32, #tpu.memory_space<vmem>>, vector<1x1x32xf32>
    %350 = vector.shape_cast %349 : vector<1x1x32xf32> to vector<1x32xf32>
    %351 = vector.broadcast %350 : vector<1x32xf32> to vector<48x32xf32>
    %352 = arith.addf %348, %351 : vector<48x32xf32>
    %353 = arith.addf %299, %352 : vector<48x32xf32>
    %354 = vector.extract_strided_slice %353 {offsets = [0, 0], sizes = [1, 32], strides = [1, 1]} : vector<48x32xf32> to vector<1x32xf32>
    %355 = vector.extract_strided_slice %353 {offsets = [24, 0], sizes = [1, 32], strides = [1, 1]} : vector<48x32xf32> to vector<1x32xf32>
    %356 = tpu.concatenate %354, %355 in 0 : vector<1x32xf32>, vector<1x32xf32> -> vector<2x32xf32>
    %c0_154 = arith.constant 0 : index
    %c0_155 = arith.constant 0 : index
    %357 = vector.load %arg17[%c0_154, %c0_155] : memref<1x32xf32, #tpu.memory_space<vmem>>, vector<1x32xf32>
    %c0_156 = arith.constant 0 : index
    %c0_157 = arith.constant 0 : index
    %358 = vector.load %arg18[%c0_156, %c0_157] : memref<1x32xf32, #tpu.memory_space<vmem>>, vector<1x32xf32>
    %cst_158 = arith.constant dense<0.000000e+00> : vector<2xf32>
    %359 = vector.multi_reduction <add>, %356, %cst_158 [1] : vector<2x32xf32> to vector<2xf32>
    %360 = vector.shape_cast %359 : vector<2xf32> to vector<2x1xf32>
    %cst_159 = arith.constant 3.200000e+01 : f32
    %361 = vector.broadcast %cst_159 : f32 to vector<2x1xf32>
    %362 = arith.divf %360, %361 : vector<2x1xf32>
    %363 = vector.broadcast %362 : vector<2x1xf32> to vector<2x32xf32>
    %364 = arith.subf %356, %363 : vector<2x32xf32>
    %365 = arith.mulf %364, %364 : vector<2x32xf32>
    %cst_160 = arith.constant dense<0.000000e+00> : vector<2xf32>
    %366 = vector.multi_reduction <add>, %365, %cst_160 [1] : vector<2x32xf32> to vector<2xf32>
    %367 = vector.shape_cast %366 : vector<2xf32> to vector<2x1xf32>
    %cst_161 = arith.constant 3.200000e+01 : f32
    %368 = vector.broadcast %cst_161 : f32 to vector<2x1xf32>
    %369 = arith.divf %367, %368 : vector<2x1xf32>
    %370 = vector.broadcast %362 : vector<2x1xf32> to vector<2x32xf32>
    %371 = arith.subf %356, %370 : vector<2x32xf32>
    %cst_162 = arith.constant 9.99999997E-7 : f32
    %372 = vector.broadcast %cst_162 : f32 to vector<2x1xf32>
    %373 = arith.addf %369, %372 : vector<2x1xf32>
    %374 = math.rsqrt %373 : vector<2x1xf32>
    %375 = vector.broadcast %374 : vector<2x1xf32> to vector<2x32xf32>
    %376 = arith.mulf %371, %375 : vector<2x32xf32>
    %377 = vector.broadcast %357 : vector<1x32xf32> to vector<2x32xf32>
    %378 = arith.mulf %376, %377 : vector<2x32xf32>
    %379 = vector.broadcast %358 : vector<1x32xf32> to vector<2x32xf32>
    %380 = arith.addf %378, %379 : vector<2x32xf32>
    %c0_163 = arith.constant 0 : index
    %c0_164 = arith.constant 0 : index
    %381 = vector.load %arg19[%c0_163, %c0_164] : memref<32x128xf32, #tpu.memory_space<vmem>>, vector<32x128xf32>
    %cst_165 = arith.constant dense<0.000000e+00> : vector<2x128xf32>
    %382 = tpu.matmul %380, %381, %cst_165 {dimension_numbers = #tpu.dot_dimension_numbers<[1], [0], [0], [1], [0, 0, 1, 1], [], []>} : vector<2x32xf32>, vector<32x128xf32>, vector<2x128xf32> -> vector<2x128xf32>
    %c0_166 = arith.constant 0 : index
    %c0_167 = arith.constant 0 : index
    %383 = vector.load %arg20[%c0_166, %c0_167] : memref<1x128xf32, #tpu.memory_space<vmem>>, vector<1x128xf32>
    %384 = vector.broadcast %383 : vector<1x128xf32> to vector<2x128xf32>
    %385 = arith.addf %382, %384 : vector<2x128xf32>
    %c0_168 = arith.constant 0 : index
    %c0_169 = arith.constant 0 : index
    %386 = vector.load %arg21[%c0_168, %c0_169] : memref<2x128xf32, #tpu.memory_space<vmem>>, vector<2x128xf32>
    tpu.vector_store %arg21[%c0_168, %c0_169], %385 {strides = array<i32>} : memref<2x128xf32, #tpu.memory_space<vmem>>, vector<2x128xf32>,
    return
  }
  func.func @transform_0(%arg0: i32) -> (i32, i32) {
    %c0_i32 = arith.constant 0 : i32
    %c0_i32_0 = arith.constant 0 : i32
    %c0_i32_1 = arith.constant 0 : i32
    return %c0_i32, %c0_i32_0 : i32, i32
  }
  func.func @transform_1(%arg0: i32) -> (i32, i32) {
    %c0_i32 = arith.constant 0 : i32
    %c0_i32_0 = arith.constant 0 : i32
    %c0_i32_1 = arith.constant 0 : i32
    return %c0_i32, %c0_i32_0 : i32, i32
  }
  func.func @transform_2(%arg0: i32) -> (i32, i32) {
    %c0_i32 = arith.constant 0 : i32
    %c0_i32_0 = arith.constant 0 : i32
    %c0_i32_1 = arith.constant 0 : i32
    return %c0_i32, %c0_i32_0 : i32, i32
  }
  func.func @transform_3(%arg0: i32) -> (i32, i32) {
    %c0_i32 = arith.constant 0 : i32
    %c0_i32_0 = arith.constant 0 : i32
    %c0_i32_1 = arith.constant 0 : i32
    return %c0_i32, %c0_i32_0 : i32, i32
  }
  func.func @transform_4(%arg0: i32) -> (i32, i32, i32) {
    %c0_i32 = arith.constant 0 : i32
    %c0_i32_0 = arith.constant 0 : i32
    %c0_i32_1 = arith.constant 0 : i32
    %c0_i32_2 = arith.constant 0 : i32
    return %c0_i32, %c0_i32_0, %c0_i32_1 : i32, i32, i32
  }
  func.func @transform_5(%arg0: i32) -> (i32, i32, i32) {
    %c0_i32 = arith.constant 0 : i32
    %c0_i32_0 = arith.constant 0 : i32
    %c0_i32_1 = arith.constant 0 : i32
    %c0_i32_2 = arith.constant 0 : i32
    return %c0_i32, %c0_i32_0, %c0_i32_1 : i32, i32, i32
  }
  func.func @transform_6(%arg0: i32) -> (i32, i32, i32) {
    %c0_i32 = arith.constant 0 : i32
    %c0_i32_0 = arith.constant 0 : i32
    %c0_i32_1 = arith.constant 0 : i32
    %c0_i32_2 = arith.constant 0 : i32
    return %c0_i32, %c0_i32_0, %c0_i32_1 : i32, i32, i32
  }
  func.func @transform_7(%arg0: i32) -> (i32, i32, i32) {
    %c0_i32 = arith.constant 0 : i32
    %c0_i32_0 = arith.constant 0 : i32
    %c0_i32_1 = arith.constant 0 : i32
    %c0_i32_2 = arith.constant 0 : i32
    return %c0_i32, %c0_i32_0, %c0_i32_1 : i32, i32, i32
  }
  func.func @transform_8(%arg0: i32) -> (i32, i32, i32) {
    %c0_i32 = arith.constant 0 : i32
    %c0_i32_0 = arith.constant 0 : i32
    %c0_i32_1 = arith.constant 0 : i32
    %c0_i32_2 = arith.constant 0 : i32
    return %c0_i32, %c0_i32_0, %c0_i32_1 : i32, i32, i32
  }
  func.func @transform_9(%arg0: i32) -> (i32, i32, i32) {
    %c0_i32 = arith.constant 0 : i32
    %c0_i32_0 = arith.constant 0 : i32
    %c0_i32_1 = arith.constant 0 : i32
    %c0_i32_2 = arith.constant 0 : i32
    return %c0_i32, %c0_i32_0, %c0_i32_1 : i32, i32, i32
  }
  func.func @transform_10(%arg0: i32) -> (i32, i32, i32) {
    %c0_i32 = arith.constant 0 : i32
    %c0_i32_0 = arith.constant 0 : i32
    %c0_i32_1 = arith.constant 0 : i32
    %c0_i32_2 = arith.constant 0 : i32
    return %c0_i32, %c0_i32_0, %c0_i32_1 : i32, i32, i32
  }
  func.func @transform_11(%arg0: i32) -> (i32, i32, i32) {
    %c0_i32 = arith.constant 0 : i32
    %c0_i32_0 = arith.constant 0 : i32
    %c0_i32_1 = arith.constant 0 : i32
    %c0_i32_2 = arith.constant 0 : i32
    return %c0_i32, %c0_i32_0, %c0_i32_1 : i32, i32, i32
  }
  func.func @transform_12(%arg0: i32) -> (i32, i32, i32) {
    %c0_i32 = arith.constant 0 : i32
    %c0_i32_0 = arith.constant 0 : i32
    %c0_i32_1 = arith.constant 0 : i32
    %c0_i32_2 = arith.constant 0 : i32
    return %c0_i32, %c0_i32_0, %c0_i32_1 : i32, i32, i32
  }
  func.func @transform_13(%arg0: i32) -> (i32, i32, i32) {
    %c0_i32 = arith.constant 0 : i32
    %c0_i32_0 = arith.constant 0 : i32
    %c0_i32_1 = arith.constant 0 : i32
    %c0_i32_2 = arith.constant 0 : i32
    return %c0_i32, %c0_i32_0, %c0_i32_1 : i32, i32, i32
  }
  func.func @transform_14(%arg0: i32) -> (i32, i32, i32) {
    %c0_i32 = arith.constant 0 : i32
    %c0_i32_0 = arith.constant 0 : i32
    %c0_i32_1 = arith.constant 0 : i32
    %c0_i32_2 = arith.constant 0 : i32
    return %c0_i32, %c0_i32_0, %c0_i32_1 : i32, i32, i32
  }
  func.func @transform_15(%arg0: i32) -> (i32, i32, i32) {
    %c0_i32 = arith.constant 0 : i32
    %c0_i32_0 = arith.constant 0 : i32
    %c0_i32_1 = arith.constant 0 : i32
    %c0_i32_2 = arith.constant 0 : i32
    return %c0_i32, %c0_i32_0, %c0_i32_1 : i32, i32, i32
  }
  func.func @transform_16(%arg0: i32) -> (i32, i32) {
    %c0_i32 = arith.constant 0 : i32
    %c0_i32_0 = arith.constant 0 : i32
    %c0_i32_1 = arith.constant 0 : i32
    return %c0_i32, %c0_i32_0 : i32, i32
  }
  func.func @transform_17(%arg0: i32) -> (i32, i32) {
    %c0_i32 = arith.constant 0 : i32
    %c0_i32_0 = arith.constant 0 : i32
    %c0_i32_1 = arith.constant 0 : i32
    return %c0_i32, %c0_i32_0 : i32, i32
  }
  func.func @transform_18(%arg0: i32) -> (i32, i32) {
    %c0_i32 = arith.constant 0 : i32
    %c0_i32_0 = arith.constant 0 : i32
    %c0_i32_1 = arith.constant 0 : i32
    return %c0_i32, %c0_i32_0 : i32, i32
  }
  func.func @transform_19(%arg0: i32) -> (i32, i32) {
    %c0_i32 = arith.constant 0 : i32
    %c0_i32_0 = arith.constant 0 : i32
    %c0_i32_1 = arith.constant 0 : i32
    return %c0_i32, %c0_i32_0 : i32, i32
  }
  func.func @transform_20(%arg0: i32) -> (i32, i32) {
    %c0_i32 = arith.constant 0 : i32
    %c0_i32_0 = arith.constant 0 : i32
    %c0_i32_1 = arith.constant 0 : i32
    return %c0_i32, %c0_i32_0 : i32, i32
  }
}

</mosaic_0001>

<llo_original>
// kernel: tpu_custom_call.1
$region0: #{tpu_custom_call.1}
  #allocation0 [shape = 'u32[]', space=smem, size = 0x4, offset = 0x4, fixed_abs, tag = 'smem constant byte address 0x4 - core index']
  #allocation1 [shape = 'u32[144,128]{1,0:T(1,128)}', space=vmem, size = 0x12000, scoped, tag = 'internal scratch']
  %s0 = inlined_call_operand.vmem [shape: f32[48,48], index: 0, kind: input, shape index: {}]
  %s1 = inlined_call_operand.vmem [shape: f32[48,32], index: 1, kind: input, shape index: {}]
  %s2 = inlined_call_operand.vmem [shape: f32[48,32], index: 2, kind: input, shape index: {}]
  %s3 = inlined_call_operand.vmem [shape: f32[48,48], index: 3, kind: input, shape index: {}]
  %s4 = inlined_call_operand.vmem [shape: f32[2,1,32], index: 4, kind: input, shape index: {}]
  %s5 = inlined_call_operand.vmem [shape: f32[2,1,32], index: 5, kind: input, shape index: {}]
  %s6 = inlined_call_operand.vmem [shape: f32[2,32,96], index: 6, kind: input, shape index: {}]
  %s7 = inlined_call_operand.vmem [shape: f32[2,1,96], index: 7, kind: input, shape index: {}]
  %s8 = inlined_call_operand.vmem [shape: f32[2,32,32], index: 8, kind: input, shape index: {}]
  %s9 = inlined_call_operand.vmem [shape: f32[2,1,32], index: 9, kind: input, shape index: {}]
  %s10 = inlined_call_operand.vmem [shape: f32[2,1,32], index: 10, kind: input, shape index: {}]
  %s11 = inlined_call_operand.vmem [shape: f32[2,1,32], index: 11, kind: input, shape index: {}]
  %s12 = inlined_call_operand.vmem [shape: f32[2,32,128], index: 12, kind: input, shape index: {}]
  %s13 = inlined_call_operand.vmem [shape: f32[2,1,128], index: 13, kind: input, shape index: {}]
  %s14 = inlined_call_operand.vmem [shape: f32[2,128,32], index: 14, kind: input, shape index: {}]
  %s15 = inlined_call_operand.vmem [shape: f32[2,1,32], index: 15, kind: input, shape index: {}]
  %s16 = inlined_call_operand.vmem [shape: f32[1,32], index: 16, kind: input, shape index: {}]
  %s17 = inlined_call_operand.vmem [shape: f32[1,32], index: 17, kind: input, shape index: {}]
  %s18 = inlined_call_operand.vmem [shape: f32[32,128], index: 18, kind: input, shape index: {}]
  %s19 = inlined_call_operand.vmem [shape: f32[1,128], index: 19, kind: input, shape index: {}]
  %s20 = inlined_call_operand.hbm [shape: f32[2,128], index: 20, kind: output, shape index: {}]
  %s21 = sld [smem:[#allocation0]]
  $region90: #{tpu_custom_call.1} parent=0
    _
  %s23 = ssub.s32 1, %s21
  %s24 = scalar_select 0, %s23, %s21
  $region1: #{tpu_custom_call.1} parent=0
    #allocation2 [shape = 'u8[1024]{0}', space=vmem, size = 0x400, scoped, tag = 'output window, operand 0, single buffered']
    #allocation3 [shape = 's32[1]{0}', space=sflag, size = 0x4, scoped, tag = 'scoped memory for tpu_custom_call.1']
    %25 = vsyncpa [#allocation3], 0
    // Predicated region
    $region2: #{tpu_custom_call.1} parent=1 // pred_check
      _
    $region3: #{tpu_custom_call.1} parent=1 // pred_check_branch
      %27 = sbr.rel (0) target = $region5
    $region4: #{tpu_custom_call.1} parent=1 // pred_region
      _
    $region5: #{tpu_custom_call.1} parent=1 // pred_fallthru
      _
    // Predicated region
    $region6: #{tpu_custom_call.1} parent=1 // pred_check
      _
    $region7: #{tpu_custom_call.1} parent=1 // pred_check_branch
      %29 = sbr.rel (0) target = $region9
    $region8: #{tpu_custom_call.1} parent=1 // pred_region
      _
    $region9: #{tpu_custom_call.1} parent=1 // pred_fallthru
      _
    // Predicated region
    $region10: #{tpu_custom_call.1} parent=1 // pred_check
      _
    $region11: #{tpu_custom_call.1} parent=1 // pred_check_branch
      %31 = sbr.rel (0) target = $region13
    $region12: #{tpu_custom_call.1} parent=1 // pred_region
      _
    $region13: #{tpu_custom_call.1} parent=1 // pred_fallthru
      _
    // Predicated region
    $region14: #{tpu_custom_call.1} parent=1 // pred_check
      _
    $region15: #{tpu_custom_call.1} parent=1 // pred_check_branch
      %33 = sbr.rel (0) target = $region17
    $region16: #{tpu_custom_call.1} parent=1 // pred_region
      _
    $region17: #{tpu_custom_call.1} parent=1 // pred_fallthru
      _
    // Predicated region
    $region18: #{tpu_custom_call.1} parent=1 // pred_check
      _
    $region19: #{tpu_custom_call.1} parent=1 // pred_check_branch
      %35 = sbr.rel (0) target = $region21
    $region20: #{tpu_custom_call.1} parent=1 // pred_region
      _
    $region21: #{tpu_custom_call.1} parent=1 // pred_fallthru
      _
    // Predicated region
    $region22: #{tpu_custom_call.1} parent=1 // pred_check
      _
    $region23: #{tpu_custom_call.1} parent=1 // pred_check_branch
      %37 = sbr.rel (0) target = $region25
    $region24: #{tpu_custom_call.1} parent=1 // pred_region
      _
    $region25: #{tpu_custom_call.1} parent=1 // pred_fallthru
      _
    // Predicated region
    $region26: #{tpu_custom_call.1} parent=1 // pred_check
      _
    $region27: #{tpu_custom_call.1} parent=1 // pred_check_branch
      %39 = sbr.rel (0) target = $region29
    $region28: #{tpu_custom_call.1} parent=1 // pred_region
      _
    $region29: #{tpu_custom_call.1} parent=1 // pred_fallthru
      _
    // Predicated region
    $region30: #{tpu_custom_call.1} parent=1 // pred_check
      _
    $region31: #{tpu_custom_call.1} parent=1 // pred_check_branch
      %41 = sbr.rel (0) target = $region33
    $region32: #{tpu_custom_call.1} parent=1 // pred_region
      _
    $region33: #{tpu_custom_call.1} parent=1 // pred_fallthru
      _
    // Predicated region
    $region34: #{tpu_custom_call.1} parent=1 // pred_check
      _
    $region35: #{tpu_custom_call.1} parent=1 // pred_check_branch
      %43 = sbr.rel (0) target = $region37
    $region36: #{tpu_custom_call.1} parent=1 // pred_region
      _
    $region37: #{tpu_custom_call.1} parent=1 // pred_fallthru
      _
    // Predicated region
    $region38: #{tpu_custom_call.1} parent=1 // pred_check
      _
    $region39: #{tpu_custom_call.1} parent=1 // pred_check_branch
      %45 = sbr.rel (0) target = $region41
    $region40: #{tpu_custom_call.1} parent=1 // pred_region
      _
    $region41: #{tpu_custom_call.1} parent=1 // pred_fallthru
      _
    // Predicated region
    $region42: #{tpu_custom_call.1} parent=1 // pred_check
      _
    $region43: #{tpu_custom_call.1} parent=1 // pred_check_branch
      %47 = sbr.rel (0) target = $region45
    $region44: #{tpu_custom_call.1} parent=1 // pred_region
      _
    $region45: #{tpu_custom_call.1} parent=1 // pred_fallthru
      _
    // Predicated region
    $region46: #{tpu_custom_call.1} parent=1 // pred_check
      _
    $region47: #{tpu_custom_call.1} parent=1 // pred_check_branch
      %49 = sbr.rel (0) target = $region49
    $region48: #{tpu_custom_call.1} parent=1 // pred_region
      _
    $region49: #{tpu_custom_call.1} parent=1 // pred_fallthru
      _
    // Predicated region
    $region50: #{tpu_custom_call.1} parent=1 // pred_check
      _
    $region51: #{tpu_custom_call.1} parent=1 // pred_check_branch
      %51 = sbr.rel (0) target = $region53
    $region52: #{tpu_custom_call.1} parent=1 // pred_region
      _
    $region53: #{tpu_custom_call.1} parent=1 // pred_fallthru
      _
    // Predicated region
    $region54: #{tpu_custom_call.1} parent=1 // pred_check
      _
    $region55: #{tpu_custom_call.1} parent=1 // pred_check_branch
      %53 = sbr.rel (0) target = $region57
    $region56: #{tpu_custom_call.1} parent=1 // pred_region
      _
    $region57: #{tpu_custom_call.1} parent=1 // pred_fallthru
      _
    // Predicated region
    $region58: #{tpu_custom_call.1} parent=1 // pred_check
      _
    $region59: #{tpu_custom_call.1} parent=1 // pred_check_branch
      %55 = sbr.rel (0) target = $region61
    $region60: #{tpu_custom_call.1} parent=1 // pred_region
      _
    $region61: #{tpu_custom_call.1} parent=1 // pred_fallthru
      _
    // Predicated region
    $region62: #{tpu_custom_call.1} parent=1 // pred_check
      _
    $region63: #{tpu_custom_call.1} parent=1 // pred_check_branch
      %57 = sbr.rel (0) target = $region65
    $region64: #{tpu_custom_call.1} parent=1 // pred_region
      _
    $region65: #{tpu_custom_call.1} parent=1 // pred_fallthru
      _
    // Predicated region
    $region66: #{tpu_custom_call.1} parent=1 // pred_check
      _
    $region67: #{tpu_custom_call.1} parent=1 // pred_check_branch
      %59 = sbr.rel (0) target = $region69
    $region68: #{tpu_custom_call.1} parent=1 // pred_region
      _
    $region69: #{tpu_custom_call.1} parent=1 // pred_fallthru
      _
    // Predicated region
    $region70: #{tpu_custom_call.1} parent=1 // pred_check
      _
    $region71: #{tpu_custom_call.1} parent=1 // pred_check_branch
      %61 = sbr.rel (0) target = $region73
    $region72: #{tpu_custom_call.1} parent=1 // pred_region
      _
    $region73: #{tpu_custom_call.1} parent=1 // pred_fallthru
      _
    // Predicated region
    $region74: #{tpu_custom_call.1} parent=1 // pred_check
      _
    $region75: #{tpu_custom_call.1} parent=1 // pred_check_branch
      %63 = sbr.rel (0) target = $region77
    $region76: #{tpu_custom_call.1} parent=1 // pred_region
      _
    $region77: #{tpu_custom_call.1} parent=1 // pred_fallthru
      _
    // Predicated region
    $region78: #{tpu_custom_call.1} parent=1 // pred_check
      _
    $region79: #{tpu_custom_call.1} parent=1 // pred_check_branch
      %65 = sbr.rel (0) target = $region81
    $region80: #{tpu_custom_call.1} parent=1 // pred_region
      _
    $region81: #{tpu_custom_call.1} parent=1 // pred_fallthru
      _
    %v66 = vld [vmem:[%s2] sm:$0xff]
    %v67 = vld [vmem:[%s2 + $0x8] sm:$0xff]
    %v68 = vld [vmem:[%s2 + $0x10] sm:$0xff]
    %v69 = vld [vmem:[%s2 + $0x18] sm:$0xff]
    %v70 = vld [vmem:[%s2 + $0x20] sm:$0xff]
    %v71 = vld [vmem:[%s2 + $0x28] sm:$0xff]
    %v72 = vld [vmem:[%s0] sm:$0xff]
    %v73 = vld [vmem:[%s0 + $0x8] sm:$0xff]
    %v74 = vld [vmem:[%s0 + $0x10] sm:$0xff]
    %v75 = vld [vmem:[%s0 + $0x18] sm:$0xff]
    %v76 = vld [vmem:[%s0 + $0x20] sm:$0xff]
    %v77 = vld [vmem:[%s0 + $0x28] sm:$0xff]
    %v78 = vld [vmem:[%s1] sm:$0xff]
    %v79 = vld [vmem:[%s1 + $0x8] sm:$0xff]
    %v80 = vld [vmem:[%s1 + $0x10] sm:$0xff]
    %v81 = vld [vmem:[%s1 + $0x18] sm:$0xff]
    %v82 = vld [vmem:[%s1 + $0x20] sm:$0xff]
    %v83 = vld [vmem:[%s1 + $0x28] sm:$0xff]
    %vm84 = vcmask 392192
    %v86 = vsel %vm84, %v72, 0
    %v89 = vsel %vm84, %v73, 0
    %v92 = vsel %vm84, %v74, 0
    %v95 = vsel %vm84, %v75, 0
    %v98 = vsel %vm84, %v76, 0
    %v101 = vsel %vm84, %v77, 0
    %103 = vmatprep.subr.mxu0 0.0
    %104 = vmatpush1.msra.mxu0 %v78
    %105 = vmatprep.subr.mxu0 0.0
    %106 = vmatpush1.msra.mxu0 %v79
    %107 = vmatprep.subr.mxu0 0.0
    %108 = vmatpush1.msra.mxu0 %v80
    %109 = vmatprep.subr.mxu0 0.0
    %110 = vmatpush1.msra.mxu0 %v81
    %111 = vmatprep.subr.mxu0 0.0
    %112 = vmatpush1.msra.mxu0 %v82
    %113 = vmatprep.subr.mxu0 0.0
    %114 = vmatpush1.msra.mxu0 %v83
    %115 = vmatprep.subr.mxu0 0.0
    %116 = vmatpush1.msra.mxu0 0.0
    %117 = vmatprep.subr.mxu0 0.0
    %118 = vmatpush1.msra.mxu0 0.0
    %119 = vmatprep.subr.mxu0 0.0
    %120 = vmatpush1.msra.mxu0 0.0
    %121 = vmatprep.subr.mxu0 0.0
    %122 = vmatpush1.msra.mxu0 0.0
    %123 = vmatprep.subr.mxu0 0.0
    %124 = vmatpush1.msra.mxu0 0.0
    %125 = vmatprep.subr.mxu0 0.0
    %126 = vmatpush1.msra.mxu0 0.0
    %127 = vmatprep.subr.mxu0 0.0
    %128 = vmatpush1.msra.mxu0 0.0
    %129 = vmatprep.subr.mxu0 0.0
    %130 = vmatpush1.msra.mxu0 0.0
    %131 = vmatprep.subr.mxu0 0.0
    %132 = vmatpush1.msra.mxu0 0.0
    %133 = vmatprep.subr.mxu0 0.0
    %134 = vmatpush1.msra.mxu0 0.0
    %135 = vmatprep.subr.mxu0 0.0
    %136 = vmatpush1.msra.mxu0 0.0
    %137 = vmatprep.subr.mxu0 0.0
    %138 = vmatpush1.msra.mxu0 0.0
    %139 = vmatprep.subr.mxu0 0.0
    %140 = vmatpush1.msra.mxu0 0.0
    %141 = vmatprep.subr.mxu0 0.0
    %142 = vmatpush1.msra.mxu0 0.0
    %143 = vmatprep.subr.mxu0 0.0
    %144 = vmatpush1.msra.mxu0 0.0
    %145 = vmatprep.subr.mxu0 0.0
    %146 = vmatpush1.msra.mxu0 0.0
    %147 = vmatprep.subr.mxu0 0.0
    %148 = vmatpush1.msra.mxu0 0.0
    %149 = vmatprep.subr.mxu0 0.0
    %150 = vmatpush1.msra.mxu0 0.0
    %151 = vmatprep.subr.mxu0 0.0
    %152 = vmatpush1.msra.mxu0 0.0
    %153 = vmatprep.subr.mxu0 0.0
    %154 = vmatpush1.msra.mxu0 0.0
    %155 = vmatprep.subr.mxu0 0.0
    %156 = vmatpush1.msra.mxu0 0.0
    %157 = vmatprep.subr.mxu0 0.0
    %158 = vmatpush1.msra.mxu0 0.0
    %159 = vmatprep.subr.mxu0 0.0
    %160 = vmatpush1.msra.mxu0 0.0
    %161 = vmatprep.subr.mxu0 0.0
    %162 = vmatpush1.msra.mxu0 0.0
    %163 = vmatprep.subr.mxu0 0.0
    %164 = vmatpush1.msra.mxu0 0.0
    %165 = vmatprep.subr.mxu0 0.0
    %166 = vmatpush1.msra.mxu0 0.0
    %167 = vmatprep.mubr.f32.mxu0 0.0
    %168 = vmatmul.mubr.f32.gmra.mrb[0].mxu0 %v86
    %v169 = vpop.f32.mrb[0].mxu0
    %v170 = vadd.f32 0.0, %v169
    %v171 = vpop.f32.mrb[0].mxu0
    %172 = vmatprep.mubr.f32.mxu0 0.0
    %173 = vmatmul.mubr.f32.gmra.mrb[0].mxu0 %v89
    %v174 = vpop.f32.mrb[0].mxu0
    %v175 = vadd.f32 0.0, %v174
    %v176 = vpop.f32.mrb[0].mxu0
    %177 = vmatprep.mubr.f32.mxu0 0.0
    %178 = vmatmul.mubr.f32.gmra.mrb[0].mxu0 %v92
    %v179 = vpop.f32.mrb[0].mxu0
    %v180 = vadd.f32 0.0, %v179
    %v181 = vpop.f32.mrb[0].mxu0
    %182 = vmatprep.mubr.f32.mxu0 0.0
    %183 = vmatmul.mubr.f32.gmra.mrb[0].mxu0 %v95
    %v184 = vpop.f32.mrb[0].mxu0
    %v185 = vadd.f32 0.0, %v184
    %v186 = vpop.f32.mrb[0].mxu0
    %187 = vmatprep.mubr.f32.mxu0 0.0
    %188 = vmatmul.mubr.f32.gmra.mrb[0].mxu0 %v98
    %v189 = vpop.f32.mrb[0].mxu0
    %v190 = vadd.f32 0.0, %v189
    %v191 = vpop.f32.mrb[0].mxu0
    %192 = vmatprep.mubr.f32.mxu0 0.0
    %193 = vmatmul.mubr.f32.gmra.mrb[0].mxu0 %v101
    %v194 = vpop.f32.mrb[0].mxu0
    %v195 = vadd.f32 0.0, %v194
    %v196 = vpop.f32.mrb[0].mxu0
    %197 = vdwg.mxu0
    %v198 = vadd.f32 %v66, %v170
    %v199 = vadd.f32 %v67, %v175
    %v200 = vadd.f32 %v68, %v180
    %v201 = vadd.f32 %v69, %v185
    %v202 = vadd.f32 %v70, %v190
    %v203 = vadd.f32 %v71, %v195
    %v204 = vld [vmem:[%s3] sm:$0xff]
    %v205 = vld [vmem:[%s3 + $0x8] sm:$0xff]
    %v206 = vld [vmem:[%s3 + $0x10] sm:$0xff]
    %v207 = vld [vmem:[%s3 + $0x18] sm:$0xff]
    %v208 = vld [vmem:[%s3 + $0x20] sm:$0xff]
    %v209 = vld [vmem:[%s3 + $0x28] sm:$0xff]
    %v210 = vld [vmem:[%s4] sm:$0x1]
    %v211 = vld [vmem:[%s5] sm:$0x1]
    %vm212 = vcmask 261120
    %v213 = vsel %vm212, %v198, 0.0
    %214 = vadd.xlane.f32.xlu0 %v213
    %v215 = vpop.xlane.xlu0 %214
    %v216 = vsel %vm212, %v199, 0.0
    %217 = vadd.xlane.f32.xlu0 %v216
    %v218 = vpop.xlane.xlu0 %217
    %v219 = vsel %vm212, %v200, 0.0
    %220 = vadd.xlane.f32.xlu0 %v219
    %v221 = vpop.xlane.xlu0 %220
    %v222 = vsel %vm212, %v201, 0.0
    %223 = vadd.xlane.f32.xlu0 %v222
    %v224 = vpop.xlane.xlu0 %223
    %v225 = vsel %vm212, %v202, 0.0
    %226 = vadd.xlane.f32.xlu0 %v225
    %v227 = vpop.xlane.xlu0 %226
    %v228 = vsel %vm212, %v203, 0.0
    %229 = vadd.xlane.f32.xlu0 %v228
    %v230 = vpop.xlane.xlu0 %229
    %v231 = vrcp.pop 32.0
    %v232 = vmul.f32 %v215, %v231
    %v233 = vmul.f32 %v218, %v231
    %v234 = vmul.f32 %v221, %v231
    %v235 = vmul.f32 %v224, %v231
    %v236 = vmul.f32 %v227, %v231
    %v237 = vmul.f32 %v230, %v231
    %v238 = vsub.f32 %v198, %v232
    %v239 = vsub.f32 %v199, %v233
    %v240 = vsub.f32 %v200, %v234
    %v241 = vsub.f32 %v201, %v235
    %v242 = vsub.f32 %v202, %v236
    %v243 = vsub.f32 %v203, %v237
    %v244 = vmul.f32 %v238, %v238
    %v245 = vmul.f32 %v239, %v239
    %v246 = vmul.f32 %v240, %v240
    %v247 = vmul.f32 %v241, %v241
    %v248 = vmul.f32 %v242, %v242
    %v249 = vmul.f32 %v243, %v243
    %v250 = vsel %vm212, %v244, 0.0
    %251 = vadd.xlane.f32.xlu0 %v250
    %v252 = vpop.xlane.xlu0 %251
    %v253 = vsel %vm212, %v245, 0.0
    %254 = vadd.xlane.f32.xlu0 %v253
    %v255 = vpop.xlane.xlu0 %254
    %v256 = vsel %vm212, %v246, 0.0
    %257 = vadd.xlane.f32.xlu0 %v256
    %v258 = vpop.xlane.xlu0 %257
    %v259 = vsel %vm212, %v247, 0.0
    %260 = vadd.xlane.f32.xlu0 %v259
    %v261 = vpop.xlane.xlu0 %260
    %v262 = vsel %vm212, %v248, 0.0
    %263 = vadd.xlane.f32.xlu0 %v262
    %v264 = vpop.xlane.xlu0 %263
    %v265 = vsel %vm212, %v249, 0.0
    %266 = vadd.xlane.f32.xlu0 %v265
    %v267 = vpop.xlane.xlu0 %266
    %v268 = vmul.f32 %v252, %v231
    %v269 = vmul.f32 %v255, %v231
    %v270 = vmul.f32 %v258, %v231
    %v271 = vmul.f32 %v261, %v231
    %v272 = vmul.f32 %v264, %v231
    %v273 = vmul.f32 %v267, %v231
    %v274 = vadd.f32 %v268, 1e-06
    %v275 = vadd.f32 %v269, 1e-06
    %v276 = vadd.f32 %v270, 1e-06
    %v277 = vadd.f32 %v271, 1e-06
    %v278 = vadd.f32 %v272, 1e-06
    %v279 = vadd.f32 %v273, 1e-06
    %v280 = vrsqrt.pop %v274
    %v281 = vrsqrt.pop %v275
    %v282 = vrsqrt.pop %v276
    %v283 = vrsqrt.pop %v277
    %v284 = vrsqrt.pop %v278
    %v285 = vrsqrt.pop %v279
    %v286 = vmul.f32 %v238, %v280
    %v287 = vmul.f32 %v239, %v281
    %v288 = vmul.f32 %v240, %v282
    %v289 = vmul.f32 %v241, %v283
    %v290 = vmul.f32 %v242, %v284
    %v291 = vmul.f32 %v243, %v285
    %v293 = vlaneseq
    %v294 = vshrl.u32 %v293, 7
    %v295 = vsub.s32 0, %v294
    %v296 = vrot.slane %v210, %v295
    %v298 = vmul.f32 %v286, %v296
    %v299 = vmul.f32 %v287, %v296
    %v300 = vmul.f32 %v288, %v296
    %v301 = vmul.f32 %v289, %v296
    %v302 = vmul.f32 %v290, %v296
    %v303 = vmul.f32 %v291, %v296
    %v305 = vlaneseq
    %v306 = vshrl.u32 %v305, 7
    %v307 = vsub.s32 0, %v306
    %v308 = vrot.slane %v211, %v307
    %v310 = vadd.f32 %v298, %v308
    %v311 = vadd.f32 %v299, %v308
    %v312 = vadd.f32 %v300, %v308
    %v313 = vadd.f32 %v301, %v308
    %v314 = vadd.f32 %v302, %v308
    %v315 = vadd.f32 %v303, %v308
    %v316 = vld [vmem:[%s6] sm:$0xff]
    %v317 = vld [vmem:[%s6 + $0x8] sm:$0xff]
    %v318 = vld [vmem:[%s6 + $0x10] sm:$0xff]
    %v319 = vld [vmem:[%s6 + $0x18] sm:$0xff]
    %v320 = vld [vmem:[%s7] sm:$0x1]
    %v322 = vlaneseq
    %v323 = vshrl.u32 %v322, 7
    %v324 = vsub.s32 0, %v323
    %v325 = vrot.slane %v320, %v324
    %v328 = vsel %vm212, %v310, 0
    %v331 = vsel %vm212, %v311, 0
    %v334 = vsel %vm212, %v312, 0
    %v337 = vsel %vm212, %v313, 0
    %v340 = vsel %vm212, %v314, 0
    %v343 = vsel %vm212, %v315, 0
    %345 = vmatprep.subr.mxu0 0.0
    %346 = vmatpush1.msra.mxu0 %v316
    %347 = vmatprep.subr.mxu0 0.0
    %348 = vmatpush1.msra.mxu0 %v317
    %349 = vmatprep.subr.mxu0 0.0
    %350 = vmatpush1.msra.mxu0 %v318
    %351 = vmatprep.subr.mxu0 0.0
    %352 = vmatpush1.msra.mxu0 %v319
    %353 = vmatprep.subr.mxu0 0.0
    %354 = vmatpush1.msra.mxu0 0.0
    %355 = vmatprep.subr.mxu0 0.0
    %356 = vmatpush1.msra.mxu0 0.0
    %357 = vmatprep.subr.mxu0 0.0
    %358 = vmatpush1.msra.mxu0 0.0
    %359 = vmatprep.subr.mxu0 0.0
    %360 = vmatpush1.msra.mxu0 0.0
    %361 = vmatprep.subr.mxu0 0.0
    %362 = vmatpush1.msra.mxu0 0.0
    %363 = vmatprep.subr.mxu0 0.0
    %364 = vmatpush1.msra.mxu0 0.0
    %365 = vmatprep.subr.mxu0 0.0
    %366 = vmatpush1.msra.mxu0 0.0
    %367 = vmatprep.subr.mxu0 0.0
    %368 = vmatpush1.msra.mxu0 0.0
    %369 = vmatprep.subr.mxu0 0.0
    %370 = vmatpush1.msra.mxu0 0.0
    %371 = vmatprep.subr.mxu0 0.0
    %372 = vmatpush1.msra.mxu0 0.0
    %373 = vmatprep.subr.mxu0 0.0
    %374 = vmatpush1.msra.mxu0 0.0
    %375 = vmatprep.subr.mxu0 0.0
    %376 = vmatpush1.msra.mxu0 0.0
    %377 = vmatprep.subr.mxu0 0.0
    %378 = vmatpush1.msra.mxu0 0.0
    %379 = vmatprep.subr.mxu0 0.0
    %380 = vmatpush1.msra.mxu0 0.0
    %381 = vmatprep.subr.mxu0 0.0
    %382 = vmatpush1.msra.mxu0 0.0
    %383 = vmatprep.subr.mxu0 0.0
    %384 = vmatpush1.msra.mxu0 0.0
    %385 = vmatprep.subr.mxu0 0.0
    %386 = vmatpush1.msra.mxu0 0.0
    %387 = vmatprep.subr.mxu0 0.0
    %388 = vmatpush1.msra.mxu0 0.0
    %389 = vmatprep.subr.mxu0 0.0
    %390 = vmatpush1.msra.mxu0 0.0
    %391 = vmatprep.subr.mxu0 0.0
    %392 = vmatpush1.msra.mxu0 0.0
    %393 = vmatprep.subr.mxu0 0.0
    %394 = vmatpush1.msra.mxu0 0.0
    %395 = vmatprep.subr.mxu0 0.0
    %396 = vmatpush1.msra.mxu0 0.0
    %397 = vmatprep.subr.mxu0 0.0
    %398 = vmatpush1.msra.mxu0 0.0
    %399 = vmatprep.subr.mxu0 0.0
    %400 = vmatpush1.msra.mxu0 0.0
    %401 = vmatprep.subr.mxu0 0.0
    %402 = vmatpush1.msra.mxu0 0.0
    %403 = vmatprep.subr.mxu0 0.0
    %404 = vmatpush1.msra.mxu0 0.0
    %405 = vmatprep.subr.mxu0 0.0
    %406 = vmatpush1.msra.mxu0 0.0
    %407 = vmatprep.subr.mxu0 0.0
    %408 = vmatpush1.msra.mxu0 0.0
    %409 = vmatprep.mubr.f32.mxu0 0.0
    %410 = vmatmul.mubr.f32.gmra.mrb[0].mxu0 %v328
    %v411 = vpop.f32.mrb[0].mxu0
    %v412 = vadd.f32 %v325, %v411
    %v413 = vpop.f32.mrb[0].mxu0
    %414 = vmatprep.mubr.f32.mxu0 0.0
    %415 = vmatmul.mubr.f32.gmra.mrb[0].mxu0 %v331
    %v416 = vpop.f32.mrb[0].mxu0
    %v417 = vadd.f32 %v325, %v416
    %v418 = vpop.f32.mrb[0].mxu0
    %419 = vmatprep.mubr.f32.mxu0 0.0
    %420 = vmatmul.mubr.f32.gmra.mrb[0].mxu0 %v334
    %v421 = vpop.f32.mrb[0].mxu0
    %v422 = vadd.f32 %v325, %v421
    %v423 = vpop.f32.mrb[0].mxu0
    %424 = vmatprep.mubr.f32.mxu0 0.0
    %425 = vmatmul.mubr.f32.gmra.mrb[0].mxu0 %v337
    %v426 = vpop.f32.mrb[0].mxu0
    %v427 = vadd.f32 %v325, %v426
    %v428 = vpop.f32.mrb[0].mxu0
    %429 = vmatprep.mubr.f32.mxu0 0.0
    %430 = vmatmul.mubr.f32.gmra.mrb[0].mxu0 %v340
    %v431 = vpop.f32.mrb[0].mxu0
    %v432 = vadd.f32 %v325, %v431
    %v433 = vpop.f32.mrb[0].mxu0
    %434 = vmatprep.mubr.f32.mxu0 0.0
    %435 = vmatmul.mubr.f32.gmra.mrb[0].mxu0 %v343
    %v436 = vpop.f32.mrb[0].mxu0
    %v437 = vadd.f32 %v325, %v436
    %v438 = vpop.f32.mrb[0].mxu0
    %439 = vdwg.mxu0
    %v440 = vld [vmem:[%s8] sm:$0xff]
    %v441 = vld [vmem:[%s8 + $0x8] sm:$0xff]
    %v442 = vld [vmem:[%s8 + $0x10] sm:$0xff]
    %v443 = vld [vmem:[%s8 + $0x18] sm:$0xff]
    %450 = vrot.lane.b32.xlu0 %v412, 96
    %v451 = vpop.permute.xlu0 %450
    %452 = vrot.lane.b32.xlu0 %v417, 96
    %v453 = vpop.permute.xlu0 %452
    %454 = vrot.lane.b32.xlu0 %v422, 96
    %v455 = vpop.permute.xlu0 %454
    %456 = vrot.lane.b32.xlu0 %v427, 96
    %v457 = vpop.permute.xlu0 %456
    %458 = vrot.lane.b32.xlu0 %v432, 96
    %v459 = vpop.permute.xlu0 %458
    %460 = vrot.lane.b32.xlu0 %v437, 96
    %v461 = vpop.permute.xlu0 %460
    %vm462 = vcmask 64512
    %v463 = vsel %vm462, %v412, 0
    %v465 = vsel %vm462, %v417, 0
    %v467 = vsel %vm462, %v422, 0
    %v469 = vsel %vm462, %v427, 0
    %v471 = vsel %vm462, %v432, 0
    %v473 = vsel %vm462, %v437, 0
    %v475 = vsel %vm462, %v451, 0
    %v477 = vsel %vm462, %v453, 0
    %v479 = vsel %vm462, %v455, 0
    %v481 = vsel %vm462, %v457, 0
    %v483 = vsel %vm462, %v459, 0
    %v485 = vsel %vm462, %v461, 0
    %487 = vmatprep.subr.mxu0 0.0
    %488 = vmatpush1.xpose.msra.mxu0 %v475
    %489 = vmatprep.subr.mxu0 0.0
    %490 = vmatpush1.xpose.msra.mxu0 %v477
    %491 = vmatprep.subr.mxu0 0.0
    %492 = vmatpush1.xpose.msra.mxu0 %v479
    %493 = vmatprep.subr.mxu0 0.0
    %494 = vmatpush1.xpose.msra.mxu0 %v481
    %495 = vmatprep.subr.mxu0 0.0
    %496 = vmatpush1.xpose.msra.mxu0 %v483
    %497 = vmatprep.subr.mxu0 0.0
    %498 = vmatpush1.xpose.msra.mxu0 %v485
    %499 = vmatprep.subr.mxu0 0.0
    %500 = vmatpush1.xpose.msra.mxu0 0.0
    %501 = vmatprep.subr.mxu0 0.0
    %502 = vmatpush1.xpose.msra.mxu0 0.0
    %503 = vmatprep.subr.mxu0 0.0
    %504 = vmatpush1.xpose.msra.mxu0 0.0
    %505 = vmatprep.subr.mxu0 0.0
    %506 = vmatpush1.xpose.msra.mxu0 0.0
    %507 = vmatprep.subr.mxu0 0.0
    %508 = vmatpush1.xpose.msra.mxu0 0.0
    %509 = vmatprep.subr.mxu0 0.0
    %510 = vmatpush1.xpose.msra.mxu0 0.0
    %511 = vmatprep.subr.mxu0 0.0
    %512 = vmatpush1.xpose.msra.mxu0 0.0
    %513 = vmatprep.subr.mxu0 0.0
    %514 = vmatpush1.xpose.msra.mxu0 0.0
    %515 = vmatprep.subr.mxu0 0.0
    %516 = vmatpush1.xpose.msra.mxu0 0.0
    %517 = vmatprep.subr.mxu0 0.0
    %518 = vmatpush1.xpose.msra.mxu0 0.0
    %519 = vmatprep.subr.mxu0 0.0
    %520 = vmatpush1.xpose.msra.mxu0 0.0
    %521 = vmatprep.subr.mxu0 0.0
    %522 = vmatpush1.xpose.msra.mxu0 0.0
    %523 = vmatprep.subr.mxu0 0.0
    %524 = vmatpush1.xpose.msra.mxu0 0.0
    %525 = vmatprep.subr.mxu0 0.0
    %526 = vmatpush1.xpose.msra.mxu0 0.0
    %527 = vmatprep.subr.mxu0 0.0
    %528 = vmatpush1.xpose.msra.mxu0 0.0
    %529 = vmatprep.subr.mxu0 0.0
    %530 = vmatpush1.xpose.msra.mxu0 0.0
    %531 = vmatprep.subr.mxu0 0.0
    %532 = vmatpush1.xpose.msra.mxu0 0.0
    %533 = vmatprep.subr.mxu0 0.0
    %534 = vmatpush1.xpose.msra.mxu0 0.0
    %535 = vmatprep.subr.mxu0 0.0
    %536 = vmatpush1.xpose.msra.mxu0 0.0
    %537 = vmatprep.subr.mxu0 0.0
    %538 = vmatpush1.xpose.msra.mxu0 0.0
    %539 = vmatprep.subr.mxu0 0.0
    %540 = vmatpush1.xpose.msra.mxu0 0.0
    %541 = vmatprep.subr.mxu0 0.0
    %542 = vmatpush1.xpose.msra.mxu0 0.0
    %543 = vmatprep.subr.mxu0 0.0
    %544 = vmatpush1.xpose.msra.mxu0 0.0
    %545 = vmatprep.subr.mxu0 0.0
    %546 = vmatpush1.xpose.msra.mxu0 0.0
    %547 = vmatprep.subr.mxu0 0.0
    %548 = vmatpush1.xpose.msra.mxu0 0.0
    %549 = vmatprep.subr.mxu0 0.0
    %550 = vmatpush1.xpose.msra.mxu0 0.0
    %551 = vmatprep.mubr.f32.mxu0 0.0
    %552 = vmatmul.mubr.f32.gmra.mrb[0].mxu0 %v463
    %v553 = vpop.f32.mrb[0].mxu0
    %v554 = vadd.f32 %v204, %v553
    %v555 = vpop.f32.mrb[0].mxu0
    %556 = vmatprep.mubr.f32.mxu0 0.0
    %557 = vmatmul.mubr.f32.gmra.mrb[0].mxu0 %v465
    %v558 = vpop.f32.mrb[0].mxu0
    %v559 = vadd.f32 %v205, %v558
    %v560 = vpop.f32.mrb[0].mxu0
    %561 = vmatprep.mubr.f32.mxu0 0.0
    %562 = vmatmul.mubr.f32.gmra.mrb[0].mxu0 %v467
    %v563 = vpop.f32.mrb[0].mxu0
    %v564 = vadd.f32 %v206, %v563
    %v565 = vpop.f32.mrb[0].mxu0
    %566 = vmatprep.mubr.f32.mxu0 0.0
    %567 = vmatmul.mubr.f32.gmra.mrb[0].mxu0 %v469
    %v568 = vpop.f32.mrb[0].mxu0
    %v569 = vadd.f32 %v207, %v568
    %v570 = vpop.f32.mrb[0].mxu0
    %571 = vmatprep.mubr.f32.mxu0 0.0
    %572 = vmatmul.mubr.f32.gmra.mrb[0].mxu0 %v471
    %v573 = vpop.f32.mrb[0].mxu0
    %v574 = vadd.f32 %v208, %v573
    %v575 = vpop.f32.mrb[0].mxu0
    %576 = vmatprep.mubr.f32.mxu0 0.0
    %577 = vmatmul.mubr.f32.gmra.mrb[0].mxu0 %v473
    %v578 = vpop.f32.mrb[0].mxu0
    %v579 = vadd.f32 %v209, %v578
    %v580 = vpop.f32.mrb[0].mxu0
    %581 = vdwg.mxu0
    %v582 = vsel %vm84, %v554, -inf
    %583 = vmax.xlane.f32.xlu0 %v582
    %v584 = vpop.xlane.xlu0 %583
    %v585 = vsel %vm84, %v559, -inf
    %586 = vmax.xlane.f32.xlu0 %v585
    %v587 = vpop.xlane.xlu0 %586
    %v588 = vsel %vm84, %v564, -inf
    %589 = vmax.xlane.f32.xlu0 %v588
    %v590 = vpop.xlane.xlu0 %589
    %v591 = vsel %vm84, %v569, -inf
    %592 = vmax.xlane.f32.xlu0 %v591
    %v593 = vpop.xlane.xlu0 %592
    %v594 = vsel %vm84, %v574, -inf
    %595 = vmax.xlane.f32.xlu0 %v594
    %v596 = vpop.xlane.xlu0 %595
    %v597 = vsel %vm84, %v579, -inf
    %598 = vmax.xlane.f32.xlu0 %v597
    %v599 = vpop.xlane.xlu0 %598
    %v600 = vsub.f32 %v554, %v584
    %v601 = vsub.f32 %v559, %v587
    %v602 = vsub.f32 %v564, %v590
    %v603 = vsub.f32 %v569, %v593
    %v604 = vsub.f32 %v574, %v596
    %v605 = vsub.f32 %v579, %v599
    %v606 = vmul.f32 %v600, 1.442695
    %v607 = vpow.pop %v606
    %v608 = vmul.f32 %v601, 1.442695
    %v609 = vpow.pop %v608
    %v610 = vmul.f32 %v602, 1.442695
    %v611 = vpow.pop %v610
    %v612 = vmul.f32 %v603, 1.442695
    %v613 = vpow.pop %v612
    %v614 = vmul.f32 %v604, 1.442695
    %v615 = vpow.pop %v614
    %v616 = vmul.f32 %v605, 1.442695
    %v617 = vpow.pop %v616
    %v618 = vsel %vm84, %v607, 0.0
    %619 = vadd.xlane.f32.xlu0 %v618
    %v620 = vpop.xlane.xlu0 %619
    %v621 = vsel %vm84, %v609, 0.0
    %622 = vadd.xlane.f32.xlu0 %v621
    %v623 = vpop.xlane.xlu0 %622
    %v624 = vsel %vm84, %v611, 0.0
    %625 = vadd.xlane.f32.xlu0 %v624
    %v626 = vpop.xlane.xlu0 %625
    %v627 = vsel %vm84, %v613, 0.0
    %628 = vadd.xlane.f32.xlu0 %v627
    %v629 = vpop.xlane.xlu0 %628
    %v630 = vsel %vm84, %v615, 0.0
    %631 = vadd.xlane.f32.xlu0 %v630
    %v632 = vpop.xlane.xlu0 %631
    %v633 = vsel %vm84, %v617, 0.0
    %634 = vadd.xlane.f32.xlu0 %v633
    %v635 = vpop.xlane.xlu0 %634
    %v636 = vrcp.pop %v620
    %v637 = vrcp.pop %v623
    %v638 = vrcp.pop %v626
    %v639 = vrcp.pop %v629
    %v640 = vrcp.pop %v632
    %v641 = vrcp.pop %v635
    %v642 = vmul.f32 %v607, %v636
    %v643 = vmul.f32 %v609, %v637
    %v644 = vmul.f32 %v611, %v638
    %v645 = vmul.f32 %v613, %v639
    %v646 = vmul.f32 %v615, %v640
    %v647 = vmul.f32 %v617, %v641
    %648 = vrot.lane.b32.xlu0 %v412, 64
    %v649 = vpop.permute.xlu0 %648
    %650 = vrot.lane.b32.xlu0 %v417, 64
    %v651 = vpop.permute.xlu0 %650
    %652 = vrot.lane.b32.xlu0 %v422, 64
    %v653 = vpop.permute.xlu0 %652
    %654 = vrot.lane.b32.xlu0 %v427, 64
    %v655 = vpop.permute.xlu0 %654
    %656 = vrot.lane.b32.xlu0 %v432, 64
    %v657 = vpop.permute.xlu0 %656
    %658 = vrot.lane.b32.xlu0 %v437, 64
    %v659 = vpop.permute.xlu0 %658
    %v667 = vsel %vm84, %v642, 0
    %v670 = vsel %vm84, %v643, 0
    %v673 = vsel %vm84, %v644, 0
    %v676 = vsel %vm84, %v645, 0
    %v679 = vsel %vm84, %v646, 0
    %v682 = vsel %vm84, %v647, 0
    %684 = vmatprep.subr.mxu0 0.0
    %685 = vmatpush1.msra.mxu0 %v649
    %686 = vmatprep.subr.mxu0 0.0
    %687 = vmatpush1.msra.mxu0 %v651
    %688 = vmatprep.subr.mxu0 0.0
    %689 = vmatpush1.msra.mxu0 %v653
    %690 = vmatprep.subr.mxu0 0.0
    %691 = vmatpush1.msra.mxu0 %v655
    %692 = vmatprep.subr.mxu0 0.0
    %693 = vmatpush1.msra.mxu0 %v657
    %694 = vmatprep.subr.mxu0 0.0
    %695 = vmatpush1.msra.mxu0 %v659
    %696 = vmatprep.subr.mxu0 0.0
    %697 = vmatpush1.msra.mxu0 0.0
    %698 = vmatprep.subr.mxu0 0.0
    %699 = vmatpush1.msra.mxu0 0.0
    %700 = vmatprep.subr.mxu0 0.0
    %701 = vmatpush1.msra.mxu0 0.0
    %702 = vmatprep.subr.mxu0 0.0
    %703 = vmatpush1.msra.mxu0 0.0
    %704 = vmatprep.subr.mxu0 0.0
    %705 = vmatpush1.msra.mxu0 0.0
    %706 = vmatprep.subr.mxu0 0.0
    %707 = vmatpush1.msra.mxu0 0.0
    %708 = vmatprep.subr.mxu0 0.0
    %709 = vmatpush1.msra.mxu0 0.0
    %710 = vmatprep.subr.mxu0 0.0
    %711 = vmatpush1.msra.mxu0 0.0
    %712 = vmatprep.subr.mxu0 0.0
    %713 = vmatpush1.msra.mxu0 0.0
    %714 = vmatprep.subr.mxu0 0.0
    %715 = vmatpush1.msra.mxu0 0.0
    %716 = vmatprep.subr.mxu0 0.0
    %717 = vmatpush1.msra.mxu0 0.0
    %718 = vmatprep.subr.mxu0 0.0
    %719 = vmatpush1.msra.mxu0 0.0
    %720 = vmatprep.subr.mxu0 0.0
    %721 = vmatpush1.msra.mxu0 0.0
    %722 = vmatprep.subr.mxu0 0.0
    %723 = vmatpush1.msra.mxu0 0.0
    %724 = vmatprep.subr.mxu0 0.0
    %725 = vmatpush1.msra.mxu0 0.0
    %726 = vmatprep.subr.mxu0 0.0
    %727 = vmatpush1.msra.mxu0 0.0
    %728 = vmatprep.subr.mxu0 0.0
    %729 = vmatpush1.msra.mxu0 0.0
    %730 = vmatprep.subr.mxu0 0.0
    %731 = vmatpush1.msra.mxu0 0.0
    %732 = vmatprep.subr.mxu0 0.0
    %733 = vmatpush1.msra.mxu0 0.0
    %734 = vmatprep.subr.mxu0 0.0
    %735 = vmatpush1.msra.mxu0 0.0
    %736 = vmatprep.subr.mxu0 0.0
    %737 = vmatpush1.msra.mxu0 0.0
    %738 = vmatprep.subr.mxu0 0.0
    %739 = vmatpush1.msra.mxu0 0.0
    %740 = vmatprep.subr.mxu0 0.0
    %741 = vmatpush1.msra.mxu0 0.0
    %742 = vmatprep.subr.mxu0 0.0
    %743 = vmatpush1.msra.mxu0 0.0
    %744 = vmatprep.subr.mxu0 0.0
    %745 = vmatpush1.msra.mxu0 0.0
    %746 = vmatprep.subr.mxu0 0.0
    %747 = vmatpush1.msra.mxu0 0.0
    %748 = vmatprep.mubr.f32.mxu0 0.0
    %749 = vmatmul.mubr.f32.gmra.mrb[0].mxu0 %v667
    %v750 = vpop.f32.mrb[0].mxu0
    %v751 = vadd.f32 0.0, %v750
    %v752 = vpop.f32.mrb[0].mxu0
    %753 = vmatprep.mubr.f32.mxu0 0.0
    %754 = vmatmul.mubr.f32.gmra.mrb[0].mxu0 %v670
    %v755 = vpop.f32.mrb[0].mxu0
    %v756 = vadd.f32 0.0, %v755
    %v757 = vpop.f32.mrb[0].mxu0
    %758 = vmatprep.mubr.f32.mxu0 0.0
    %759 = vmatmul.mubr.f32.gmra.mrb[0].mxu0 %v673
    %v760 = vpop.f32.mrb[0].mxu0
    %v761 = vadd.f32 0.0, %v760
    %v762 = vpop.f32.mrb[0].mxu0
    %763 = vmatprep.mubr.f32.mxu0 0.0
    %764 = vmatmul.mubr.f32.gmra.mrb[0].mxu0 %v676
    %v765 = vpop.f32.mrb[0].mxu0
    %v766 = vadd.f32 0.0, %v765
    %v767 = vpop.f32.mrb[0].mxu0
    %768 = vmatprep.mubr.f32.mxu0 0.0
    %769 = vmatmul.mubr.f32.gmra.mrb[0].mxu0 %v679
    %v770 = vpop.f32.mrb[0].mxu0
    %v771 = vadd.f32 0.0, %v770
    %v772 = vpop.f32.mrb[0].mxu0
    %773 = vmatprep.mubr.f32.mxu0 0.0
    %774 = vmatmul.mubr.f32.gmra.mrb[0].mxu0 %v682
    %v775 = vpop.f32.mrb[0].mxu0
    %v776 = vadd.f32 0.0, %v775
    %v777 = vpop.f32.mrb[0].mxu0
    %778 = vdwg.mxu0
    %779 = vrot.lane.b32.xlu0 %v412, 120
    %v780 = vpop.permute.xlu0 %779
    %781 = vrot.lane.b32.xlu0 %v417, 120
    %v782 = vpop.permute.xlu0 %781
    %783 = vrot.lane.b32.xlu0 %v422, 120
    %v784 = vpop.permute.xlu0 %783
    %785 = vrot.lane.b32.xlu0 %v427, 120
    %v786 = vpop.permute.xlu0 %785
    %787 = vrot.lane.b32.xlu0 %v432, 120
    %v788 = vpop.permute.xlu0 %787
    %789 = vrot.lane.b32.xlu0 %v437, 120
    %v790 = vpop.permute.xlu0 %789
    %791 = vrot.lane.b32.xlu0 %v412, 88
    %v792 = vpop.permute.xlu0 %791
    %793 = vrot.lane.b32.xlu0 %v417, 88
    %v794 = vpop.permute.xlu0 %793
    %795 = vrot.lane.b32.xlu0 %v422, 88
    %v796 = vpop.permute.xlu0 %795
    %797 = vrot.lane.b32.xlu0 %v427, 88
    %v798 = vpop.permute.xlu0 %797
    %799 = vrot.lane.b32.xlu0 %v432, 88
    %v800 = vpop.permute.xlu0 %799
    %801 = vrot.lane.b32.xlu0 %v437, 88
    %v802 = vpop.permute.xlu0 %801
    %v803 = vsel %vm462, %v780, 0
    %v805 = vsel %vm462, %v782, 0
    %v807 = vsel %vm462, %v784, 0
    %v809 = vsel %vm462, %v786, 0
    %v811 = vsel %vm462, %v788, 0
    %v813 = vsel %vm462, %v790, 0
    %v815 = vsel %vm462, %v792, 0
    %v817 = vsel %vm462, %v794, 0
    %v819 = vsel %vm462, %v796, 0
    %v821 = vsel %vm462, %v798, 0
    %v823 = vsel %vm462, %v800, 0
    %v825 = vsel %vm462, %v802, 0
    %827 = vmatprep.subr.mxu0 0.0
    %828 = vmatpush1.xpose.msra.mxu0 %v815
    %829 = vmatprep.subr.mxu0 0.0
    %830 = vmatpush1.xpose.msra.mxu0 %v817
    %831 = vmatprep.subr.mxu0 0.0
    %832 = vmatpush1.xpose.msra.mxu0 %v819
    %833 = vmatprep.subr.mxu0 0.0
    %834 = vmatpush1.xpose.msra.mxu0 %v821
    %835 = vmatprep.subr.mxu0 0.0
    %836 = vmatpush1.xpose.msra.mxu0 %v823
    %837 = vmatprep.subr.mxu0 0.0
    %838 = vmatpush1.xpose.msra.mxu0 %v825
    %839 = vmatprep.subr.mxu0 0.0
    %840 = vmatpush1.xpose.msra.mxu0 0.0
    %841 = vmatprep.subr.mxu0 0.0
    %842 = vmatpush1.xpose.msra.mxu0 0.0
    %843 = vmatprep.subr.mxu0 0.0
    %844 = vmatpush1.xpose.msra.mxu0 0.0
    %845 = vmatprep.subr.mxu0 0.0
    %846 = vmatpush1.xpose.msra.mxu0 0.0
    %847 = vmatprep.subr.mxu0 0.0
    %848 = vmatpush1.xpose.msra.mxu0 0.0
    %849 = vmatprep.subr.mxu0 0.0
    %850 = vmatpush1.xpose.msra.mxu0 0.0
    %851 = vmatprep.subr.mxu0 0.0
    %852 = vmatpush1.xpose.msra.mxu0 0.0
    %853 = vmatprep.subr.mxu0 0.0
    %854 = vmatpush1.xpose.msra.mxu0 0.0
    %855 = vmatprep.subr.mxu0 0.0
    %856 = vmatpush1.xpose.msra.mxu0 0.0
    %857 = vmatprep.subr.mxu0 0.0
    %858 = vmatpush1.xpose.msra.mxu0 0.0
    %859 = vmatprep.subr.mxu0 0.0
    %860 = vmatpush1.xpose.msra.mxu0 0.0
    %861 = vmatprep.subr.mxu0 0.0
    %862 = vmatpush1.xpose.msra.mxu0 0.0
    %863 = vmatprep.subr.mxu0 0.0
    %864 = vmatpush1.xpose.msra.mxu0 0.0
    %865 = vmatprep.subr.mxu0 0.0
    %866 = vmatpush1.xpose.msra.mxu0 0.0
    %867 = vmatprep.subr.mxu0 0.0
    %868 = vmatpush1.xpose.msra.mxu0 0.0
    %869 = vmatprep.subr.mxu0 0.0
    %870 = vmatpush1.xpose.msra.mxu0 0.0
    %871 = vmatprep.subr.mxu0 0.0
    %872 = vmatpush1.xpose.msra.mxu0 0.0
    %873 = vmatprep.subr.mxu0 0.0
    %874 = vmatpush1.xpose.msra.mxu0 0.0
    %875 = vmatprep.subr.mxu0 0.0
    %876 = vmatpush1.xpose.msra.mxu0 0.0
    %877 = vmatprep.subr.mxu0 0.0
    %878 = vmatpush1.xpose.msra.mxu0 0.0
    %879 = vmatprep.subr.mxu0 0.0
    %880 = vmatpush1.xpose.msra.mxu0 0.0
    %881 = vmatprep.subr.mxu0 0.0
    %882 = vmatpush1.xpose.msra.mxu0 0.0
    %883 = vmatprep.subr.mxu0 0.0
    %884 = vmatpush1.xpose.msra.mxu0 0.0
    %885 = vmatprep.subr.mxu0 0.0
    %886 = vmatpush1.xpose.msra.mxu0 0.0
    %887 = vmatprep.subr.mxu0 0.0
    %888 = vmatpush1.xpose.msra.mxu0 0.0
    %889 = vmatprep.subr.mxu0 0.0
    %890 = vmatpush1.xpose.msra.mxu0 0.0
    %891 = vmatprep.mubr.f32.mxu0 0.0
    %892 = vmatmul.mubr.f32.gmra.mrb[0].mxu0 %v803
    %v893 = vpop.f32.mrb[0].mxu0
    %v894 = vadd.f32 %v204, %v893
    %v895 = vpop.f32.mrb[0].mxu0
    %896 = vmatprep.mubr.f32.mxu0 0.0
    %897 = vmatmul.mubr.f32.gmra.mrb[0].mxu0 %v805
    %v898 = vpop.f32.mrb[0].mxu0
    %v899 = vadd.f32 %v205, %v898
    %v900 = vpop.f32.mrb[0].mxu0
    %901 = vmatprep.mubr.f32.mxu0 0.0
    %902 = vmatmul.mubr.f32.gmra.mrb[0].mxu0 %v807
    %v903 = vpop.f32.mrb[0].mxu0
    %v904 = vadd.f32 %v206, %v903
    %v905 = vpop.f32.mrb[0].mxu0
    %906 = vmatprep.mubr.f32.mxu0 0.0
    %907 = vmatmul.mubr.f32.gmra.mrb[0].mxu0 %v809
    %v908 = vpop.f32.mrb[0].mxu0
    %v909 = vadd.f32 %v207, %v908
    %v910 = vpop.f32.mrb[0].mxu0
    %911 = vmatprep.mubr.f32.mxu0 0.0
    %912 = vmatmul.mubr.f32.gmra.mrb[0].mxu0 %v811
    %v913 = vpop.f32.mrb[0].mxu0
    %v914 = vadd.f32 %v208, %v913
    %v915 = vpop.f32.mrb[0].mxu0
    %916 = vmatprep.mubr.f32.mxu0 0.0
    %917 = vmatmul.mubr.f32.gmra.mrb[0].mxu0 %v813
    %v918 = vpop.f32.mrb[0].mxu0
    %v919 = vadd.f32 %v209, %v918
    %v920 = vpop.f32.mrb[0].mxu0
    %921 = vdwg.mxu0
    %v922 = vsel %vm84, %v894, -inf
    %923 = vmax.xlane.f32.xlu0 %v922
    %v924 = vpop.xlane.xlu0 %923
    %v925 = vsel %vm84, %v899, -inf
    %926 = vmax.xlane.f32.xlu0 %v925
    %v927 = vpop.xlane.xlu0 %926
    %v928 = vsel %vm84, %v904, -inf
    %929 = vmax.xlane.f32.xlu0 %v928
    %v930 = vpop.xlane.xlu0 %929
    %v931 = vsel %vm84, %v909, -inf
    %932 = vmax.xlane.f32.xlu0 %v931
    %v933 = vpop.xlane.xlu0 %932
    %v934 = vsel %vm84, %v914, -inf
    %935 = vmax.xlane.f32.xlu0 %v934
    %v936 = vpop.xlane.xlu0 %935
    %v937 = vsel %vm84, %v919, -inf
    %938 = vmax.xlane.f32.xlu0 %v937
    %v939 = vpop.xlane.xlu0 %938
    %v940 = vsub.f32 %v894, %v924
    %v941 = vsub.f32 %v899, %v927
    %v942 = vsub.f32 %v904, %v930
    %v943 = vsub.f32 %v909, %v933
    %v944 = vsub.f32 %v914, %v936
    %v945 = vsub.f32 %v919, %v939
    %v946 = vmul.f32 %v940, 1.442695
    %v947 = vpow.pop %v946
    %v948 = vmul.f32 %v941, 1.442695
    %v949 = vpow.pop %v948
    %v950 = vmul.f32 %v942, 1.442695
    %v951 = vpow.pop %v950
    %v952 = vmul.f32 %v943, 1.442695
    %v953 = vpow.pop %v952
    %v954 = vmul.f32 %v944, 1.442695
    %v955 = vpow.pop %v954
    %v956 = vmul.f32 %v945, 1.442695
    %v957 = vpow.pop %v956
    %v958 = vsel %vm84, %v947, 0.0
    %959 = vadd.xlane.f32.xlu0 %v958
    %v960 = vpop.xlane.xlu0 %959
    %v961 = vsel %vm84, %v949, 0.0
    %962 = vadd.xlane.f32.xlu0 %v961
    %v963 = vpop.xlane.xlu0 %962
    %v964 = vsel %vm84, %v951, 0.0
    %965 = vadd.xlane.f32.xlu0 %v964
    %v966 = vpop.xlane.xlu0 %965
    %v967 = vsel %vm84, %v953, 0.0
    %968 = vadd.xlane.f32.xlu0 %v967
    %v969 = vpop.xlane.xlu0 %968
    %v970 = vsel %vm84, %v955, 0.0
    %971 = vadd.xlane.f32.xlu0 %v970
    %v972 = vpop.xlane.xlu0 %971
    %v973 = vsel %vm84, %v957, 0.0
    %974 = vadd.xlane.f32.xlu0 %v973
    %v975 = vpop.xlane.xlu0 %974
    %v976 = vrcp.pop %v960
    %v977 = vrcp.pop %v963
    %v978 = vrcp.pop %v966
    %v979 = vrcp.pop %v969
    %v980 = vrcp.pop %v972
    %v981 = vrcp.pop %v975
    %v982 = vmul.f32 %v947, %v976
    %v983 = vmul.f32 %v949, %v977
    %v984 = vmul.f32 %v951, %v978
    %v985 = vmul.f32 %v953, %v979
    %v986 = vmul.f32 %v955, %v980
    %v987 = vmul.f32 %v957, %v981
    %988 = vrot.lane.b32.xlu0 %v412, 56
    %v989 = vpop.permute.xlu0 %988
    %990 = vrot.lane.b32.xlu0 %v417, 56
    %v991 = vpop.permute.xlu0 %990
    %992 = vrot.lane.b32.xlu0 %v422, 56
    %v993 = vpop.permute.xlu0 %992
    %994 = vrot.lane.b32.xlu0 %v427, 56
    %v995 = vpop.permute.xlu0 %994
    %996 = vrot.lane.b32.xlu0 %v432, 56
    %v997 = vpop.permute.xlu0 %996
    %998 = vrot.lane.b32.xlu0 %v437, 56
    %v999 = vpop.permute.xlu0 %998
    %v1007 = vsel %vm84, %v982, 0
    %v1010 = vsel %vm84, %v983, 0
    %v1013 = vsel %vm84, %v984, 0
    %v1016 = vsel %vm84, %v985, 0
    %v1019 = vsel %vm84, %v986, 0
    %v1022 = vsel %vm84, %v987, 0
    %1024 = vmatprep.subr.mxu0 0.0
    %1025 = vmatpush1.msra.mxu0 %v989
    %1026 = vmatprep.subr.mxu0 0.0
    %1027 = vmatpush1.msra.mxu0 %v991
    %1028 = vmatprep.subr.mxu0 0.0
    %1029 = vmatpush1.msra.mxu0 %v993
    %1030 = vmatprep.subr.mxu0 0.0
    %1031 = vmatpush1.msra.mxu0 %v995
    %1032 = vmatprep.subr.mxu0 0.0
    %1033 = vmatpush1.msra.mxu0 %v997
    %1034 = vmatprep.subr.mxu0 0.0
    %1035 = vmatpush1.msra.mxu0 %v999
    %1036 = vmatprep.subr.mxu0 0.0
    %1037 = vmatpush1.msra.mxu0 0.0
    %1038 = vmatprep.subr.mxu0 0.0
    %1039 = vmatpush1.msra.mxu0 0.0
    %1040 = vmatprep.subr.mxu0 0.0
    %1041 = vmatpush1.msra.mxu0 0.0
    %1042 = vmatprep.subr.mxu0 0.0
    %1043 = vmatpush1.msra.mxu0 0.0
    %1044 = vmatprep.subr.mxu0 0.0
    %1045 = vmatpush1.msra.mxu0 0.0
    %1046 = vmatprep.subr.mxu0 0.0
    %1047 = vmatpush1.msra.mxu0 0.0
    %1048 = vmatprep.subr.mxu0 0.0
    %1049 = vmatpush1.msra.mxu0 0.0
    %1050 = vmatprep.subr.mxu0 0.0
    %1051 = vmatpush1.msra.mxu0 0.0
    %1052 = vmatprep.subr.mxu0 0.0
    %1053 = vmatpush1.msra.mxu0 0.0
    %1054 = vmatprep.subr.mxu0 0.0
    %1055 = vmatpush1.msra.mxu0 0.0
    %1056 = vmatprep.subr.mxu0 0.0
    %1057 = vmatpush1.msra.mxu0 0.0
    %1058 = vmatprep.subr.mxu0 0.0
    %1059 = vmatpush1.msra.mxu0 0.0
    %1060 = vmatprep.subr.mxu0 0.0
    %1061 = vmatpush1.msra.mxu0 0.0
    %1062 = vmatprep.subr.mxu0 0.0
    %1063 = vmatpush1.msra.mxu0 0.0
    %1064 = vmatprep.subr.mxu0 0.0
    %1065 = vmatpush1.msra.mxu0 0.0
    %1066 = vmatprep.subr.mxu0 0.0
    %1067 = vmatpush1.msra.mxu0 0.0
    %1068 = vmatprep.subr.mxu0 0.0
    %1069 = vmatpush1.msra.mxu0 0.0
    %1070 = vmatprep.subr.mxu0 0.0
    %1071 = vmatpush1.msra.mxu0 0.0
    %1072 = vmatprep.subr.mxu0 0.0
    %1073 = vmatpush1.msra.mxu0 0.0
    %1074 = vmatprep.subr.mxu0 0.0
    %1075 = vmatpush1.msra.mxu0 0.0
    %1076 = vmatprep.subr.mxu0 0.0
    %1077 = vmatpush1.msra.mxu0 0.0
    %1078 = vmatprep.subr.mxu0 0.0
    %1079 = vmatpush1.msra.mxu0 0.0
    %1080 = vmatprep.subr.mxu0 0.0
    %1081 = vmatpush1.msra.mxu0 0.0
    %1082 = vmatprep.subr.mxu0 0.0
    %1083 = vmatpush1.msra.mxu0 0.0
    %1084 = vmatprep.subr.mxu0 0.0
    %1085 = vmatpush1.msra.mxu0 0.0
    %1086 = vmatprep.subr.mxu0 0.0
    %1087 = vmatpush1.msra.mxu0 0.0
    %1088 = vmatprep.mubr.f32.mxu0 0.0
    %1089 = vmatmul.mubr.f32.gmra.mrb[0].mxu0 %v1007
    %v1090 = vpop.f32.mrb[0].mxu0
    %v1091 = vadd.f32 0.0, %v1090
    %v1092 = vpop.f32.mrb[0].mxu0
    %1093 = vmatprep.mubr.f32.mxu0 0.0
    %1094 = vmatmul.mubr.f32.gmra.mrb[0].mxu0 %v1010
    %v1095 = vpop.f32.mrb[0].mxu0
    %v1096 = vadd.f32 0.0, %v1095
    %v1097 = vpop.f32.mrb[0].mxu0
    %1098 = vmatprep.mubr.f32.mxu0 0.0
    %1099 = vmatmul.mubr.f32.gmra.mrb[0].mxu0 %v1013
    %v1100 = vpop.f32.mrb[0].mxu0
    %v1101 = vadd.f32 0.0, %v1100
    %v1102 = vpop.f32.mrb[0].mxu0
    %1103 = vmatprep.mubr.f32.mxu0 0.0
    %1104 = vmatmul.mubr.f32.gmra.mrb[0].mxu0 %v1016
    %v1105 = vpop.f32.mrb[0].mxu0
    %v1106 = vadd.f32 0.0, %v1105
    %v1107 = vpop.f32.mrb[0].mxu0
    %1108 = vmatprep.mubr.f32.mxu0 0.0
    %1109 = vmatmul.mubr.f32.gmra.mrb[0].mxu0 %v1019
    %v1110 = vpop.f32.mrb[0].mxu0
    %v1111 = vadd.f32 0.0, %v1110
    %v1112 = vpop.f32.mrb[0].mxu0
    %1113 = vmatprep.mubr.f32.mxu0 0.0
    %1114 = vmatmul.mubr.f32.gmra.mrb[0].mxu0 %v1022
    %v1115 = vpop.f32.mrb[0].mxu0
    %v1116 = vadd.f32 0.0, %v1115
    %v1117 = vpop.f32.mrb[0].mxu0
    %1118 = vdwg.mxu0
    %v1120 = vsel %vm462, %v1091, 0
    %v1123 = vsel %vm462, %v1096, 0
    %v1126 = vsel %vm462, %v1101, 0
    %v1129 = vsel %vm462, %v1106, 0
    %v1132 = vsel %vm462, %v1111, 0
    %v1135 = vsel %vm462, %v1116, 0
    %1137 = vmatprep.subr.mxu0 0.0
    %1138 = vmatpush1.msra.mxu0 %v441
    %1139 = vmatprep.subr.mxu0 0.0
    %1140 = vmatpush1.msra.mxu0 0.0
    %1141 = vmatprep.subr.mxu0 0.0
    %1142 = vmatpush1.msra.mxu0 0.0
    %1143 = vmatprep.subr.mxu0 0.0
    %1144 = vmatpush1.msra.mxu0 0.0
    %1145 = vmatprep.subr.mxu0 0.0
    %1146 = vmatpush1.msra.mxu0 0.0
    %1147 = vmatprep.subr.mxu0 0.0
    %1148 = vmatpush1.msra.mxu0 0.0
    %1149 = vmatprep.subr.mxu0 0.0
    %1150 = vmatpush1.msra.mxu0 0.0
    %1151 = vmatprep.subr.mxu0 0.0
    %1152 = vmatpush1.msra.mxu0 0.0
    %1153 = vmatprep.subr.mxu0 0.0
    %1154 = vmatpush1.msra.mxu0 0.0
    %1155 = vmatprep.subr.mxu0 0.0
    %1156 = vmatpush1.msra.mxu0 0.0
    %1157 = vmatprep.subr.mxu0 0.0
    %1158 = vmatpush1.msra.mxu0 0.0
    %1159 = vmatprep.subr.mxu0 0.0
    %1160 = vmatpush1.msra.mxu0 0.0
    %1161 = vmatprep.subr.mxu0 0.0
    %1162 = vmatpush1.msra.mxu0 0.0
    %1163 = vmatprep.subr.mxu0 0.0
    %1164 = vmatpush1.msra.mxu0 0.0
    %1165 = vmatprep.subr.mxu0 0.0
    %1166 = vmatpush1.msra.mxu0 0.0
    %1167 = vmatprep.subr.mxu0 0.0
    %1168 = vmatpush1.msra.mxu0 0.0
    %1169 = vmatprep.subr.mxu0 0.0
    %1170 = vmatpush1.msra.mxu0 0.0
    %1171 = vmatprep.subr.mxu0 0.0
    %1172 = vmatpush1.msra.mxu0 0.0
    %1173 = vmatprep.subr.mxu0 0.0
    %1174 = vmatpush1.msra.mxu0 0.0
    %1175 = vmatprep.subr.mxu0 0.0
    %1176 = vmatpush1.msra.mxu0 0.0
    %1177 = vmatprep.subr.mxu0 0.0
    %1178 = vmatpush1.msra.mxu0 0.0
    %1179 = vmatprep.subr.mxu0 0.0
    %1180 = vmatpush1.msra.mxu0 0.0
    %1181 = vmatprep.subr.mxu0 0.0
    %1182 = vmatpush1.msra.mxu0 0.0
    %1183 = vmatprep.subr.mxu0 0.0
    %1184 = vmatpush1.msra.mxu0 0.0
    %1185 = vmatprep.subr.mxu0 0.0
    %1186 = vmatpush1.msra.mxu0 0.0
    %1187 = vmatprep.subr.mxu0 0.0
    %1188 = vmatpush1.msra.mxu0 0.0
    %1189 = vmatprep.subr.mxu0 0.0
    %1190 = vmatpush1.msra.mxu0 0.0
    %1191 = vmatprep.subr.mxu0 0.0
    %1192 = vmatpush1.msra.mxu0 0.0
    %1193 = vmatprep.subr.mxu0 0.0
    %1194 = vmatpush1.msra.mxu0 0.0
    %1195 = vmatprep.subr.mxu0 0.0
    %1196 = vmatpush1.msra.mxu0 0.0
    %1197 = vmatprep.subr.mxu0 0.0
    %1198 = vmatpush1.msra.mxu0 0.0
    %1199 = vmatprep.subr.mxu0 0.0
    %1200 = vmatpush1.msra.mxu0 0.0
    %1201 = vmatprep.mubr.f32.mxu0 0.0
    %1202 = vmatmul.mubr.f32.gmra.mrb[0].mxu0 %v1120
    %v1203 = vpop.f32.mrb[0].mxu0
    %v1204 = vadd.f32 0.0, %v1203
    %v1205 = vpop.f32.mrb[0].mxu0
    %1206 = vmatprep.mubr.f32.mxu0 0.0
    %1207 = vmatmul.mubr.f32.gmra.mrb[0].mxu0 %v1123
    %v1208 = vpop.f32.mrb[0].mxu0
    %v1209 = vadd.f32 0.0, %v1208
    %v1210 = vpop.f32.mrb[0].mxu0
    %1211 = vmatprep.mubr.f32.mxu0 0.0
    %1212 = vmatmul.mubr.f32.gmra.mrb[0].mxu0 %v1126
    %v1213 = vpop.f32.mrb[0].mxu0
    %v1214 = vadd.f32 0.0, %v1213
    %v1215 = vpop.f32.mrb[0].mxu0
    %1216 = vmatprep.mubr.f32.mxu0 0.0
    %1217 = vmatmul.mubr.f32.gmra.mrb[0].mxu0 %v1129
    %v1218 = vpop.f32.mrb[0].mxu0
    %v1219 = vadd.f32 0.0, %v1218
    %v1220 = vpop.f32.mrb[0].mxu0
    %1221 = vmatprep.mubr.f32.mxu0 0.0
    %1222 = vmatmul.mubr.f32.gmra.mrb[0].mxu0 %v1132
    %v1223 = vpop.f32.mrb[0].mxu0
    %v1224 = vadd.f32 0.0, %v1223
    %v1225 = vpop.f32.mrb[0].mxu0
    %1226 = vmatprep.mubr.f32.mxu0 0.0
    %1227 = vmatmul.mubr.f32.gmra.mrb[0].mxu0 %v1135
    %v1228 = vpop.f32.mrb[0].mxu0
    %v1229 = vadd.f32 0.0, %v1228
    %v1230 = vpop.f32.mrb[0].mxu0
    %1231 = vdwg.mxu0
    %v1233 = vsel %vm462, %v751, 0
    %v1236 = vsel %vm462, %v756, 0
    %v1239 = vsel %vm462, %v761, 0
    %v1242 = vsel %vm462, %v766, 0
    %v1245 = vsel %vm462, %v771, 0
    %v1248 = vsel %vm462, %v776, 0
    %1250 = vmatprep.subr.mxu0 0.0
    %1251 = vmatpush1.msra.mxu0 %v440
    %1252 = vmatprep.subr.mxu0 0.0
    %1253 = vmatpush1.msra.mxu0 0.0
    %1254 = vmatprep.subr.mxu0 0.0
    %1255 = vmatpush1.msra.mxu0 0.0
    %1256 = vmatprep.subr.mxu0 0.0
    %1257 = vmatpush1.msra.mxu0 0.0
    %1258 = vmatprep.subr.mxu0 0.0
    %1259 = vmatpush1.msra.mxu0 0.0
    %1260 = vmatprep.subr.mxu0 0.0
    %1261 = vmatpush1.msra.mxu0 0.0
    %1262 = vmatprep.subr.mxu0 0.0
    %1263 = vmatpush1.msra.mxu0 0.0
    %1264 = vmatprep.subr.mxu0 0.0
    %1265 = vmatpush1.msra.mxu0 0.0
    %1266 = vmatprep.subr.mxu0 0.0
    %1267 = vmatpush1.msra.mxu0 0.0
    %1268 = vmatprep.subr.mxu0 0.0
    %1269 = vmatpush1.msra.mxu0 0.0
    %1270 = vmatprep.subr.mxu0 0.0
    %1271 = vmatpush1.msra.mxu0 0.0
    %1272 = vmatprep.subr.mxu0 0.0
    %1273 = vmatpush1.msra.mxu0 0.0
    %1274 = vmatprep.subr.mxu0 0.0
    %1275 = vmatpush1.msra.mxu0 0.0
    %1276 = vmatprep.subr.mxu0 0.0
    %1277 = vmatpush1.msra.mxu0 0.0
    %1278 = vmatprep.subr.mxu0 0.0
    %1279 = vmatpush1.msra.mxu0 0.0
    %1280 = vmatprep.subr.mxu0 0.0
    %1281 = vmatpush1.msra.mxu0 0.0
    %1282 = vmatprep.subr.mxu0 0.0
    %1283 = vmatpush1.msra.mxu0 0.0
    %1284 = vmatprep.subr.mxu0 0.0
    %1285 = vmatpush1.msra.mxu0 0.0
    %1286 = vmatprep.subr.mxu0 0.0
    %1287 = vmatpush1.msra.mxu0 0.0
    %1288 = vmatprep.subr.mxu0 0.0
    %1289 = vmatpush1.msra.mxu0 0.0
    %1290 = vmatprep.subr.mxu0 0.0
    %1291 = vmatpush1.msra.mxu0 0.0
    %1292 = vmatprep.subr.mxu0 0.0
    %1293 = vmatpush1.msra.mxu0 0.0
    %1294 = vmatprep.subr.mxu0 0.0
    %1295 = vmatpush1.msra.mxu0 0.0
    %1296 = vmatprep.subr.mxu0 0.0
    %1297 = vmatpush1.msra.mxu0 0.0
    %1298 = vmatprep.subr.mxu0 0.0
    %1299 = vmatpush1.msra.mxu0 0.0
    %1300 = vmatprep.subr.mxu0 0.0
    %1301 = vmatpush1.msra.mxu0 0.0
    %1302 = vmatprep.subr.mxu0 0.0
    %1303 = vmatpush1.msra.mxu0 0.0
    %1304 = vmatprep.subr.mxu0 0.0
    %1305 = vmatpush1.msra.mxu0 0.0
    %1306 = vmatprep.subr.mxu0 0.0
    %1307 = vmatpush1.msra.mxu0 0.0
    %1308 = vmatprep.subr.mxu0 0.0
    %1309 = vmatpush1.msra.mxu0 0.0
    %1310 = vmatprep.subr.mxu0 0.0
    %1311 = vmatpush1.msra.mxu0 0.0
    %1312 = vmatprep.subr.mxu0 0.0
    %1313 = vmatpush1.msra.mxu0 0.0
    %1314 = vmatprep.mubr.f32.mxu0 0.0
    %1315 = vmatmul.mubr.f32.gmra.mrb[0].mxu0 %v1233
    %v1316 = vpop.f32.mrb[0].mxu0
    %v1317 = vadd.f32 %v1204, %v1316
    %v1318 = vpop.f32.mrb[0].mxu0
    %1319 = vmatprep.mubr.f32.mxu0 0.0
    %1320 = vmatmul.mubr.f32.gmra.mrb[0].mxu0 %v1236
    %v1321 = vpop.f32.mrb[0].mxu0
    %v1322 = vadd.f32 %v1209, %v1321
    %v1323 = vpop.f32.mrb[0].mxu0
    %1324 = vmatprep.mubr.f32.mxu0 0.0
    %1325 = vmatmul.mubr.f32.gmra.mrb[0].mxu0 %v1239
    %v1326 = vpop.f32.mrb[0].mxu0
    %v1327 = vadd.f32 %v1214, %v1326
    %v1328 = vpop.f32.mrb[0].mxu0
    %1329 = vmatprep.mubr.f32.mxu0 0.0
    %1330 = vmatmul.mubr.f32.gmra.mrb[0].mxu0 %v1242
    %v1331 = vpop.f32.mrb[0].mxu0
    %v1332 = vadd.f32 %v1219, %v1331
    %v1333 = vpop.f32.mrb[0].mxu0
    %1334 = vmatprep.mubr.f32.mxu0 0.0
    %1335 = vmatmul.mubr.f32.gmra.mrb[0].mxu0 %v1245
    %v1336 = vpop.f32.mrb[0].mxu0
    %v1337 = vadd.f32 %v1224, %v1336
    %v1338 = vpop.f32.mrb[0].mxu0
    %1339 = vmatprep.mubr.f32.mxu0 0.0
    %1340 = vmatmul.mubr.f32.gmra.mrb[0].mxu0 %v1248
    %v1341 = vpop.f32.mrb[0].mxu0
    %v1342 = vadd.f32 %v1229, %v1341
    %v1343 = vpop.f32.mrb[0].mxu0
    %1344 = vdwg.mxu0
    %1345 = vrot.lane.b32.xlu0 %v412, 112
    %v1346 = vpop.permute.xlu0 %1345
    %1347 = vrot.lane.b32.xlu0 %v417, 112
    %v1348 = vpop.permute.xlu0 %1347
    %1349 = vrot.lane.b32.xlu0 %v422, 112
    %v1350 = vpop.permute.xlu0 %1349
    %1351 = vrot.lane.b32.xlu0 %v427, 112
    %v1352 = vpop.permute.xlu0 %1351
    %1353 = vrot.lane.b32.xlu0 %v432, 112
    %v1354 = vpop.permute.xlu0 %1353
    %1355 = vrot.lane.b32.xlu0 %v437, 112
    %v1356 = vpop.permute.xlu0 %1355
    %1357 = vrot.lane.b32.xlu0 %v412, 80
    %v1358 = vpop.permute.xlu0 %1357
    %1359 = vrot.lane.b32.xlu0 %v417, 80
    %v1360 = vpop.permute.xlu0 %1359
    %1361 = vrot.lane.b32.xlu0 %v422, 80
    %v1362 = vpop.permute.xlu0 %1361
    %1363 = vrot.lane.b32.xlu0 %v427, 80
    %v1364 = vpop.permute.xlu0 %1363
    %1365 = vrot.lane.b32.xlu0 %v432, 80
    %v1366 = vpop.permute.xlu0 %1365
    %1367 = vrot.lane.b32.xlu0 %v437, 80
    %v1368 = vpop.permute.xlu0 %1367
    %v1369 = vsel %vm462, %v1346, 0
    %v1371 = vsel %vm462, %v1348, 0
    %v1373 = vsel %vm462, %v1350, 0
    %v1375 = vsel %vm462, %v1352, 0
    %v1377 = vsel %vm462, %v1354, 0
    %v1379 = vsel %vm462, %v1356, 0
    %v1381 = vsel %vm462, %v1358, 0
    %v1383 = vsel %vm462, %v1360, 0
    %v1385 = vsel %vm462, %v1362, 0
    %v1387 = vsel %vm462, %v1364, 0
    %v1389 = vsel %vm462, %v1366, 0
    %v1391 = vsel %vm462, %v1368, 0
    %1393 = vmatprep.subr.mxu0 0.0
    %1394 = vmatpush1.xpose.msra.mxu0 %v1381
    %1395 = vmatprep.subr.mxu0 0.0
    %1396 = vmatpush1.xpose.msra.mxu0 %v1383
    %1397 = vmatprep.subr.mxu0 0.0
    %1398 = vmatpush1.xpose.msra.mxu0 %v1385
    %1399 = vmatprep.subr.mxu0 0.0
    %1400 = vmatpush1.xpose.msra.mxu0 %v1387
    %1401 = vmatprep.subr.mxu0 0.0
    %1402 = vmatpush1.xpose.msra.mxu0 %v1389
    %1403 = vmatprep.subr.mxu0 0.0
    %1404 = vmatpush1.xpose.msra.mxu0 %v1391
    %1405 = vmatprep.subr.mxu0 0.0
    %1406 = vmatpush1.xpose.msra.mxu0 0.0
    %1407 = vmatprep.subr.mxu0 0.0
    %1408 = vmatpush1.xpose.msra.mxu0 0.0
    %1409 = vmatprep.subr.mxu0 0.0
    %1410 = vmatpush1.xpose.msra.mxu0 0.0
    %1411 = vmatprep.subr.mxu0 0.0
    %1412 = vmatpush1.xpose.msra.mxu0 0.0
    %1413 = vmatprep.subr.mxu0 0.0
    %1414 = vmatpush1.xpose.msra.mxu0 0.0
    %1415 = vmatprep.subr.mxu0 0.0
    %1416 = vmatpush1.xpose.msra.mxu0 0.0
    %1417 = vmatprep.subr.mxu0 0.0
    %1418 = vmatpush1.xpose.msra.mxu0 0.0
    %1419 = vmatprep.subr.mxu0 0.0
    %1420 = vmatpush1.xpose.msra.mxu0 0.0
    %1421 = vmatprep.subr.mxu0 0.0
    %1422 = vmatpush1.xpose.msra.mxu0 0.0
    %1423 = vmatprep.subr.mxu0 0.0
    %1424 = vmatpush1.xpose.msra.mxu0 0.0
    %1425 = vmatprep.subr.mxu0 0.0
    %1426 = vmatpush1.xpose.msra.mxu0 0.0
    %1427 = vmatprep.subr.mxu0 0.0
    %1428 = vmatpush1.xpose.msra.mxu0 0.0
    %1429 = vmatprep.subr.mxu0 0.0
    %1430 = vmatpush1.xpose.msra.mxu0 0.0
    %1431 = vmatprep.subr.mxu0 0.0
    %1432 = vmatpush1.xpose.msra.mxu0 0.0
    %1433 = vmatprep.subr.mxu0 0.0
    %1434 = vmatpush1.xpose.msra.mxu0 0.0
    %1435 = vmatprep.subr.mxu0 0.0
    %1436 = vmatpush1.xpose.msra.mxu0 0.0
    %1437 = vmatprep.subr.mxu0 0.0
    %1438 = vmatpush1.xpose.msra.mxu0 0.0
    %1439 = vmatprep.subr.mxu0 0.0
    %1440 = vmatpush1.xpose.msra.mxu0 0.0
    %1441 = vmatprep.subr.mxu0 0.0
    %1442 = vmatpush1.xpose.msra.mxu0 0.0
    %1443 = vmatprep.subr.mxu0 0.0
    %1444 = vmatpush1.xpose.msra.mxu0 0.0
    %1445 = vmatprep.subr.mxu0 0.0
    %1446 = vmatpush1.xpose.msra.mxu0 0.0
    %1447 = vmatprep.subr.mxu0 0.0
    %1448 = vmatpush1.xpose.msra.mxu0 0.0
    %1449 = vmatprep.subr.mxu0 0.0
    %1450 = vmatpush1.xpose.msra.mxu0 0.0
    %1451 = vmatprep.subr.mxu0 0.0
    %1452 = vmatpush1.xpose.msra.mxu0 0.0
    %1453 = vmatprep.subr.mxu0 0.0
    %1454 = vmatpush1.xpose.msra.mxu0 0.0
    %1455 = vmatprep.subr.mxu0 0.0
    %1456 = vmatpush1.xpose.msra.mxu0 0.0
    %1457 = vmatprep.mubr.f32.mxu0 0.0
    %1458 = vmatmul.mubr.f32.gmra.mrb[0].mxu0 %v1369
    %v1459 = vpop.f32.mrb[0].mxu0
    %v1460 = vadd.f32 %v204, %v1459
    %v1461 = vpop.f32.mrb[0].mxu0
    %1462 = vmatprep.mubr.f32.mxu0 0.0
    %1463 = vmatmul.mubr.f32.gmra.mrb[0].mxu0 %v1371
    %v1464 = vpop.f32.mrb[0].mxu0
    %v1465 = vadd.f32 %v205, %v1464
    %v1466 = vpop.f32.mrb[0].mxu0
    %1467 = vmatprep.mubr.f32.mxu0 0.0
    %1468 = vmatmul.mubr.f32.gmra.mrb[0].mxu0 %v1373
    %v1469 = vpop.f32.mrb[0].mxu0
    %v1470 = vadd.f32 %v206, %v1469
    %v1471 = vpop.f32.mrb[0].mxu0
    %1472 = vmatprep.mubr.f32.mxu0 0.0
    %1473 = vmatmul.mubr.f32.gmra.mrb[0].mxu0 %v1375
    %v1474 = vpop.f32.mrb[0].mxu0
    %v1475 = vadd.f32 %v207, %v1474
    %v1476 = vpop.f32.mrb[0].mxu0
    %1477 = vmatprep.mubr.f32.mxu0 0.0
    %1478 = vmatmul.mubr.f32.gmra.mrb[0].mxu0 %v1377
    %v1479 = vpop.f32.mrb[0].mxu0
    %v1480 = vadd.f32 %v208, %v1479
    %v1481 = vpop.f32.mrb[0].mxu0
    %1482 = vmatprep.mubr.f32.mxu0 0.0
    %1483 = vmatmul.mubr.f32.gmra.mrb[0].mxu0 %v1379
    %v1484 = vpop.f32.mrb[0].mxu0
    %v1485 = vadd.f32 %v209, %v1484
    %v1486 = vpop.f32.mrb[0].mxu0
    %1487 = vdwg.mxu0
    %v1488 = vsel %vm84, %v1460, -inf
    %1489 = vmax.xlane.f32.xlu0 %v1488
    %v1490 = vpop.xlane.xlu0 %1489
    %v1491 = vsel %vm84, %v1465, -inf
    %1492 = vmax.xlane.f32.xlu0 %v1491
    %v1493 = vpop.xlane.xlu0 %1492
    %v1494 = vsel %vm84, %v1470, -inf
    %1495 = vmax.xlane.f32.xlu0 %v1494
    %v1496 = vpop.xlane.xlu0 %1495
    %v1497 = vsel %vm84, %v1475, -inf
    %1498 = vmax.xlane.f32.xlu0 %v1497
    %v1499 = vpop.xlane.xlu0 %1498
    %v1500 = vsel %vm84, %v1480, -inf
    %1501 = vmax.xlane.f32.xlu0 %v1500
    %v1502 = vpop.xlane.xlu0 %1501
    %v1503 = vsel %vm84, %v1485, -inf
    %1504 = vmax.xlane.f32.xlu0 %v1503
    %v1505 = vpop.xlane.xlu0 %1504
    %v1506 = vsub.f32 %v1460, %v1490
    %v1507 = vsub.f32 %v1465, %v1493
    %v1508 = vsub.f32 %v1470, %v1496
    %v1509 = vsub.f32 %v1475, %v1499
    %v1510 = vsub.f32 %v1480, %v1502
    %v1511 = vsub.f32 %v1485, %v1505
    %v1512 = vmul.f32 %v1506, 1.442695
    %v1513 = vpow.pop %v1512
    %v1514 = vmul.f32 %v1507, 1.442695
    %v1515 = vpow.pop %v1514
    %v1516 = vmul.f32 %v1508, 1.442695
    %v1517 = vpow.pop %v1516
    %v1518 = vmul.f32 %v1509, 1.442695
    %v1519 = vpow.pop %v1518
    %v1520 = vmul.f32 %v1510, 1.442695
    %v1521 = vpow.pop %v1520
    %v1522 = vmul.f32 %v1511, 1.442695
    %v1523 = vpow.pop %v1522
    %v1524 = vsel %vm84, %v1513, 0.0
    %1525 = vadd.xlane.f32.xlu0 %v1524
    %v1526 = vpop.xlane.xlu0 %1525
    %v1527 = vsel %vm84, %v1515, 0.0
    %1528 = vadd.xlane.f32.xlu0 %v1527
    %v1529 = vpop.xlane.xlu0 %1528
    %v1530 = vsel %vm84, %v1517, 0.0
    %1531 = vadd.xlane.f32.xlu0 %v1530
    %v1532 = vpop.xlane.xlu0 %1531
    %v1533 = vsel %vm84, %v1519, 0.0
    %1534 = vadd.xlane.f32.xlu0 %v1533
    %v1535 = vpop.xlane.xlu0 %1534
    %v1536 = vsel %vm84, %v1521, 0.0
    %1537 = vadd.xlane.f32.xlu0 %v1536
    %v1538 = vpop.xlane.xlu0 %1537
    %v1539 = vsel %vm84, %v1523, 0.0
    %1540 = vadd.xlane.f32.xlu0 %v1539
    %v1541 = vpop.xlane.xlu0 %1540
    %v1542 = vrcp.pop %v1526
    %v1543 = vrcp.pop %v1529
    %v1544 = vrcp.pop %v1532
    %v1545 = vrcp.pop %v1535
    %v1546 = vrcp.pop %v1538
    %v1547 = vrcp.pop %v1541
    %v1548 = vmul.f32 %v1513, %v1542
    %v1549 = vmul.f32 %v1515, %v1543
    %v1550 = vmul.f32 %v1517, %v1544
    %v1551 = vmul.f32 %v1519, %v1545
    %v1552 = vmul.f32 %v1521, %v1546
    %v1553 = vmul.f32 %v1523, %v1547
    %1554 = vrot.lane.b32.xlu0 %v412, 48
    %v1555 = vpop.permute.xlu0 %1554
    %1556 = vrot.lane.b32.xlu0 %v417, 48
    %v1557 = vpop.permute.xlu0 %1556
    %1558 = vrot.lane.b32.xlu0 %v422, 48
    %v1559 = vpop.permute.xlu0 %1558
    %1560 = vrot.lane.b32.xlu0 %v427, 48
    %v1561 = vpop.permute.xlu0 %1560
    %1562 = vrot.lane.b32.xlu0 %v432, 48
    %v1563 = vpop.permute.xlu0 %1562
    %1564 = vrot.lane.b32.xlu0 %v437, 48
    %v1565 = vpop.permute.xlu0 %1564
    %v1573 = vsel %vm84, %v1548, 0
    %v1576 = vsel %vm84, %v1549, 0
    %v1579 = vsel %vm84, %v1550, 0
    %v1582 = vsel %vm84, %v1551, 0
    %v1585 = vsel %vm84, %v1552, 0
    %v1588 = vsel %vm84, %v1553, 0
    %1590 = vmatprep.subr.mxu0 0.0
    %1591 = vmatpush1.msra.mxu0 %v1555
    %1592 = vmatprep.subr.mxu0 0.0
    %1593 = vmatpush1.msra.mxu0 %v1557
    %1594 = vmatprep.subr.mxu0 0.0
    %1595 = vmatpush1.msra.mxu0 %v1559
    %1596 = vmatprep.subr.mxu0 0.0
    %1597 = vmatpush1.msra.mxu0 %v1561
    %1598 = vmatprep.subr.mxu0 0.0
    %1599 = vmatpush1.msra.mxu0 %v1563
    %1600 = vmatprep.subr.mxu0 0.0
    %1601 = vmatpush1.msra.mxu0 %v1565
    %1602 = vmatprep.subr.mxu0 0.0
    %1603 = vmatpush1.msra.mxu0 0.0
    %1604 = vmatprep.subr.mxu0 0.0
    %1605 = vmatpush1.msra.mxu0 0.0
    %1606 = vmatprep.subr.mxu0 0.0
    %1607 = vmatpush1.msra.mxu0 0.0
    %1608 = vmatprep.subr.mxu0 0.0
    %1609 = vmatpush1.msra.mxu0 0.0
    %1610 = vmatprep.subr.mxu0 0.0
    %1611 = vmatpush1.msra.mxu0 0.0
    %1612 = vmatprep.subr.mxu0 0.0
    %1613 = vmatpush1.msra.mxu0 0.0
    %1614 = vmatprep.subr.mxu0 0.0
    %1615 = vmatpush1.msra.mxu0 0.0
    %1616 = vmatprep.subr.mxu0 0.0
    %1617 = vmatpush1.msra.mxu0 0.0
    %1618 = vmatprep.subr.mxu0 0.0
    %1619 = vmatpush1.msra.mxu0 0.0
    %1620 = vmatprep.subr.mxu0 0.0
    %1621 = vmatpush1.msra.mxu0 0.0
    %1622 = vmatprep.subr.mxu0 0.0
    %1623 = vmatpush1.msra.mxu0 0.0
    %1624 = vmatprep.subr.mxu0 0.0
    %1625 = vmatpush1.msra.mxu0 0.0
    %1626 = vmatprep.subr.mxu0 0.0
    %1627 = vmatpush1.msra.mxu0 0.0
    %1628 = vmatprep.subr.mxu0 0.0
    %1629 = vmatpush1.msra.mxu0 0.0
    %1630 = vmatprep.subr.mxu0 0.0
    %1631 = vmatpush1.msra.mxu0 0.0
    %1632 = vmatprep.subr.mxu0 0.0
    %1633 = vmatpush1.msra.mxu0 0.0
    %1634 = vmatprep.subr.mxu0 0.0
    %1635 = vmatpush1.msra.mxu0 0.0
    %1636 = vmatprep.subr.mxu0 0.0
    %1637 = vmatpush1.msra.mxu0 0.0
    %1638 = vmatprep.subr.mxu0 0.0
    %1639 = vmatpush1.msra.mxu0 0.0
    %1640 = vmatprep.subr.mxu0 0.0
    %1641 = vmatpush1.msra.mxu0 0.0
    %1642 = vmatprep.subr.mxu0 0.0
    %1643 = vmatpush1.msra.mxu0 0.0
    %1644 = vmatprep.subr.mxu0 0.0
    %1645 = vmatpush1.msra.mxu0 0.0
    %1646 = vmatprep.subr.mxu0 0.0
    %1647 = vmatpush1.msra.mxu0 0.0
    %1648 = vmatprep.subr.mxu0 0.0
    %1649 = vmatpush1.msra.mxu0 0.0
    %1650 = vmatprep.subr.mxu0 0.0
    %1651 = vmatpush1.msra.mxu0 0.0
    %1652 = vmatprep.subr.mxu0 0.0
    %1653 = vmatpush1.msra.mxu0 0.0
    %1654 = vmatprep.mubr.f32.mxu0 0.0
    %1655 = vmatmul.mubr.f32.gmra.mrb[0].mxu0 %v1573
    %v1656 = vpop.f32.mrb[0].mxu0
    %v1657 = vadd.f32 0.0, %v1656
    %v1658 = vpop.f32.mrb[0].mxu0
    %1659 = vmatprep.mubr.f32.mxu0 0.0
    %1660 = vmatmul.mubr.f32.gmra.mrb[0].mxu0 %v1576
    %v1661 = vpop.f32.mrb[0].mxu0
    %v1662 = vadd.f32 0.0, %v1661
    %v1663 = vpop.f32.mrb[0].mxu0
    %1664 = vmatprep.mubr.f32.mxu0 0.0
    %1665 = vmatmul.mubr.f32.gmra.mrb[0].mxu0 %v1579
    %v1666 = vpop.f32.mrb[0].mxu0
    %v1667 = vadd.f32 0.0, %v1666
    %v1668 = vpop.f32.mrb[0].mxu0
    %1669 = vmatprep.mubr.f32.mxu0 0.0
    %1670 = vmatmul.mubr.f32.gmra.mrb[0].mxu0 %v1582
    %v1671 = vpop.f32.mrb[0].mxu0
    %v1672 = vadd.f32 0.0, %v1671
    %v1673 = vpop.f32.mrb[0].mxu0
    %1674 = vmatprep.mubr.f32.mxu0 0.0
    %1675 = vmatmul.mubr.f32.gmra.mrb[0].mxu0 %v1585
    %v1676 = vpop.f32.mrb[0].mxu0
    %v1677 = vadd.f32 0.0, %v1676
    %v1678 = vpop.f32.mrb[0].mxu0
    %1679 = vmatprep.mubr.f32.mxu0 0.0
    %1680 = vmatmul.mubr.f32.gmra.mrb[0].mxu0 %v1588
    %v1681 = vpop.f32.mrb[0].mxu0
    %v1682 = vadd.f32 0.0, %v1681
    %v1683 = vpop.f32.mrb[0].mxu0
    %1684 = vdwg.mxu0
    %v1686 = vsel %vm462, %v1657, 0
    %v1689 = vsel %vm462, %v1662, 0
    %v1692 = vsel %vm462, %v1667, 0
    %v1695 = vsel %vm462, %v1672, 0
    %v1698 = vsel %vm462, %v1677, 0
    %v1701 = vsel %vm462, %v1682, 0
    %1703 = vmatprep.subr.mxu0 0.0
    %1704 = vmatpush1.msra.mxu0 %v442
    %1705 = vmatprep.subr.mxu0 0.0
    %1706 = vmatpush1.msra.mxu0 0.0
    %1707 = vmatprep.subr.mxu0 0.0
    %1708 = vmatpush1.msra.mxu0 0.0
    %1709 = vmatprep.subr.mxu0 0.0
    %1710 = vmatpush1.msra.mxu0 0.0
    %1711 = vmatprep.subr.mxu0 0.0
    %1712 = vmatpush1.msra.mxu0 0.0
    %1713 = vmatprep.subr.mxu0 0.0
    %1714 = vmatpush1.msra.mxu0 0.0
    %1715 = vmatprep.subr.mxu0 0.0
    %1716 = vmatpush1.msra.mxu0 0.0
    %1717 = vmatprep.subr.mxu0 0.0
    %1718 = vmatpush1.msra.mxu0 0.0
    %1719 = vmatprep.subr.mxu0 0.0
    %1720 = vmatpush1.msra.mxu0 0.0
    %1721 = vmatprep.subr.mxu0 0.0
    %1722 = vmatpush1.msra.mxu0 0.0
    %1723 = vmatprep.subr.mxu0 0.0
    %1724 = vmatpush1.msra.mxu0 0.0
    %1725 = vmatprep.subr.mxu0 0.0
    %1726 = vmatpush1.msra.mxu0 0.0
    %1727 = vmatprep.subr.mxu0 0.0
    %1728 = vmatpush1.msra.mxu0 0.0
    %1729 = vmatprep.subr.mxu0 0.0
    %1730 = vmatpush1.msra.mxu0 0.0
    %1731 = vmatprep.subr.mxu0 0.0
    %1732 = vmatpush1.msra.mxu0 0.0
    %1733 = vmatprep.subr.mxu0 0.0
    %1734 = vmatpush1.msra.mxu0 0.0
    %1735 = vmatprep.subr.mxu0 0.0
    %1736 = vmatpush1.msra.mxu0 0.0
    %1737 = vmatprep.subr.mxu0 0.0
    %1738 = vmatpush1.msra.mxu0 0.0
    %1739 = vmatprep.subr.mxu0 0.0
    %1740 = vmatpush1.msra.mxu0 0.0
    %1741 = vmatprep.subr.mxu0 0.0
    %1742 = vmatpush1.msra.mxu0 0.0
    %1743 = vmatprep.subr.mxu0 0.0
    %1744 = vmatpush1.msra.mxu0 0.0
    %1745 = vmatprep.subr.mxu0 0.0
    %1746 = vmatpush1.msra.mxu0 0.0
    %1747 = vmatprep.subr.mxu0 0.0
    %1748 = vmatpush1.msra.mxu0 0.0
    %1749 = vmatprep.subr.mxu0 0.0
    %1750 = vmatpush1.msra.mxu0 0.0
    %1751 = vmatprep.subr.mxu0 0.0
    %1752 = vmatpush1.msra.mxu0 0.0
    %1753 = vmatprep.subr.mxu0 0.0
    %1754 = vmatpush1.msra.mxu0 0.0
    %1755 = vmatprep.subr.mxu0 0.0
    %1756 = vmatpush1.msra.mxu0 0.0
    %1757 = vmatprep.subr.mxu0 0.0
    %1758 = vmatpush1.msra.mxu0 0.0
    %1759 = vmatprep.subr.mxu0 0.0
    %1760 = vmatpush1.msra.mxu0 0.0
    %1761 = vmatprep.subr.mxu0 0.0
    %1762 = vmatpush1.msra.mxu0 0.0
    %1763 = vmatprep.subr.mxu0 0.0
    %1764 = vmatpush1.msra.mxu0 0.0
    %1765 = vmatprep.subr.mxu0 0.0
    %1766 = vmatpush1.msra.mxu0 0.0
    %1767 = vmatprep.mubr.f32.mxu0 0.0
    %1768 = vmatmul.mubr.f32.gmra.mrb[0].mxu0 %v1686
    %v1769 = vpop.f32.mrb[0].mxu0
    %v1770 = vadd.f32 0.0, %v1769
    %v1771 = vpop.f32.mrb[0].mxu0
    %1772 = vmatprep.mubr.f32.mxu0 0.0
    %1773 = vmatmul.mubr.f32.gmra.mrb[0].mxu0 %v1689
    %v1774 = vpop.f32.mrb[0].mxu0
    %v1775 = vadd.f32 0.0, %v1774
    %v1776 = vpop.f32.mrb[0].mxu0
    %1777 = vmatprep.mubr.f32.mxu0 0.0
    %1778 = vmatmul.mubr.f32.gmra.mrb[0].mxu0 %v1692
    %v1779 = vpop.f32.mrb[0].mxu0
    %v1780 = vadd.f32 0.0, %v1779
    %v1781 = vpop.f32.mrb[0].mxu0
    %1782 = vmatprep.mubr.f32.mxu0 0.0
    %1783 = vmatmul.mubr.f32.gmra.mrb[0].mxu0 %v1695
    %v1784 = vpop.f32.mrb[0].mxu0
    %v1785 = vadd.f32 0.0, %v1784
    %v1786 = vpop.f32.mrb[0].mxu0
    %1787 = vmatprep.mubr.f32.mxu0 0.0
    %1788 = vmatmul.mubr.f32.gmra.mrb[0].mxu0 %v1698
    %v1789 = vpop.f32.mrb[0].mxu0
    %v1790 = vadd.f32 0.0, %v1789
    %v1791 = vpop.f32.mrb[0].mxu0
    %1792 = vmatprep.mubr.f32.mxu0 0.0
    %1793 = vmatmul.mubr.f32.gmra.mrb[0].mxu0 %v1701
    %v1794 = vpop.f32.mrb[0].mxu0
    %v1795 = vadd.f32 0.0, %v1794
    %v1796 = vpop.f32.mrb[0].mxu0
    %1797 = vdwg.mxu0
    %v1798 = vadd.f32 %v1317, %v1770
    %v1799 = vadd.f32 %v1322, %v1775
    %v1800 = vadd.f32 %v1327, %v1780
    %v1801 = vadd.f32 %v1332, %v1785
    %v1802 = vadd.f32 %v1337, %v1790
    %v1803 = vadd.f32 %v1342, %v1795
    %1804 = vrot.lane.b32.xlu0 %v412, 104
    %v1805 = vpop.permute.xlu0 %1804
    %1806 = vrot.lane.b32.xlu0 %v417, 104
    %v1807 = vpop.permute.xlu0 %1806
    %1808 = vrot.lane.b32.xlu0 %v422, 104
    %v1809 = vpop.permute.xlu0 %1808
    %1810 = vrot.lane.b32.xlu0 %v427, 104
    %v1811 = vpop.permute.xlu0 %1810
    %1812 = vrot.lane.b32.xlu0 %v432, 104
    %v1813 = vpop.permute.xlu0 %1812
    %1814 = vrot.lane.b32.xlu0 %v437, 104
    %v1815 = vpop.permute.xlu0 %1814
    %1816 = vrot.lane.b32.xlu0 %v412, 72
    %v1817 = vpop.permute.xlu0 %1816
    %1818 = vrot.lane.b32.xlu0 %v417, 72
    %v1819 = vpop.permute.xlu0 %1818
    %1820 = vrot.lane.b32.xlu0 %v422, 72
    %v1821 = vpop.permute.xlu0 %1820
    %1822 = vrot.lane.b32.xlu0 %v427, 72
    %v1823 = vpop.permute.xlu0 %1822
    %1824 = vrot.lane.b32.xlu0 %v432, 72
    %v1825 = vpop.permute.xlu0 %1824
    %1826 = vrot.lane.b32.xlu0 %v437, 72
    %v1827 = vpop.permute.xlu0 %1826
    %v1828 = vsel %vm462, %v1805, 0
    %v1830 = vsel %vm462, %v1807, 0
    %v1832 = vsel %vm462, %v1809, 0
    %v1834 = vsel %vm462, %v1811, 0
    %v1836 = vsel %vm462, %v1813, 0
    %v1838 = vsel %vm462, %v1815, 0
    %v1840 = vsel %vm462, %v1817, 0
    %v1842 = vsel %vm462, %v1819, 0
    %v1844 = vsel %vm462, %v1821, 0
    %v1846 = vsel %vm462, %v1823, 0
    %v1848 = vsel %vm462, %v1825, 0
    %v1850 = vsel %vm462, %v1827, 0
    %1852 = vmatprep.subr.mxu0 0.0
    %1853 = vmatpush1.xpose.msra.mxu0 %v1840
    %1854 = vmatprep.subr.mxu0 0.0
    %1855 = vmatpush1.xpose.msra.mxu0 %v1842
    %1856 = vmatprep.subr.mxu0 0.0
    %1857 = vmatpush1.xpose.msra.mxu0 %v1844
    %1858 = vmatprep.subr.mxu0 0.0
    %1859 = vmatpush1.xpose.msra.mxu0 %v1846
    %1860 = vmatprep.subr.mxu0 0.0
    %1861 = vmatpush1.xpose.msra.mxu0 %v1848
    %1862 = vmatprep.subr.mxu0 0.0
    %1863 = vmatpush1.xpose.msra.mxu0 %v1850
    %1864 = vmatprep.subr.mxu0 0.0
    %1865 = vmatpush1.xpose.msra.mxu0 0.0
    %1866 = vmatprep.subr.mxu0 0.0
    %1867 = vmatpush1.xpose.msra.mxu0 0.0
    %1868 = vmatprep.subr.mxu0 0.0
    %1869 = vmatpush1.xpose.msra.mxu0 0.0
    %1870 = vmatprep.subr.mxu0 0.0
    %1871 = vmatpush1.xpose.msra.mxu0 0.0
    %1872 = vmatprep.subr.mxu0 0.0
    %1873 = vmatpush1.xpose.msra.mxu0 0.0
    %1874 = vmatprep.subr.mxu0 0.0
    %1875 = vmatpush1.xpose.msra.mxu0 0.0
    %1876 = vmatprep.subr.mxu0 0.0
    %1877 = vmatpush1.xpose.msra.mxu0 0.0
    %1878 = vmatprep.subr.mxu0 0.0
    %1879 = vmatpush1.xpose.msra.mxu0 0.0
    %1880 = vmatprep.subr.mxu0 0.0
    %1881 = vmatpush1.xpose.msra.mxu0 0.0
    %1882 = vmatprep.subr.mxu0 0.0
    %1883 = vmatpush1.xpose.msra.mxu0 0.0
    %1884 = vmatprep.subr.mxu0 0.0
    %1885 = vmatpush1.xpose.msra.mxu0 0.0
    %1886 = vmatprep.subr.mxu0 0.0
    %1887 = vmatpush1.xpose.msra.mxu0 0.0
    %1888 = vmatprep.subr.mxu0 0.0
    %1889 = vmatpush1.xpose.msra.mxu0 0.0
    %1890 = vmatprep.subr.mxu0 0.0
    %1891 = vmatpush1.xpose.msra.mxu0 0.0
    %1892 = vmatprep.subr.mxu0 0.0
    %1893 = vmatpush1.xpose.msra.mxu0 0.0
    %1894 = vmatprep.subr.mxu0 0.0
    %1895 = vmatpush1.xpose.msra.mxu0 0.0
    %1896 = vmatprep.subr.mxu0 0.0
    %1897 = vmatpush1.xpose.msra.mxu0 0.0
    %1898 = vmatprep.subr.mxu0 0.0
    %1899 = vmatpush1.xpose.msra.mxu0 0.0
    %1900 = vmatprep.subr.mxu0 0.0
    %1901 = vmatpush1.xpose.msra.mxu0 0.0
    %1902 = vmatprep.subr.mxu0 0.0
    %1903 = vmatpush1.xpose.msra.mxu0 0.0
    %1904 = vmatprep.subr.mxu0 0.0
    %1905 = vmatpush1.xpose.msra.mxu0 0.0
    %1906 = vmatprep.subr.mxu0 0.0
    %1907 = vmatpush1.xpose.msra.mxu0 0.0
    %1908 = vmatprep.subr.mxu0 0.0
    %1909 = vmatpush1.xpose.msra.mxu0 0.0
    %1910 = vmatprep.subr.mxu0 0.0
    %1911 = vmatpush1.xpose.msra.mxu0 0.0
    %1912 = vmatprep.subr.mxu0 0.0
    %1913 = vmatpush1.xpose.msra.mxu0 0.0
    %1914 = vmatprep.subr.mxu0 0.0
    %1915 = vmatpush1.xpose.msra.mxu0 0.0
    %1916 = vmatprep.mubr.f32.mxu0 0.0
    %1917 = vmatmul.mubr.f32.gmra.mrb[0].mxu0 %v1828
    %v1918 = vpop.f32.mrb[0].mxu0
    %v1919 = vadd.f32 %v204, %v1918
    %v1920 = vpop.f32.mrb[0].mxu0
    %1921 = vmatprep.mubr.f32.mxu0 0.0
    %1922 = vmatmul.mubr.f32.gmra.mrb[0].mxu0 %v1830
    %v1923 = vpop.f32.mrb[0].mxu0
    %v1924 = vadd.f32 %v205, %v1923
    %v1925 = vpop.f32.mrb[0].mxu0
    %1926 = vmatprep.mubr.f32.mxu0 0.0
    %1927 = vmatmul.mubr.f32.gmra.mrb[0].mxu0 %v1832
    %v1928 = vpop.f32.mrb[0].mxu0
    %v1929 = vadd.f32 %v206, %v1928
    %v1930 = vpop.f32.mrb[0].mxu0
    %1931 = vmatprep.mubr.f32.mxu0 0.0
    %1932 = vmatmul.mubr.f32.gmra.mrb[0].mxu0 %v1834
    %v1933 = vpop.f32.mrb[0].mxu0
    %v1934 = vadd.f32 %v207, %v1933
    %v1935 = vpop.f32.mrb[0].mxu0
    %1936 = vmatprep.mubr.f32.mxu0 0.0
    %1937 = vmatmul.mubr.f32.gmra.mrb[0].mxu0 %v1836
    %v1938 = vpop.f32.mrb[0].mxu0
    %v1939 = vadd.f32 %v208, %v1938
    %v1940 = vpop.f32.mrb[0].mxu0
    %1941 = vmatprep.mubr.f32.mxu0 0.0
    %1942 = vmatmul.mubr.f32.gmra.mrb[0].mxu0 %v1838
    %v1943 = vpop.f32.mrb[0].mxu0
    %v1944 = vadd.f32 %v209, %v1943
    %v1945 = vpop.f32.mrb[0].mxu0
    %1946 = vdwg.mxu0
    %v1947 = vsel %vm84, %v1919, -inf
    %1948 = vmax.xlane.f32.xlu0 %v1947
    %v1949 = vpop.xlane.xlu0 %1948
    %v1950 = vsel %vm84, %v1924, -inf
    %1951 = vmax.xlane.f32.xlu0 %v1950
    %v1952 = vpop.xlane.xlu0 %1951
    %v1953 = vsel %vm84, %v1929, -inf
    %1954 = vmax.xlane.f32.xlu0 %v1953
    %v1955 = vpop.xlane.xlu0 %1954
    %v1956 = vsel %vm84, %v1934, -inf
    %1957 = vmax.xlane.f32.xlu0 %v1956
    %v1958 = vpop.xlane.xlu0 %1957
    %v1959 = vsel %vm84, %v1939, -inf
    %1960 = vmax.xlane.f32.xlu0 %v1959
    %v1961 = vpop.xlane.xlu0 %1960
    %v1962 = vsel %vm84, %v1944, -inf
    %1963 = vmax.xlane.f32.xlu0 %v1962
    %v1964 = vpop.xlane.xlu0 %1963
    %v1965 = vsub.f32 %v1919, %v1949
    %v1966 = vsub.f32 %v1924, %v1952
    %v1967 = vsub.f32 %v1929, %v1955
    %v1968 = vsub.f32 %v1934, %v1958
    %v1969 = vsub.f32 %v1939, %v1961
    %v1970 = vsub.f32 %v1944, %v1964
    %v1971 = vmul.f32 %v1965, 1.442695
    %v1972 = vpow.pop %v1971
    %v1973 = vmul.f32 %v1966, 1.442695
    %v1974 = vpow.pop %v1973
    %v1975 = vmul.f32 %v1967, 1.442695
    %v1976 = vpow.pop %v1975
    %v1977 = vmul.f32 %v1968, 1.442695
    %v1978 = vpow.pop %v1977
    %v1979 = vmul.f32 %v1969, 1.442695
    %v1980 = vpow.pop %v1979
    %v1981 = vmul.f32 %v1970, 1.442695
    %v1982 = vpow.pop %v1981
    %v1983 = vsel %vm84, %v1972, 0.0
    %1984 = vadd.xlane.f32.xlu0 %v1983
    %v1985 = vpop.xlane.xlu0 %1984
    %v1986 = vsel %vm84, %v1974, 0.0
    %1987 = vadd.xlane.f32.xlu0 %v1986
    %v1988 = vpop.xlane.xlu0 %1987
    %v1989 = vsel %vm84, %v1976, 0.0
    %1990 = vadd.xlane.f32.xlu0 %v1989
    %v1991 = vpop.xlane.xlu0 %1990
    %v1992 = vsel %vm84, %v1978, 0.0
    %1993 = vadd.xlane.f32.xlu0 %v1992
    %v1994 = vpop.xlane.xlu0 %1993
    %v1995 = vsel %vm84, %v1980, 0.0
    %1996 = vadd.xlane.f32.xlu0 %v1995
    %v1997 = vpop.xlane.xlu0 %1996
    %v1998 = vsel %vm84, %v1982, 0.0
    %1999 = vadd.xlane.f32.xlu0 %v1998
    %v2000 = vpop.xlane.xlu0 %1999
    %v2001 = vrcp.pop %v1985
    %v2002 = vrcp.pop %v1988
    %v2003 = vrcp.pop %v1991
    %v2004 = vrcp.pop %v1994
    %v2005 = vrcp.pop %v1997
    %v2006 = vrcp.pop %v2000
    %v2007 = vmul.f32 %v1972, %v2001
    %v2008 = vmul.f32 %v1974, %v2002
    %v2009 = vmul.f32 %v1976, %v2003
    %v2010 = vmul.f32 %v1978, %v2004
    %v2011 = vmul.f32 %v1980, %v2005
    %v2012 = vmul.f32 %v1982, %v2006
    %2013 = vrot.lane.b32.xlu0 %v412, 40
    %v2014 = vpop.permute.xlu0 %2013
    %2015 = vrot.lane.b32.xlu0 %v417, 40
    %v2016 = vpop.permute.xlu0 %2015
    %2017 = vrot.lane.b32.xlu0 %v422, 40
    %v2018 = vpop.permute.xlu0 %2017
    %2019 = vrot.lane.b32.xlu0 %v427, 40
    %v2020 = vpop.permute.xlu0 %2019
    %2021 = vrot.lane.b32.xlu0 %v432, 40
    %v2022 = vpop.permute.xlu0 %2021
    %2023 = vrot.lane.b32.xlu0 %v437, 40
    %v2024 = vpop.permute.xlu0 %2023
    %v2032 = vsel %vm84, %v2007, 0
    %v2035 = vsel %vm84, %v2008, 0
    %v2038 = vsel %vm84, %v2009, 0
    %v2041 = vsel %vm84, %v2010, 0
    %v2044 = vsel %vm84, %v2011, 0
    %v2047 = vsel %vm84, %v2012, 0
    %2049 = vmatprep.subr.mxu0 0.0
    %2050 = vmatpush1.msra.mxu0 %v2014
    %2051 = vmatprep.subr.mxu0 0.0
    %2052 = vmatpush1.msra.mxu0 %v2016
    %2053 = vmatprep.subr.mxu0 0.0
    %2054 = vmatpush1.msra.mxu0 %v2018
    %2055 = vmatprep.subr.mxu0 0.0
    %2056 = vmatpush1.msra.mxu0 %v2020
    %2057 = vmatprep.subr.mxu0 0.0
    %2058 = vmatpush1.msra.mxu0 %v2022
    %2059 = vmatprep.subr.mxu0 0.0
    %2060 = vmatpush1.msra.mxu0 %v2024
    %2061 = vmatprep.subr.mxu0 0.0
    %2062 = vmatpush1.msra.mxu0 0.0
    %2063 = vmatprep.subr.mxu0 0.0
    %2064 = vmatpush1.msra.mxu0 0.0
    %2065 = vmatprep.subr.mxu0 0.0
    %2066 = vmatpush1.msra.mxu0 0.0
    %2067 = vmatprep.subr.mxu0 0.0
    %2068 = vmatpush1.msra.mxu0 0.0
    %2069 = vmatprep.subr.mxu0 0.0
    %2070 = vmatpush1.msra.mxu0 0.0
    %2071 = vmatprep.subr.mxu0 0.0
    %2072 = vmatpush1.msra.mxu0 0.0
    %2073 = vmatprep.subr.mxu0 0.0
    %2074 = vmatpush1.msra.mxu0 0.0
    %2075 = vmatprep.subr.mxu0 0.0
    %2076 = vmatpush1.msra.mxu0 0.0
    %2077 = vmatprep.subr.mxu0 0.0
    %2078 = vmatpush1.msra.mxu0 0.0
    %2079 = vmatprep.subr.mxu0 0.0
    %2080 = vmatpush1.msra.mxu0 0.0
    %2081 = vmatprep.subr.mxu0 0.0
    %2082 = vmatpush1.msra.mxu0 0.0
    %2083 = vmatprep.subr.mxu0 0.0
    %2084 = vmatpush1.msra.mxu0 0.0
    %2085 = vmatprep.subr.mxu0 0.0
    %2086 = vmatpush1.msra.mxu0 0.0
    %2087 = vmatprep.subr.mxu0 0.0
    %2088 = vmatpush1.msra.mxu0 0.0
    %2089 = vmatprep.subr.mxu0 0.0
    %2090 = vmatpush1.msra.mxu0 0.0
    %2091 = vmatprep.subr.mxu0 0.0
    %2092 = vmatpush1.msra.mxu0 0.0
    %2093 = vmatprep.subr.mxu0 0.0
    %2094 = vmatpush1.msra.mxu0 0.0
    %2095 = vmatprep.subr.mxu0 0.0
    %2096 = vmatpush1.msra.mxu0 0.0
    %2097 = vmatprep.subr.mxu0 0.0
    %2098 = vmatpush1.msra.mxu0 0.0
    %2099 = vmatprep.subr.mxu0 0.0
    %2100 = vmatpush1.msra.mxu0 0.0
    %2101 = vmatprep.subr.mxu0 0.0
    %2102 = vmatpush1.msra.mxu0 0.0
    %2103 = vmatprep.subr.mxu0 0.0
    %2104 = vmatpush1.msra.mxu0 0.0
    %2105 = vmatprep.subr.mxu0 0.0
    %2106 = vmatpush1.msra.mxu0 0.0
    %2107 = vmatprep.subr.mxu0 0.0
    %2108 = vmatpush1.msra.mxu0 0.0
    %2109 = vmatprep.subr.mxu0 0.0
    %2110 = vmatpush1.msra.mxu0 0.0
    %2111 = vmatprep.subr.mxu0 0.0
    %2112 = vmatpush1.msra.mxu0 0.0
    %2113 = vmatprep.mubr.f32.mxu0 0.0
    %2114 = vmatmul.mubr.f32.gmra.mrb[0].mxu0 %v2032
    %v2115 = vpop.f32.mrb[0].mxu0
    %v2116 = vadd.f32 0.0, %v2115
    %v2117 = vpop.f32.mrb[0].mxu0
    %2118 = vmatprep.mubr.f32.mxu0 0.0
    %2119 = vmatmul.mubr.f32.gmra.mrb[0].mxu0 %v2035
    %v2120 = vpop.f32.mrb[0].mxu0
    %v2121 = vadd.f32 0.0, %v2120
    %v2122 = vpop.f32.mrb[0].mxu0
    %2123 = vmatprep.mubr.f32.mxu0 0.0
    %2124 = vmatmul.mubr.f32.gmra.mrb[0].mxu0 %v2038
    %v2125 = vpop.f32.mrb[0].mxu0
    %v2126 = vadd.f32 0.0, %v2125
    %v2127 = vpop.f32.mrb[0].mxu0
    %2128 = vmatprep.mubr.f32.mxu0 0.0
    %2129 = vmatmul.mubr.f32.gmra.mrb[0].mxu0 %v2041
    %v2130 = vpop.f32.mrb[0].mxu0
    %v2131 = vadd.f32 0.0, %v2130
    %v2132 = vpop.f32.mrb[0].mxu0
    %2133 = vmatprep.mubr.f32.mxu0 0.0
    %2134 = vmatmul.mubr.f32.gmra.mrb[0].mxu0 %v2044
    %v2135 = vpop.f32.mrb[0].mxu0
    %v2136 = vadd.f32 0.0, %v2135
    %v2137 = vpop.f32.mrb[0].mxu0
    %2138 = vmatprep.mubr.f32.mxu0 0.0
    %2139 = vmatmul.mubr.f32.gmra.mrb[0].mxu0 %v2047
    %v2140 = vpop.f32.mrb[0].mxu0
    %v2141 = vadd.f32 0.0, %v2140
    %v2142 = vpop.f32.mrb[0].mxu0
    %2143 = vdwg.mxu0
    %v2145 = vsel %vm462, %v2116, 0
    %v2148 = vsel %vm462, %v2121, 0
    %v2151 = vsel %vm462, %v2126, 0
    %v2154 = vsel %vm462, %v2131, 0
    %v2157 = vsel %vm462, %v2136, 0
    %v2160 = vsel %vm462, %v2141, 0
    %2162 = vmatprep.subr.mxu0 0.0
    %2163 = vmatpush1.msra.mxu0 %v443
    %2164 = vmatprep.subr.mxu0 0.0
    %2165 = vmatpush1.msra.mxu0 0.0
    %2166 = vmatprep.subr.mxu0 0.0
    %2167 = vmatpush1.msra.mxu0 0.0
    %2168 = vmatprep.subr.mxu0 0.0
    %2169 = vmatpush1.msra.mxu0 0.0
    %2170 = vmatprep.subr.mxu0 0.0
    %2171 = vmatpush1.msra.mxu0 0.0
    %2172 = vmatprep.subr.mxu0 0.0
    %2173 = vmatpush1.msra.mxu0 0.0
    %2174 = vmatprep.subr.mxu0 0.0
    %2175 = vmatpush1.msra.mxu0 0.0
    %2176 = vmatprep.subr.mxu0 0.0
    %2177 = vmatpush1.msra.mxu0 0.0
    %2178 = vmatprep.subr.mxu0 0.0
    %2179 = vmatpush1.msra.mxu0 0.0
    %2180 = vmatprep.subr.mxu0 0.0
    %2181 = vmatpush1.msra.mxu0 0.0
    %2182 = vmatprep.subr.mxu0 0.0
    %2183 = vmatpush1.msra.mxu0 0.0
    %2184 = vmatprep.subr.mxu0 0.0
    %2185 = vmatpush1.msra.mxu0 0.0
    %2186 = vmatprep.subr.mxu0 0.0
    %2187 = vmatpush1.msra.mxu0 0.0
    %2188 = vmatprep.subr.mxu0 0.0
    %2189 = vmatpush1.msra.mxu0 0.0
    %2190 = vmatprep.subr.mxu0 0.0
    %2191 = vmatpush1.msra.mxu0 0.0
    %2192 = vmatprep.subr.mxu0 0.0
    %2193 = vmatpush1.msra.mxu0 0.0
    %2194 = vmatprep.subr.mxu0 0.0
    %2195 = vmatpush1.msra.mxu0 0.0
    %2196 = vmatprep.subr.mxu0 0.0
    %2197 = vmatpush1.msra.mxu0 0.0
    %2198 = vmatprep.subr.mxu0 0.0
    %2199 = vmatpush1.msra.mxu0 0.0
    %2200 = vmatprep.subr.mxu0 0.0
    %2201 = vmatpush1.msra.mxu0 0.0
    %2202 = vmatprep.subr.mxu0 0.0
    %2203 = vmatpush1.msra.mxu0 0.0
    %2204 = vmatprep.subr.mxu0 0.0
    %2205 = vmatpush1.msra.mxu0 0.0
    %2206 = vmatprep.subr.mxu0 0.0
    %2207 = vmatpush1.msra.mxu0 0.0
    %2208 = vmatprep.subr.mxu0 0.0
    %2209 = vmatpush1.msra.mxu0 0.0
    %2210 = vmatprep.subr.mxu0 0.0
    %2211 = vmatpush1.msra.mxu0 0.0
    %2212 = vmatprep.subr.mxu0 0.0
    %2213 = vmatpush1.msra.mxu0 0.0
    %2214 = vmatprep.subr.mxu0 0.0
    %2215 = vmatpush1.msra.mxu0 0.0
    %2216 = vmatprep.subr.mxu0 0.0
    %2217 = vmatpush1.msra.mxu0 0.0
    %2218 = vmatprep.subr.mxu0 0.0
    %2219 = vmatpush1.msra.mxu0 0.0
    %2220 = vmatprep.subr.mxu0 0.0
    %2221 = vmatpush1.msra.mxu0 0.0
    %2222 = vmatprep.subr.mxu0 0.0
    %2223 = vmatpush1.msra.mxu0 0.0
    %2224 = vmatprep.subr.mxu0 0.0
    %2225 = vmatpush1.msra.mxu0 0.0
    %2226 = vmatprep.mubr.f32.mxu0 0.0
    %2227 = vmatmul.mubr.f32.gmra.mrb[0].mxu0 %v2145
    %v2228 = vpop.f32.mrb[0].mxu0
    %v2229 = vadd.f32 0.0, %v2228
    %v2230 = vpop.f32.mrb[0].mxu0
    %2231 = vmatprep.mubr.f32.mxu0 0.0
    %2232 = vmatmul.mubr.f32.gmra.mrb[0].mxu0 %v2148
    %v2233 = vpop.f32.mrb[0].mxu0
    %v2234 = vadd.f32 0.0, %v2233
    %v2235 = vpop.f32.mrb[0].mxu0
    %2236 = vmatprep.mubr.f32.mxu0 0.0
    %2237 = vmatmul.mubr.f32.gmra.mrb[0].mxu0 %v2151
    %v2238 = vpop.f32.mrb[0].mxu0
    %v2239 = vadd.f32 0.0, %v2238
    %v2240 = vpop.f32.mrb[0].mxu0
    %2241 = vmatprep.mubr.f32.mxu0 0.0
    %2242 = vmatmul.mubr.f32.gmra.mrb[0].mxu0 %v2154
    %v2243 = vpop.f32.mrb[0].mxu0
    %v2244 = vadd.f32 0.0, %v2243
    %v2245 = vpop.f32.mrb[0].mxu0
    %2246 = vmatprep.mubr.f32.mxu0 0.0
    %2247 = vmatmul.mubr.f32.gmra.mrb[0].mxu0 %v2157
    %v2248 = vpop.f32.mrb[0].mxu0
    %v2249 = vadd.f32 0.0, %v2248
    %v2250 = vpop.f32.mrb[0].mxu0
    %2251 = vmatprep.mubr.f32.mxu0 0.0
    %2252 = vmatmul.mubr.f32.gmra.mrb[0].mxu0 %v2160
    %v2253 = vpop.f32.mrb[0].mxu0
    %v2254 = vadd.f32 0.0, %v2253
    %v2255 = vpop.f32.mrb[0].mxu0
    %2256 = vdwg.mxu0
    %v2257 = vadd.f32 %v1798, %v2229
    %v2258 = vadd.f32 %v1799, %v2234
    %v2259 = vadd.f32 %v1800, %v2239
    %v2260 = vadd.f32 %v1801, %v2244
    %v2261 = vadd.f32 %v1802, %v2249
    %v2262 = vadd.f32 %v1803, %v2254
    %v2263 = vadd.f32 %v198, %v2257
    %v2264 = vadd.f32 %v199, %v2258
    %v2265 = vadd.f32 %v200, %v2259
    %v2266 = vadd.f32 %v201, %v2260
    %v2267 = vadd.f32 %v202, %v2261
    %v2268 = vadd.f32 %v203, %v2262
    %v2269 = vld [vmem:[%s9] sm:$0x1]
    %v2271 = vlaneseq
    %v2272 = vshrl.u32 %v2271, 7
    %v2273 = vsub.s32 0, %v2272
    %v2274 = vrot.slane %v2269, %v2273
    %v2276 = vadd.f32 %v2263, %v2274
    %v2277 = vadd.f32 %v2264, %v2274
    %v2278 = vadd.f32 %v2265, %v2274
    %v2279 = vadd.f32 %v2266, %v2274
    %v2280 = vadd.f32 %v2267, %v2274
    %v2281 = vadd.f32 %v2268, %v2274
    %v2282 = vld [vmem:[%s10] sm:$0x1]
    %v2283 = vld [vmem:[%s11] sm:$0x1]
    %v2284 = vsel %vm212, %v2276, 0.0
    %2285 = vadd.xlane.f32.xlu0 %v2284
    %v2286 = vpop.xlane.xlu0 %2285
    %v2287 = vsel %vm212, %v2277, 0.0
    %2288 = vadd.xlane.f32.xlu0 %v2287
    %v2289 = vpop.xlane.xlu0 %2288
    %v2290 = vsel %vm212, %v2278, 0.0
    %2291 = vadd.xlane.f32.xlu0 %v2290
    %v2292 = vpop.xlane.xlu0 %2291
    %v2293 = vsel %vm212, %v2279, 0.0
    %2294 = vadd.xlane.f32.xlu0 %v2293
    %v2295 = vpop.xlane.xlu0 %2294
    %v2296 = vsel %vm212, %v2280, 0.0
    %2297 = vadd.xlane.f32.xlu0 %v2296
    %v2298 = vpop.xlane.xlu0 %2297
    %v2299 = vsel %vm212, %v2281, 0.0
    %2300 = vadd.xlane.f32.xlu0 %v2299
    %v2301 = vpop.xlane.xlu0 %2300
    %v2302 = vmul.f32 %v2286, %v231
    %v2303 = vmul.f32 %v2289, %v231
    %v2304 = vmul.f32 %v2292, %v231
    %v2305 = vmul.f32 %v2295, %v231
    %v2306 = vmul.f32 %v2298, %v231
    %v2307 = vmul.f32 %v2301, %v231
    %v2308 = vsub.f32 %v2276, %v2302
    %v2309 = vsub.f32 %v2277, %v2303
    %v2310 = vsub.f32 %v2278, %v2304
    %v2311 = vsub.f32 %v2279, %v2305
    %v2312 = vsub.f32 %v2280, %v2306
    %v2313 = vsub.f32 %v2281, %v2307
    %v2314 = vmul.f32 %v2308, %v2308
    %v2315 = vmul.f32 %v2309, %v2309
    %v2316 = vmul.f32 %v2310, %v2310
    %v2317 = vmul.f32 %v2311, %v2311
    %v2318 = vmul.f32 %v2312, %v2312
    %v2319 = vmul.f32 %v2313, %v2313
    %v2320 = vsel %vm212, %v2314, 0.0
    %2321 = vadd.xlane.f32.xlu0 %v2320
    %v2322 = vpop.xlane.xlu0 %2321
    %v2323 = vsel %vm212, %v2315, 0.0
    %2324 = vadd.xlane.f32.xlu0 %v2323
    %v2325 = vpop.xlane.xlu0 %2324
    %v2326 = vsel %vm212, %v2316, 0.0
    %2327 = vadd.xlane.f32.xlu0 %v2326
    %v2328 = vpop.xlane.xlu0 %2327
    %v2329 = vsel %vm212, %v2317, 0.0
    %2330 = vadd.xlane.f32.xlu0 %v2329
    %v2331 = vpop.xlane.xlu0 %2330
    %v2332 = vsel %vm212, %v2318, 0.0
    %2333 = vadd.xlane.f32.xlu0 %v2332
    %v2334 = vpop.xlane.xlu0 %2333
    %v2335 = vsel %vm212, %v2319, 0.0
    %2336 = vadd.xlane.f32.xlu0 %v2335
    %v2337 = vpop.xlane.xlu0 %2336
    %v2338 = vmul.f32 %v2322, %v231
    %v2339 = vmul.f32 %v2325, %v231
    %v2340 = vmul.f32 %v2328, %v231
    %v2341 = vmul.f32 %v2331, %v231
    %v2342 = vmul.f32 %v2334, %v231
    %v2343 = vmul.f32 %v2337, %v231
    %v2344 = vadd.f32 %v2338, 1e-06
    %v2345 = vadd.f32 %v2339, 1e-06
    %v2346 = vadd.f32 %v2340, 1e-06
    %v2347 = vadd.f32 %v2341, 1e-06
    %v2348 = vadd.f32 %v2342, 1e-06
    %v2349 = vadd.f32 %v2343, 1e-06
    %v2350 = vrsqrt.pop %v2344
    %v2351 = vrsqrt.pop %v2345
    %v2352 = vrsqrt.pop %v2346
    %v2353 = vrsqrt.pop %v2347
    %v2354 = vrsqrt.pop %v2348
    %v2355 = vrsqrt.pop %v2349
    %v2356 = vmul.f32 %v2308, %v2350
    %v2357 = vmul.f32 %v2309, %v2351
    %v2358 = vmul.f32 %v2310, %v2352
    %v2359 = vmul.f32 %v2311, %v2353
    %v2360 = vmul.f32 %v2312, %v2354
    %v2361 = vmul.f32 %v2313, %v2355
    %v2363 = vlaneseq
    %v2364 = vshrl.u32 %v2363, 7
    %v2365 = vsub.s32 0, %v2364
    %v2366 = vrot.slane %v2282, %v2365
    %v2368 = vmul.f32 %v2356, %v2366
    %v2369 = vmul.f32 %v2357, %v2366
    %v2370 = vmul.f32 %v2358, %v2366
    %v2371 = vmul.f32 %v2359, %v2366
    %v2372 = vmul.f32 %v2360, %v2366
    %v2373 = vmul.f32 %v2361, %v2366
    %v2375 = vlaneseq
    %v2376 = vshrl.u32 %v2375, 7
    %v2377 = vsub.s32 0, %v2376
    %v2378 = vrot.slane %v2283, %v2377
    %v2380 = vadd.f32 %v2368, %v2378
    %v2381 = vadd.f32 %v2369, %v2378
    %v2382 = vadd.f32 %v2370, %v2378
    %v2383 = vadd.f32 %v2371, %v2378
    %v2384 = vadd.f32 %v2372, %v2378
    %v2385 = vadd.f32 %v2373, %v2378
    %v2386 = vld [vmem:[%s12] sm:$0xff]
    %v2387 = vld [vmem:[%s12 + $0x8] sm:$0xff]
    %v2388 = vld [vmem:[%s12 + $0x10] sm:$0xff]
    %v2389 = vld [vmem:[%s12 + $0x18] sm:$0xff]
    %v2390 = vld [vmem:[%s13] sm:$0x1]
    %v2392 = vlaneseq
    %v2393 = vshrl.u32 %v2392, 7
    %v2394 = vsub.s32 0, %v2393
    %v2395 = vrot.slane %v2390, %v2394
    %v2398 = vsel %vm212, %v2380, 0
    %v2401 = vsel %vm212, %v2381, 0
    %v2404 = vsel %vm212, %v2382, 0
    %v2407 = vsel %vm212, %v2383, 0
    %v2410 = vsel %vm212, %v2384, 0
    %v2413 = vsel %vm212, %v2385, 0
    %2415 = vmatprep.subr.mxu0 0.0
    %2416 = vmatpush1.msra.mxu0 %v2386
    %2417 = vmatprep.subr.mxu0 0.0
    %2418 = vmatpush1.msra.mxu0 %v2387
    %2419 = vmatprep.subr.mxu0 0.0
    %2420 = vmatpush1.msra.mxu0 %v2388
    %2421 = vmatprep.subr.mxu0 0.0
    %2422 = vmatpush1.msra.mxu0 %v2389
    %2423 = vmatprep.subr.mxu0 0.0
    %2424 = vmatpush1.msra.mxu0 0.0
    %2425 = vmatprep.subr.mxu0 0.0
    %2426 = vmatpush1.msra.mxu0 0.0
    %2427 = vmatprep.subr.mxu0 0.0
    %2428 = vmatpush1.msra.mxu0 0.0
    %2429 = vmatprep.subr.mxu0 0.0
    %2430 = vmatpush1.msra.mxu0 0.0
    %2431 = vmatprep.subr.mxu0 0.0
    %2432 = vmatpush1.msra.mxu0 0.0
    %2433 = vmatprep.subr.mxu0 0.0
    %2434 = vmatpush1.msra.mxu0 0.0
    %2435 = vmatprep.subr.mxu0 0.0
    %2436 = vmatpush1.msra.mxu0 0.0
    %2437 = vmatprep.subr.mxu0 0.0
    %2438 = vmatpush1.msra.mxu0 0.0
    %2439 = vmatprep.subr.mxu0 0.0
    %2440 = vmatpush1.msra.mxu0 0.0
    %2441 = vmatprep.subr.mxu0 0.0
    %2442 = vmatpush1.msra.mxu0 0.0
    %2443 = vmatprep.subr.mxu0 0.0
    %2444 = vmatpush1.msra.mxu0 0.0
    %2445 = vmatprep.subr.mxu0 0.0
    %2446 = vmatpush1.msra.mxu0 0.0
    %2447 = vmatprep.subr.mxu0 0.0
    %2448 = vmatpush1.msra.mxu0 0.0
    %2449 = vmatprep.subr.mxu0 0.0
    %2450 = vmatpush1.msra.mxu0 0.0
    %2451 = vmatprep.subr.mxu0 0.0
    %2452 = vmatpush1.msra.mxu0 0.0
    %2453 = vmatprep.subr.mxu0 0.0
    %2454 = vmatpush1.msra.mxu0 0.0
    %2455 = vmatprep.subr.mxu0 0.0
    %2456 = vmatpush1.msra.mxu0 0.0
    %2457 = vmatprep.subr.mxu0 0.0
    %2458 = vmatpush1.msra.mxu0 0.0
    %2459 = vmatprep.subr.mxu0 0.0
    %2460 = vmatpush1.msra.mxu0 0.0
    %2461 = vmatprep.subr.mxu0 0.0
    %2462 = vmatpush1.msra.mxu0 0.0
    %2463 = vmatprep.subr.mxu0 0.0
    %2464 = vmatpush1.msra.mxu0 0.0
    %2465 = vmatprep.subr.mxu0 0.0
    %2466 = vmatpush1.msra.mxu0 0.0
    %2467 = vmatprep.subr.mxu0 0.0
    %2468 = vmatpush1.msra.mxu0 0.0
    %2469 = vmatprep.subr.mxu0 0.0
    %2470 = vmatpush1.msra.mxu0 0.0
    %2471 = vmatprep.subr.mxu0 0.0
    %2472 = vmatpush1.msra.mxu0 0.0
    %2473 = vmatprep.subr.mxu0 0.0
    %2474 = vmatpush1.msra.mxu0 0.0
    %2475 = vmatprep.subr.mxu0 0.0
    %2476 = vmatpush1.msra.mxu0 0.0
    %2477 = vmatprep.subr.mxu0 0.0
    %2478 = vmatpush1.msra.mxu0 0.0
    %2479 = vmatprep.mubr.f32.mxu0 0.0
    %2480 = vmatmul.mubr.f32.gmra.mrb[0].mxu0 %v2398
    %v2481 = vpop.f32.mrb[0].mxu0
    %v2482 = vadd.f32 %v2395, %v2481
    %v2483 = vpop.f32.mrb[0].mxu0
    %2484 = vmatprep.mubr.f32.mxu0 0.0
    %2485 = vmatmul.mubr.f32.gmra.mrb[0].mxu0 %v2401
    %v2486 = vpop.f32.mrb[0].mxu0
    %v2487 = vadd.f32 %v2395, %v2486
    %v2488 = vpop.f32.mrb[0].mxu0
    %2489 = vmatprep.mubr.f32.mxu0 0.0
    %2490 = vmatmul.mubr.f32.gmra.mrb[0].mxu0 %v2404
    %v2491 = vpop.f32.mrb[0].mxu0
    %v2492 = vadd.f32 %v2395, %v2491
    %v2493 = vpop.f32.mrb[0].mxu0
    %2494 = vmatprep.mubr.f32.mxu0 0.0
    %2495 = vmatmul.mubr.f32.gmra.mrb[0].mxu0 %v2407
    %v2496 = vpop.f32.mrb[0].mxu0
    %v2497 = vadd.f32 %v2395, %v2496
    %v2498 = vpop.f32.mrb[0].mxu0
    %2499 = vmatprep.mubr.f32.mxu0 0.0
    %2500 = vmatmul.mubr.f32.gmra.mrb[0].mxu0 %v2410
    %v2501 = vpop.f32.mrb[0].mxu0
    %v2502 = vadd.f32 %v2395, %v2501
    %v2503 = vpop.f32.mrb[0].mxu0
    %2504 = vmatprep.mubr.f32.mxu0 0.0
    %2505 = vmatmul.mubr.f32.gmra.mrb[0].mxu0 %v2413
    %v2506 = vpop.f32.mrb[0].mxu0
    %v2507 = vadd.f32 %v2395, %v2506
    %v2508 = vpop.f32.mrb[0].mxu0
    %2509 = vdwg.mxu0
    %v2510 = vmul.f32 %v2482, 0.5
    %v2511 = vmul.f32 %v2487, 0.5
    %v2512 = vmul.f32 %v2492, 0.5
    %v2513 = vmul.f32 %v2497, 0.5
    %v2514 = vmul.f32 %v2502, 0.5
    %v2515 = vmul.f32 %v2507, 0.5
    %v2516 = vmul.f32 %v2482, 0.044715
    %v2517 = vmul.f32 %v2487, 0.044715
    %v2518 = vmul.f32 %v2492, 0.044715
    %v2519 = vmul.f32 %v2497, 0.044715
    %v2520 = vmul.f32 %v2502, 0.044715
    %v2521 = vmul.f32 %v2507, 0.044715
    %v2522 = vmul.f32 %v2516, %v2482
    %v2523 = vmul.f32 %v2517, %v2487
    %v2524 = vmul.f32 %v2518, %v2492
    %v2525 = vmul.f32 %v2519, %v2497
    %v2526 = vmul.f32 %v2520, %v2502
    %v2527 = vmul.f32 %v2521, %v2507
    %v2528 = vmul.f32 %v2522, %v2482
    %v2529 = vmul.f32 %v2523, %v2487
    %v2530 = vmul.f32 %v2524, %v2492
    %v2531 = vmul.f32 %v2525, %v2497
    %v2532 = vmul.f32 %v2526, %v2502
    %v2533 = vmul.f32 %v2527, %v2507
    %v2534 = vadd.f32 %v2482, %v2528
    %v2535 = vadd.f32 %v2487, %v2529
    %v2536 = vadd.f32 %v2492, %v2530
    %v2537 = vadd.f32 %v2497, %v2531
    %v2538 = vadd.f32 %v2502, %v2532
    %v2539 = vadd.f32 %v2507, %v2533
    %v2540 = vmul.f32 %v2534, 0.7978846
    %v2541 = vmul.f32 %v2535, 0.7978846
    %v2542 = vmul.f32 %v2536, 0.7978846
    %v2543 = vmul.f32 %v2537, 0.7978846
    %v2544 = vmul.f32 %v2538, 0.7978846
    %v2545 = vmul.f32 %v2539, 0.7978846
    %v2546 = vtanh.pop %v2540
    %v2547 = vtanh.pop %v2541
    %v2548 = vtanh.pop %v2542
    %v2549 = vtanh.pop %v2543
    %v2550 = vtanh.pop %v2544
    %v2551 = vtanh.pop %v2545
    %v2552 = vadd.f32 %v2546, 1.0
    %v2553 = vadd.f32 %v2547, 1.0
    %v2554 = vadd.f32 %v2548, 1.0
    %v2555 = vadd.f32 %v2549, 1.0
    %v2556 = vadd.f32 %v2550, 1.0
    %v2557 = vadd.f32 %v2551, 1.0
    %v2558 = vmul.f32 %v2510, %v2552
    %v2559 = vmul.f32 %v2511, %v2553
    %v2560 = vmul.f32 %v2512, %v2554
    %v2561 = vmul.f32 %v2513, %v2555
    %v2562 = vmul.f32 %v2514, %v2556
    %v2563 = vmul.f32 %v2515, %v2557
    %v2564 = vld [vmem:[%s14] sm:$0xff]
    %v2565 = vld [vmem:[%s14 + $0x8] sm:$0xff]
    %v2566 = vld [vmem:[%s14 + $0x10] sm:$0xff]
    %v2567 = vld [vmem:[%s14 + $0x18] sm:$0xff]
    %v2568 = vld [vmem:[%s14 + $0x20] sm:$0xff]
    %v2569 = vld [vmem:[%s14 + $0x28] sm:$0xff]
    %v2570 = vld [vmem:[%s14 + $0x30] sm:$0xff]
    %v2571 = vld [vmem:[%s14 + $0x38] sm:$0xff]
    %v2572 = vld [vmem:[%s14 + $0x40] sm:$0xff]
    %v2573 = vld [vmem:[%s14 + $0x48] sm:$0xff]
    %v2574 = vld [vmem:[%s14 + $0x50] sm:$0xff]
    %v2575 = vld [vmem:[%s14 + $0x58] sm:$0xff]
    %v2576 = vld [vmem:[%s14 + $0x60] sm:$0xff]
    %v2577 = vld [vmem:[%s14 + $0x68] sm:$0xff]
    %v2578 = vld [vmem:[%s14 + $0x70] sm:$0xff]
    %v2579 = vld [vmem:[%s14 + $0x78] sm:$0xff]
    %v2580 = vld [vmem:[%s15] sm:$0x1]
    %v2582 = vlaneseq
    %v2583 = vshrl.u32 %v2582, 7
    %v2584 = vsub.s32 0, %v2583
    %v2585 = vrot.slane %v2580, %v2584
    %2587 = vmatprep.subr.mxu0 0.0
    %2588 = vmatpush1.msra.mxu0 %v2564
    %2589 = vmatprep.subr.mxu0 0.0
    %2590 = vmatpush1.msra.mxu0 %v2565
    %2591 = vmatprep.subr.mxu0 0.0
    %2592 = vmatpush1.msra.mxu0 %v2566
    %2593 = vmatprep.subr.mxu0 0.0
    %2594 = vmatpush1.msra.mxu0 %v2567
    %2595 = vmatprep.subr.mxu0 0.0
    %2596 = vmatpush1.msra.mxu0 %v2568
    %2597 = vmatprep.subr.mxu0 0.0
    %2598 = vmatpush1.msra.mxu0 %v2569
    %2599 = vmatprep.subr.mxu0 0.0
    %2600 = vmatpush1.msra.mxu0 %v2570
    %2601 = vmatprep.subr.mxu0 0.0
    %2602 = vmatpush1.msra.mxu0 %v2571
    %2603 = vmatprep.subr.mxu0 0.0
    %2604 = vmatpush1.msra.mxu0 %v2572
    %2605 = vmatprep.subr.mxu0 0.0
    %2606 = vmatpush1.msra.mxu0 %v2573
    %2607 = vmatprep.subr.mxu0 0.0
    %2608 = vmatpush1.msra.mxu0 %v2574
    %2609 = vmatprep.subr.mxu0 0.0
    %2610 = vmatpush1.msra.mxu0 %v2575
    %2611 = vmatprep.subr.mxu0 0.0
    %2612 = vmatpush1.msra.mxu0 %v2576
    %2613 = vmatprep.subr.mxu0 0.0
    %2614 = vmatpush1.msra.mxu0 %v2577
    %2615 = vmatprep.subr.mxu0 0.0
    %2616 = vmatpush1.msra.mxu0 %v2578
    %2617 = vmatprep.subr.mxu0 0.0
    %2618 = vmatpush1.msra.mxu0 %v2579
    %2619 = vmatprep.subr.mxu0 0.0
    %2620 = vmatpush1.msra.mxu0 0.0
    %2621 = vmatprep.subr.mxu0 0.0
    %2622 = vmatpush1.msra.mxu0 0.0
    %2623 = vmatprep.subr.mxu0 0.0
    %2624 = vmatpush1.msra.mxu0 0.0
    %2625 = vmatprep.subr.mxu0 0.0
    %2626 = vmatpush1.msra.mxu0 0.0
    %2627 = vmatprep.subr.mxu0 0.0
    %2628 = vmatpush1.msra.mxu0 0.0
    %2629 = vmatprep.subr.mxu0 0.0
    %2630 = vmatpush1.msra.mxu0 0.0
    %2631 = vmatprep.subr.mxu0 0.0
    %2632 = vmatpush1.msra.mxu0 0.0
    %2633 = vmatprep.subr.mxu0 0.0
    %2634 = vmatpush1.msra.mxu0 0.0
    %2635 = vmatprep.subr.mxu0 0.0
    %2636 = vmatpush1.msra.mxu0 0.0
    %2637 = vmatprep.subr.mxu0 0.0
    %2638 = vmatpush1.msra.mxu0 0.0
    %2639 = vmatprep.subr.mxu0 0.0
    %2640 = vmatpush1.msra.mxu0 0.0
    %2641 = vmatprep.subr.mxu0 0.0
    %2642 = vmatpush1.msra.mxu0 0.0
    %2643 = vmatprep.subr.mxu0 0.0
    %2644 = vmatpush1.msra.mxu0 0.0
    %2645 = vmatprep.subr.mxu0 0.0
    %2646 = vmatpush1.msra.mxu0 0.0
    %2647 = vmatprep.subr.mxu0 0.0
    %2648 = vmatpush1.msra.mxu0 0.0
    %2649 = vmatprep.subr.mxu0 0.0
    %2650 = vmatpush1.msra.mxu0 0.0
    %2651 = vmatprep.mubr.f32.mxu0 0.0
    %2652 = vmatmul.mubr.f32.gmra.mrb[0].mxu0 %v2558
    %v2653 = vpop.f32.mrb[0].mxu0
    %v2654 = vadd.f32 %v2585, %v2653
    %v2655 = vpop.f32.mrb[0].mxu0
    %2656 = vmatprep.mubr.f32.mxu0 0.0
    %2657 = vmatmul.mubr.f32.gmra.mrb[0].mxu0 %v2559
    %v2658 = vpop.f32.mrb[0].mxu0
    %v2659 = vadd.f32 %v2585, %v2658
    %v2660 = vpop.f32.mrb[0].mxu0
    %2661 = vmatprep.mubr.f32.mxu0 0.0
    %2662 = vmatmul.mubr.f32.gmra.mrb[0].mxu0 %v2560
    %v2663 = vpop.f32.mrb[0].mxu0
    %v2664 = vadd.f32 %v2585, %v2663
    %v2665 = vpop.f32.mrb[0].mxu0
    %2666 = vmatprep.mubr.f32.mxu0 0.0
    %2667 = vmatmul.mubr.f32.gmra.mrb[0].mxu0 %v2561
    %v2668 = vpop.f32.mrb[0].mxu0
    %v2669 = vadd.f32 %v2585, %v2668
    %v2670 = vpop.f32.mrb[0].mxu0
    %2671 = vmatprep.mubr.f32.mxu0 0.0
    %2672 = vmatmul.mubr.f32.gmra.mrb[0].mxu0 %v2562
    %v2673 = vpop.f32.mrb[0].mxu0
    %v2674 = vadd.f32 %v2585, %v2673
    %v2675 = vpop.f32.mrb[0].mxu0
    %2676 = vmatprep.mubr.f32.mxu0 0.0
    %2677 = vmatmul.mubr.f32.gmra.mrb[0].mxu0 %v2563
    %v2678 = vpop.f32.mrb[0].mxu0
    %v2679 = vadd.f32 %v2585, %v2678
    %v2680 = vpop.f32.mrb[0].mxu0
    %2681 = vdwg.mxu0
    %v2682 = vadd.f32 %v2276, %v2654
    %v2683 = vadd.f32 %v2277, %v2659
    %v2684 = vadd.f32 %v2278, %v2664
    %v2685 = vadd.f32 %v2279, %v2669
    %v2686 = vadd.f32 %v2280, %v2674
    %v2687 = vadd.f32 %v2281, %v2679
    %s2688 = scalar_lea.vmem %s4, 1
    %v2689 = vld [vmem:[%s2688] sm:$0x1]
    %s2690 = scalar_lea.vmem %s5, 1
    %v2691 = vld [vmem:[%s2690] sm:$0x1]
    %v2692 = vsel %vm212, %v2682, 0.0
    %2693 = vadd.xlane.f32.xlu0 %v2692
    %v2694 = vpop.xlane.xlu0 %2693
    %v2695 = vsel %vm212, %v2683, 0.0
    %2696 = vadd.xlane.f32.xlu0 %v2695
    %v2697 = vpop.xlane.xlu0 %2696
    %v2698 = vsel %vm212, %v2684, 0.0
    %2699 = vadd.xlane.f32.xlu0 %v2698
    %v2700 = vpop.xlane.xlu0 %2699
    %v2701 = vsel %vm212, %v2685, 0.0
    %2702 = vadd.xlane.f32.xlu0 %v2701
    %v2703 = vpop.xlane.xlu0 %2702
    %v2704 = vsel %vm212, %v2686, 0.0
    %2705 = vadd.xlane.f32.xlu0 %v2704
    %v2706 = vpop.xlane.xlu0 %2705
    %v2707 = vsel %vm212, %v2687, 0.0
    %2708 = vadd.xlane.f32.xlu0 %v2707
    %v2709 = vpop.xlane.xlu0 %2708
    %v2710 = vmul.f32 %v2694, %v231
    %v2711 = vmul.f32 %v2697, %v231
    %v2712 = vmul.f32 %v2700, %v231
    %v2713 = vmul.f32 %v2703, %v231
    %v2714 = vmul.f32 %v2706, %v231
    %v2715 = vmul.f32 %v2709, %v231
    %v2716 = vsub.f32 %v2682, %v2710
    %v2717 = vsub.f32 %v2683, %v2711
    %v2718 = vsub.f32 %v2684, %v2712
    %v2719 = vsub.f32 %v2685, %v2713
    %v2720 = vsub.f32 %v2686, %v2714
    %v2721 = vsub.f32 %v2687, %v2715
    %v2722 = vmul.f32 %v2716, %v2716
    %v2723 = vmul.f32 %v2717, %v2717
    %v2724 = vmul.f32 %v2718, %v2718
    %v2725 = vmul.f32 %v2719, %v2719
    %v2726 = vmul.f32 %v2720, %v2720
    %v2727 = vmul.f32 %v2721, %v2721
    %v2728 = vsel %vm212, %v2722, 0.0
    %2729 = vadd.xlane.f32.xlu0 %v2728
    %v2730 = vpop.xlane.xlu0 %2729
    %v2731 = vsel %vm212, %v2723, 0.0
    %2732 = vadd.xlane.f32.xlu0 %v2731
    %v2733 = vpop.xlane.xlu0 %2732
    %v2734 = vsel %vm212, %v2724, 0.0
    %2735 = vadd.xlane.f32.xlu0 %v2734
    %v2736 = vpop.xlane.xlu0 %2735
    %v2737 = vsel %vm212, %v2725, 0.0
    %2738 = vadd.xlane.f32.xlu0 %v2737
    %v2739 = vpop.xlane.xlu0 %2738
    %v2740 = vsel %vm212, %v2726, 0.0
    %2741 = vadd.xlane.f32.xlu0 %v2740
    %v2742 = vpop.xlane.xlu0 %2741
    %v2743 = vsel %vm212, %v2727, 0.0
    %2744 = vadd.xlane.f32.xlu0 %v2743
    %v2745 = vpop.xlane.xlu0 %2744
    %v2746 = vmul.f32 %v2730, %v231
    %v2747 = vmul.f32 %v2733, %v231
    %v2748 = vmul.f32 %v2736, %v231
    %v2749 = vmul.f32 %v2739, %v231
    %v2750 = vmul.f32 %v2742, %v231
    %v2751 = vmul.f32 %v2745, %v231
    %v2752 = vadd.f32 %v2746, 1e-06
    %v2753 = vadd.f32 %v2747, 1e-06
    %v2754 = vadd.f32 %v2748, 1e-06
    %v2755 = vadd.f32 %v2749, 1e-06
    %v2756 = vadd.f32 %v2750, 1e-06
    %v2757 = vadd.f32 %v2751, 1e-06
    %v2758 = vrsqrt.pop %v2752
    %v2759 = vrsqrt.pop %v2753
    %v2760 = vrsqrt.pop %v2754
    %v2761 = vrsqrt.pop %v2755
    %v2762 = vrsqrt.pop %v2756
    %v2763 = vrsqrt.pop %v2757
    %v2764 = vmul.f32 %v2716, %v2758
    %v2765 = vmul.f32 %v2717, %v2759
    %v2766 = vmul.f32 %v2718, %v2760
    %v2767 = vmul.f32 %v2719, %v2761
    %v2768 = vmul.f32 %v2720, %v2762
    %v2769 = vmul.f32 %v2721, %v2763
    %v2771 = vlaneseq
    %v2772 = vshrl.u32 %v2771, 7
    %v2773 = vsub.s32 0, %v2772
    %v2774 = vrot.slane %v2689, %v2773
    %v2776 = vmul.f32 %v2764, %v2774
    %v2777 = vmul.f32 %v2765, %v2774
    %v2778 = vmul.f32 %v2766, %v2774
    %v2779 = vmul.f32 %v2767, %v2774
    %v2780 = vmul.f32 %v2768, %v2774
    %v2781 = vmul.f32 %v2769, %v2774
    %v2783 = vlaneseq
    %v2784 = vshrl.u32 %v2783, 7
    %v2785 = vsub.s32 0, %v2784
    %v2786 = vrot.slane %v2691, %v2785
    %v2788 = vadd.f32 %v2776, %v2786
    %v2789 = vadd.f32 %v2777, %v2786
    %v2790 = vadd.f32 %v2778, %v2786
    %v2791 = vadd.f32 %v2779, %v2786
    %v2792 = vadd.f32 %v2780, %v2786
    %v2793 = vadd.f32 %v2781, %v2786
    %s2794 = scalar_lea.vmem %s6, 32
    %v2795 = vld [vmem:[%s2794] sm:$0xff]
    %v2796 = vld [vmem:[%s2794 + $0x8] sm:$0xff]
    %v2797 = vld [vmem:[%s2794 + $0x10] sm:$0xff]
    %v2798 = vld [vmem:[%s2794 + $0x18] sm:$0xff]
    %s2799 = scalar_lea.vmem %s7, 1
    %v2800 = vld [vmem:[%s2799] sm:$0x1]
    %v2802 = vlaneseq
    %v2803 = vshrl.u32 %v2802, 7
    %v2804 = vsub.s32 0, %v2803
    %v2805 = vrot.slane %v2800, %v2804
    %v2808 = vsel %vm212, %v2788, 0
    %v2811 = vsel %vm212, %v2789, 0
    %v2814 = vsel %vm212, %v2790, 0
    %v2817 = vsel %vm212, %v2791, 0
    %v2820 = vsel %vm212, %v2792, 0
    %v2823 = vsel %vm212, %v2793, 0
    %2825 = vmatprep.subr.mxu0 0.0
    %2826 = vmatpush1.msra.mxu0 %v2795
    %2827 = vmatprep.subr.mxu0 0.0
    %2828 = vmatpush1.msra.mxu0 %v2796
    %2829 = vmatprep.subr.mxu0 0.0
    %2830 = vmatpush1.msra.mxu0 %v2797
    %2831 = vmatprep.subr.mxu0 0.0
    %2832 = vmatpush1.msra.mxu0 %v2798
    %2833 = vmatprep.subr.mxu0 0.0
    %2834 = vmatpush1.msra.mxu0 0.0
    %2835 = vmatprep.subr.mxu0 0.0
    %2836 = vmatpush1.msra.mxu0 0.0
    %2837 = vmatprep.subr.mxu0 0.0
    %2838 = vmatpush1.msra.mxu0 0.0
    %2839 = vmatprep.subr.mxu0 0.0
    %2840 = vmatpush1.msra.mxu0 0.0
    %2841 = vmatprep.subr.mxu0 0.0
    %2842 = vmatpush1.msra.mxu0 0.0
    %2843 = vmatprep.subr.mxu0 0.0
    %2844 = vmatpush1.msra.mxu0 0.0
    %2845 = vmatprep.subr.mxu0 0.0
    %2846 = vmatpush1.msra.mxu0 0.0
    %2847 = vmatprep.subr.mxu0 0.0
    %2848 = vmatpush1.msra.mxu0 0.0
    %2849 = vmatprep.subr.mxu0 0.0
    %2850 = vmatpush1.msra.mxu0 0.0
    %2851 = vmatprep.subr.mxu0 0.0
    %2852 = vmatpush1.msra.mxu0 0.0
    %2853 = vmatprep.subr.mxu0 0.0
    %2854 = vmatpush1.msra.mxu0 0.0
    %2855 = vmatprep.subr.mxu0 0.0
    %2856 = vmatpush1.msra.mxu0 0.0
    %2857 = vmatprep.subr.mxu0 0.0
    %2858 = vmatpush1.msra.mxu0 0.0
    %2859 = vmatprep.subr.mxu0 0.0
    %2860 = vmatpush1.msra.mxu0 0.0
    %2861 = vmatprep.subr.mxu0 0.0
    %2862 = vmatpush1.msra.mxu0 0.0
    %2863 = vmatprep.subr.mxu0 0.0
    %2864 = vmatpush1.msra.mxu0 0.0
    %2865 = vmatprep.subr.mxu0 0.0
    %2866 = vmatpush1.msra.mxu0 0.0
    %2867 = vmatprep.subr.mxu0 0.0
    %2868 = vmatpush1.msra.mxu0 0.0
    %2869 = vmatprep.subr.mxu0 0.0
    %2870 = vmatpush1.msra.mxu0 0.0
    %2871 = vmatprep.subr.mxu0 0.0
    %2872 = vmatpush1.msra.mxu0 0.0
    %2873 = vmatprep.subr.mxu0 0.0
    %2874 = vmatpush1.msra.mxu0 0.0
    %2875 = vmatprep.subr.mxu0 0.0
    %2876 = vmatpush1.msra.mxu0 0.0
    %2877 = vmatprep.subr.mxu0 0.0
    %2878 = vmatpush1.msra.mxu0 0.0
    %2879 = vmatprep.subr.mxu0 0.0
    %2880 = vmatpush1.msra.mxu0 0.0
    %2881 = vmatprep.subr.mxu0 0.0
    %2882 = vmatpush1.msra.mxu0 0.0
    %2883 = vmatprep.subr.mxu0 0.0
    %2884 = vmatpush1.msra.mxu0 0.0
    %2885 = vmatprep.subr.mxu0 0.0
    %2886 = vmatpush1.msra.mxu0 0.0
    %2887 = vmatprep.subr.mxu0 0.0
    %2888 = vmatpush1.msra.mxu0 0.0
    %2889 = vmatprep.mubr.f32.mxu0 0.0
    %2890 = vmatmul.mubr.f32.gmra.mrb[0].mxu0 %v2808
    %v2891 = vpop.f32.mrb[0].mxu0
    %v2892 = vadd.f32 %v2805, %v2891
    %v2893 = vpop.f32.mrb[0].mxu0
    %2894 = vmatprep.mubr.f32.mxu0 0.0
    %2895 = vmatmul.mubr.f32.gmra.mrb[0].mxu0 %v2811
    %v2896 = vpop.f32.mrb[0].mxu0
    %v2897 = vadd.f32 %v2805, %v2896
    %v2898 = vpop.f32.mrb[0].mxu0
    %2899 = vmatprep.mubr.f32.mxu0 0.0
    %2900 = vmatmul.mubr.f32.gmra.mrb[0].mxu0 %v2814
    %v2901 = vpop.f32.mrb[0].mxu0
    %v2902 = vadd.f32 %v2805, %v2901
    %v2903 = vpop.f32.mrb[0].mxu0
    %2904 = vmatprep.mubr.f32.mxu0 0.0
    %2905 = vmatmul.mubr.f32.gmra.mrb[0].mxu0 %v2817
    %v2906 = vpop.f32.mrb[0].mxu0
    %v2907 = vadd.f32 %v2805, %v2906
    %v2908 = vpop.f32.mrb[0].mxu0
    %2909 = vmatprep.mubr.f32.mxu0 0.0
    %2910 = vmatmul.mubr.f32.gmra.mrb[0].mxu0 %v2820
    %v2911 = vpop.f32.mrb[0].mxu0
    %v2912 = vadd.f32 %v2805, %v2911
    %v2913 = vpop.f32.mrb[0].mxu0
    %2914 = vmatprep.mubr.f32.mxu0 0.0
    %2915 = vmatmul.mubr.f32.gmra.mrb[0].mxu0 %v2823
    %v2916 = vpop.f32.mrb[0].mxu0
    %v2917 = vadd.f32 %v2805, %v2916
    %v2918 = vpop.f32.mrb[0].mxu0
    %2919 = vdwg.mxu0
    %s2920 = scalar_lea.vmem %s8, 32
    %v2921 = vld [vmem:[%s2920] sm:$0xff]
    %v2922 = vld [vmem:[%s2920 + $0x8] sm:$0xff]
    %v2923 = vld [vmem:[%s2920 + $0x10] sm:$0xff]
    %v2924 = vld [vmem:[%s2920 + $0x18] sm:$0xff]
    %2931 = vrot.lane.b32.xlu0 %v2892, 96
    %v2932 = vpop.permute.xlu0 %2931
    %2933 = vrot.lane.b32.xlu0 %v2897, 96
    %v2934 = vpop.permute.xlu0 %2933
    %2935 = vrot.lane.b32.xlu0 %v2902, 96
    %v2936 = vpop.permute.xlu0 %2935
    %2937 = vrot.lane.b32.xlu0 %v2907, 96
    %v2938 = vpop.permute.xlu0 %2937
    %2939 = vrot.lane.b32.xlu0 %v2912, 96
    %v2940 = vpop.permute.xlu0 %2939
    %2941 = vrot.lane.b32.xlu0 %v2917, 96
    %v2942 = vpop.permute.xlu0 %2941
    %v2943 = vsel %vm462, %v2892, 0
    %v2945 = vsel %vm462, %v2897, 0
    %v2947 = vsel %vm462, %v2902, 0
    %v2949 = vsel %vm462, %v2907, 0
    %v2951 = vsel %vm462, %v2912, 0
    %v2953 = vsel %vm462, %v2917, 0
    %v2955 = vsel %vm462, %v2932, 0
    %v2957 = vsel %vm462, %v2934, 0
    %v2959 = vsel %vm462, %v2936, 0
    %v2961 = vsel %vm462, %v2938, 0
    %v2963 = vsel %vm462, %v2940, 0
    %v2965 = vsel %vm462, %v2942, 0
    %2967 = vmatprep.subr.mxu0 0.0
    %2968 = vmatpush1.xpose.msra.mxu0 %v2955
    %2969 = vmatprep.subr.mxu0 0.0
    %2970 = vmatpush1.xpose.msra.mxu0 %v2957
    %2971 = vmatprep.subr.mxu0 0.0
    %2972 = vmatpush1.xpose.msra.mxu0 %v2959
    %2973 = vmatprep.subr.mxu0 0.0
    %2974 = vmatpush1.xpose.msra.mxu0 %v2961
    %2975 = vmatprep.subr.mxu0 0.0
    %2976 = vmatpush1.xpose.msra.mxu0 %v2963
    %2977 = vmatprep.subr.mxu0 0.0
    %2978 = vmatpush1.xpose.msra.mxu0 %v2965
    %2979 = vmatprep.subr.mxu0 0.0
    %2980 = vmatpush1.xpose.msra.mxu0 0.0
    %2981 = vmatprep.subr.mxu0 0.0
    %2982 = vmatpush1.xpose.msra.mxu0 0.0
    %2983 = vmatprep.subr.mxu0 0.0
    %2984 = vmatpush1.xpose.msra.mxu0 0.0
    %2985 = vmatprep.subr.mxu0 0.0
    %2986 = vmatpush1.xpose.msra.mxu0 0.0
    %2987 = vmatprep.subr.mxu0 0.0
    %2988 = vmatpush1.xpose.msra.mxu0 0.0
    %2989 = vmatprep.subr.mxu0 0.0
    %2990 = vmatpush1.xpose.msra.mxu0 0.0
    %2991 = vmatprep.subr.mxu0 0.0
    %2992 = vmatpush1.xpose.msra.mxu0 0.0
    %2993 = vmatprep.subr.mxu0 0.0
    %2994 = vmatpush1.xpose.msra.mxu0 0.0
    %2995 = vmatprep.subr.mxu0 0.0
    %2996 = vmatpush1.xpose.msra.mxu0 0.0
    %2997 = vmatprep.subr.mxu0 0.0
    %2998 = vmatpush1.xpose.msra.mxu0 0.0
    %2999 = vmatprep.subr.mxu0 0.0
    %3000 = vmatpush1.xpose.msra.mxu0 0.0
    %3001 = vmatprep.subr.mxu0 0.0
    %3002 = vmatpush1.xpose.msra.mxu0 0.0
    %3003 = vmatprep.subr.mxu0 0.0
    %3004 = vmatpush1.xpose.msra.mxu0 0.0
    %3005 = vmatprep.subr.mxu0 0.0
    %3006 = vmatpush1.xpose.msra.mxu0 0.0
    %3007 = vmatprep.subr.mxu0 0.0
    %3008 = vmatpush1.xpose.msra.mxu0 0.0
    %3009 = vmatprep.subr.mxu0 0.0
    %3010 = vmatpush1.xpose.msra.mxu0 0.0
    %3011 = vmatprep.subr.mxu0 0.0
    %3012 = vmatpush1.xpose.msra.mxu0 0.0
    %3013 = vmatprep.subr.mxu0 0.0
    %3014 = vmatpush1.xpose.msra.mxu0 0.0
    %3015 = vmatprep.subr.mxu0 0.0
    %3016 = vmatpush1.xpose.msra.mxu0 0.0
    %3017 = vmatprep.subr.mxu0 0.0
    %3018 = vmatpush1.xpose.msra.mxu0 0.0
    %3019 = vmatprep.subr.mxu0 0.0
    %3020 = vmatpush1.xpose.msra.mxu0 0.0
    %3021 = vmatprep.subr.mxu0 0.0
    %3022 = vmatpush1.xpose.msra.mxu0 0.0
    %3023 = vmatprep.subr.mxu0 0.0
    %3024 = vmatpush1.xpose.msra.mxu0 0.0
    %3025 = vmatprep.subr.mxu0 0.0
    %3026 = vmatpush1.xpose.msra.mxu0 0.0
    %3027 = vmatprep.subr.mxu0 0.0
    %3028 = vmatpush1.xpose.msra.mxu0 0.0
    %3029 = vmatprep.subr.mxu0 0.0
    %3030 = vmatpush1.xpose.msra.mxu0 0.0
    %3031 = vmatprep.mubr.f32.mxu0 0.0
    %3032 = vmatmul.mubr.f32.gmra.mrb[0].mxu0 %v2943
    %v3033 = vpop.f32.mrb[0].mxu0
    %v3034 = vadd.f32 %v204, %v3033
    %v3035 = vpop.f32.mrb[0].mxu0
    %3036 = vmatprep.mubr.f32.mxu0 0.0
    %3037 = vmatmul.mubr.f32.gmra.mrb[0].mxu0 %v2945
    %v3038 = vpop.f32.mrb[0].mxu0
    %v3039 = vadd.f32 %v205, %v3038
    %v3040 = vpop.f32.mrb[0].mxu0
    %3041 = vmatprep.mubr.f32.mxu0 0.0
    %3042 = vmatmul.mubr.f32.gmra.mrb[0].mxu0 %v2947
    %v3043 = vpop.f32.mrb[0].mxu0
    %v3044 = vadd.f32 %v206, %v3043
    %v3045 = vpop.f32.mrb[0].mxu0
    %3046 = vmatprep.mubr.f32.mxu0 0.0
    %3047 = vmatmul.mubr.f32.gmra.mrb[0].mxu0 %v2949
    %v3048 = vpop.f32.mrb[0].mxu0
    %v3049 = vadd.f32 %v207, %v3048
    %v3050 = vpop.f32.mrb[0].mxu0
    %3051 = vmatprep.mubr.f32.mxu0 0.0
    %3052 = vmatmul.mubr.f32.gmra.mrb[0].mxu0 %v2951
    %v3053 = vpop.f32.mrb[0].mxu0
    %v3054 = vadd.f32 %v208, %v3053
    %v3055 = vpop.f32.mrb[0].mxu0
    %3056 = vmatprep.mubr.f32.mxu0 0.0
    %3057 = vmatmul.mubr.f32.gmra.mrb[0].mxu0 %v2953
    %v3058 = vpop.f32.mrb[0].mxu0
    %v3059 = vadd.f32 %v209, %v3058
    %v3060 = vpop.f32.mrb[0].mxu0
    %3061 = vdwg.mxu0
    %v3062 = vsel %vm84, %v3034, -inf
    %3063 = vmax.xlane.f32.xlu0 %v3062
    %v3064 = vpop.xlane.xlu0 %3063
    %v3065 = vsel %vm84, %v3039, -inf
    %3066 = vmax.xlane.f32.xlu0 %v3065
    %v3067 = vpop.xlane.xlu0 %3066
    %v3068 = vsel %vm84, %v3044, -inf
    %3069 = vmax.xlane.f32.xlu0 %v3068
    %v3070 = vpop.xlane.xlu0 %3069
    %v3071 = vsel %vm84, %v3049, -inf
    %3072 = vmax.xlane.f32.xlu0 %v3071
    %v3073 = vpop.xlane.xlu0 %3072
    %v3074 = vsel %vm84, %v3054, -inf
    %3075 = vmax.xlane.f32.xlu0 %v3074
    %v3076 = vpop.xlane.xlu0 %3075
    %v3077 = vsel %vm84, %v3059, -inf
    %3078 = vmax.xlane.f32.xlu0 %v3077
    %v3079 = vpop.xlane.xlu0 %3078
    %v3080 = vsub.f32 %v3034, %v3064
    %v3081 = vsub.f32 %v3039, %v3067
    %v3082 = vsub.f32 %v3044, %v3070
    %v3083 = vsub.f32 %v3049, %v3073
    %v3084 = vsub.f32 %v3054, %v3076
    %v3085 = vsub.f32 %v3059, %v3079
    %v3086 = vmul.f32 %v3080, 1.442695
    %v3087 = vpow.pop %v3086
    %v3088 = vmul.f32 %v3081, 1.442695
    %v3089 = vpow.pop %v3088
    %v3090 = vmul.f32 %v3082, 1.442695
    %v3091 = vpow.pop %v3090
    %v3092 = vmul.f32 %v3083, 1.442695
    %v3093 = vpow.pop %v3092
    %v3094 = vmul.f32 %v3084, 1.442695
    %v3095 = vpow.pop %v3094
    %v3096 = vmul.f32 %v3085, 1.442695
    %v3097 = vpow.pop %v3096
    %v3098 = vsel %vm84, %v3087, 0.0
    %3099 = vadd.xlane.f32.xlu0 %v3098
    %v3100 = vpop.xlane.xlu0 %3099
    %v3101 = vsel %vm84, %v3089, 0.0
    %3102 = vadd.xlane.f32.xlu0 %v3101
    %v3103 = vpop.xlane.xlu0 %3102
    %v3104 = vsel %vm84, %v3091, 0.0
    %3105 = vadd.xlane.f32.xlu0 %v3104
    %v3106 = vpop.xlane.xlu0 %3105
    %v3107 = vsel %vm84, %v3093, 0.0
    %3108 = vadd.xlane.f32.xlu0 %v3107
    %v3109 = vpop.xlane.xlu0 %3108
    %v3110 = vsel %vm84, %v3095, 0.0
    %3111 = vadd.xlane.f32.xlu0 %v3110
    %v3112 = vpop.xlane.xlu0 %3111
    %v3113 = vsel %vm84, %v3097, 0.0
    %3114 = vadd.xlane.f32.xlu0 %v3113
    %v3115 = vpop.xlane.xlu0 %3114
    %v3116 = vrcp.pop %v3100
    %v3117 = vrcp.pop %v3103
    %v3118 = vrcp.pop %v3106
    %v3119 = vrcp.pop %v3109
    %v3120 = vrcp.pop %v3112
    %v3121 = vrcp.pop %v3115
    %v3122 = vmul.f32 %v3087, %v3116
    %v3123 = vmul.f32 %v3089, %v3117
    %v3124 = vmul.f32 %v3091, %v3118
    %v3125 = vmul.f32 %v3093, %v3119
    %v3126 = vmul.f32 %v3095, %v3120
    %v3127 = vmul.f32 %v3097, %v3121
    %3128 = vrot.lane.b32.xlu0 %v2892, 64
    %v3129 = vpop.permute.xlu0 %3128
    %3130 = vrot.lane.b32.xlu0 %v2897, 64
    %v3131 = vpop.permute.xlu0 %3130
    %3132 = vrot.lane.b32.xlu0 %v2902, 64
    %v3133 = vpop.permute.xlu0 %3132
    %3134 = vrot.lane.b32.xlu0 %v2907, 64
    %v3135 = vpop.permute.xlu0 %3134
    %3136 = vrot.lane.b32.xlu0 %v2912, 64
    %v3137 = vpop.permute.xlu0 %3136
    %3138 = vrot.lane.b32.xlu0 %v2917, 64
    %v3139 = vpop.permute.xlu0 %3138
    %v3147 = vsel %vm84, %v3122, 0
    %v3150 = vsel %vm84, %v3123, 0
    %v3153 = vsel %vm84, %v3124, 0
    %v3156 = vsel %vm84, %v3125, 0
    %v3159 = vsel %vm84, %v3126, 0
    %v3162 = vsel %vm84, %v3127, 0
    %3164 = vmatprep.subr.mxu0 0.0
    %3165 = vmatpush1.msra.mxu0 %v3129
    %3166 = vmatprep.subr.mxu0 0.0
    %3167 = vmatpush1.msra.mxu0 %v3131
    %3168 = vmatprep.subr.mxu0 0.0
    %3169 = vmatpush1.msra.mxu0 %v3133
    %3170 = vmatprep.subr.mxu0 0.0
    %3171 = vmatpush1.msra.mxu0 %v3135
    %3172 = vmatprep.subr.mxu0 0.0
    %3173 = vmatpush1.msra.mxu0 %v3137
    %3174 = vmatprep.subr.mxu0 0.0
    %3175 = vmatpush1.msra.mxu0 %v3139
    %3176 = vmatprep.subr.mxu0 0.0
    %3177 = vmatpush1.msra.mxu0 0.0
    %3178 = vmatprep.subr.mxu0 0.0
    %3179 = vmatpush1.msra.mxu0 0.0
    %3180 = vmatprep.subr.mxu0 0.0
    %3181 = vmatpush1.msra.mxu0 0.0
    %3182 = vmatprep.subr.mxu0 0.0
    %3183 = vmatpush1.msra.mxu0 0.0
    %3184 = vmatprep.subr.mxu0 0.0
    %3185 = vmatpush1.msra.mxu0 0.0
    %3186 = vmatprep.subr.mxu0 0.0
    %3187 = vmatpush1.msra.mxu0 0.0
    %3188 = vmatprep.subr.mxu0 0.0
    %3189 = vmatpush1.msra.mxu0 0.0
    %3190 = vmatprep.subr.mxu0 0.0
    %3191 = vmatpush1.msra.mxu0 0.0
    %3192 = vmatprep.subr.mxu0 0.0
    %3193 = vmatpush1.msra.mxu0 0.0
    %3194 = vmatprep.subr.mxu0 0.0
    %3195 = vmatpush1.msra.mxu0 0.0
    %3196 = vmatprep.subr.mxu0 0.0
    %3197 = vmatpush1.msra.mxu0 0.0
    %3198 = vmatprep.subr.mxu0 0.0
    %3199 = vmatpush1.msra.mxu0 0.0
    %3200 = vmatprep.subr.mxu0 0.0
    %3201 = vmatpush1.msra.mxu0 0.0
    %3202 = vmatprep.subr.mxu0 0.0
    %3203 = vmatpush1.msra.mxu0 0.0
    %3204 = vmatprep.subr.mxu0 0.0
    %3205 = vmatpush1.msra.mxu0 0.0
    %3206 = vmatprep.subr.mxu0 0.0
    %3207 = vmatpush1.msra.mxu0 0.0
    %3208 = vmatprep.subr.mxu0 0.0
    %3209 = vmatpush1.msra.mxu0 0.0
    %3210 = vmatprep.subr.mxu0 0.0
    %3211 = vmatpush1.msra.mxu0 0.0
    %3212 = vmatprep.subr.mxu0 0.0
    %3213 = vmatpush1.msra.mxu0 0.0
    %3214 = vmatprep.subr.mxu0 0.0
    %3215 = vmatpush1.msra.mxu0 0.0
    %3216 = vmatprep.subr.mxu0 0.0
    %3217 = vmatpush1.msra.mxu0 0.0
    %3218 = vmatprep.subr.mxu0 0.0
    %3219 = vmatpush1.msra.mxu0 0.0
    %3220 = vmatprep.subr.mxu0 0.0
    %3221 = vmatpush1.msra.mxu0 0.0
    %3222 = vmatprep.subr.mxu0 0.0
    %3223 = vmatpush1.msra.mxu0 0.0
    %3224 = vmatprep.subr.mxu0 0.0
    %3225 = vmatpush1.msra.mxu0 0.0
    %3226 = vmatprep.subr.mxu0 0.0
    %3227 = vmatpush1.msra.mxu0 0.0
    %3228 = vmatprep.mubr.f32.mxu0 0.0
    %3229 = vmatmul.mubr.f32.gmra.mrb[0].mxu0 %v3147
    %v3230 = vpop.f32.mrb[0].mxu0
    %v3231 = vadd.f32 0.0, %v3230
    %v3232 = vpop.f32.mrb[0].mxu0
    %3233 = vmatprep.mubr.f32.mxu0 0.0
    %3234 = vmatmul.mubr.f32.gmra.mrb[0].mxu0 %v3150
    %v3235 = vpop.f32.mrb[0].mxu0
    %v3236 = vadd.f32 0.0, %v3235
    %v3237 = vpop.f32.mrb[0].mxu0
    %3238 = vmatprep.mubr.f32.mxu0 0.0
    %3239 = vmatmul.mubr.f32.gmra.mrb[0].mxu0 %v3153
    %v3240 = vpop.f32.mrb[0].mxu0
    %v3241 = vadd.f32 0.0, %v3240
    %v3242 = vpop.f32.mrb[0].mxu0
    %3243 = vmatprep.mubr.f32.mxu0 0.0
    %3244 = vmatmul.mubr.f32.gmra.mrb[0].mxu0 %v3156
    %v3245 = vpop.f32.mrb[0].mxu0
    %v3246 = vadd.f32 0.0, %v3245
    %v3247 = vpop.f32.mrb[0].mxu0
    %3248 = vmatprep.mubr.f32.mxu0 0.0
    %3249 = vmatmul.mubr.f32.gmra.mrb[0].mxu0 %v3159
    %v3250 = vpop.f32.mrb[0].mxu0
    %v3251 = vadd.f32 0.0, %v3250
    %v3252 = vpop.f32.mrb[0].mxu0
    %3253 = vmatprep.mubr.f32.mxu0 0.0
    %3254 = vmatmul.mubr.f32.gmra.mrb[0].mxu0 %v3162
    %v3255 = vpop.f32.mrb[0].mxu0
    %v3256 = vadd.f32 0.0, %v3255
    %v3257 = vpop.f32.mrb[0].mxu0
    %3258 = vdwg.mxu0
    %3259 = vrot.lane.b32.xlu0 %v2892, 120
    %v3260 = vpop.permute.xlu0 %3259
    %3261 = vrot.lane.b32.xlu0 %v2897, 120
    %v3262 = vpop.permute.xlu0 %3261
    %3263 = vrot.lane.b32.xlu0 %v2902, 120
    %v3264 = vpop.permute.xlu0 %3263
    %3265 = vrot.lane.b32.xlu0 %v2907, 120
    %v3266 = vpop.permute.xlu0 %3265
    %3267 = vrot.lane.b32.xlu0 %v2912, 120
    %v3268 = vpop.permute.xlu0 %3267
    %3269 = vrot.lane.b32.xlu0 %v2917, 120
    %v3270 = vpop.permute.xlu0 %3269
    %3271 = vrot.lane.b32.xlu0 %v2892, 88
    %v3272 = vpop.permute.xlu0 %3271
    %3273 = vrot.lane.b32.xlu0 %v2897, 88
    %v3274 = vpop.permute.xlu0 %3273
    %3275 = vrot.lane.b32.xlu0 %v2902, 88
    %v3276 = vpop.permute.xlu0 %3275
    %3277 = vrot.lane.b32.xlu0 %v2907, 88
    %v3278 = vpop.permute.xlu0 %3277
    %3279 = vrot.lane.b32.xlu0 %v2912, 88
    %v3280 = vpop.permute.xlu0 %3279
    %3281 = vrot.lane.b32.xlu0 %v2917, 88
    %v3282 = vpop.permute.xlu0 %3281
    %v3283 = vsel %vm462, %v3260, 0
    %v3285 = vsel %vm462, %v3262, 0
    %v3287 = vsel %vm462, %v3264, 0
    %v3289 = vsel %vm462, %v3266, 0
    %v3291 = vsel %vm462, %v3268, 0
    %v3293 = vsel %vm462, %v3270, 0
    %v3295 = vsel %vm462, %v3272, 0
    %v3297 = vsel %vm462, %v3274, 0
    %v3299 = vsel %vm462, %v3276, 0
    %v3301 = vsel %vm462, %v3278, 0
    %v3303 = vsel %vm462, %v3280, 0
    %v3305 = vsel %vm462, %v3282, 0
    %3307 = vmatprep.subr.mxu0 0.0
    %3308 = vmatpush1.xpose.msra.mxu0 %v3295
    %3309 = vmatprep.subr.mxu0 0.0
    %3310 = vmatpush1.xpose.msra.mxu0 %v3297
    %3311 = vmatprep.subr.mxu0 0.0
    %3312 = vmatpush1.xpose.msra.mxu0 %v3299
    %3313 = vmatprep.subr.mxu0 0.0
    %3314 = vmatpush1.xpose.msra.mxu0 %v3301
    %3315 = vmatprep.subr.mxu0 0.0
    %3316 = vmatpush1.xpose.msra.mxu0 %v3303
    %3317 = vmatprep.subr.mxu0 0.0
    %3318 = vmatpush1.xpose.msra.mxu0 %v3305
    %3319 = vmatprep.subr.mxu0 0.0
    %3320 = vmatpush1.xpose.msra.mxu0 0.0
    %3321 = vmatprep.subr.mxu0 0.0
    %3322 = vmatpush1.xpose.msra.mxu0 0.0
    %3323 = vmatprep.subr.mxu0 0.0
    %3324 = vmatpush1.xpose.msra.mxu0 0.0
    %3325 = vmatprep.subr.mxu0 0.0
    %3326 = vmatpush1.xpose.msra.mxu0 0.0
    %3327 = vmatprep.subr.mxu0 0.0
    %3328 = vmatpush1.xpose.msra.mxu0 0.0
    %3329 = vmatprep.subr.mxu0 0.0
    %3330 = vmatpush1.xpose.msra.mxu0 0.0
    %3331 = vmatprep.subr.mxu0 0.0
    %3332 = vmatpush1.xpose.msra.mxu0 0.0
    %3333 = vmatprep.subr.mxu0 0.0
    %3334 = vmatpush1.xpose.msra.mxu0 0.0
    %3335 = vmatprep.subr.mxu0 0.0
    %3336 = vmatpush1.xpose.msra.mxu0 0.0
    %3337 = vmatprep.subr.mxu0 0.0
    %3338 = vmatpush1.xpose.msra.mxu0 0.0
    %3339 = vmatprep.subr.mxu0 0.0
    %3340 = vmatpush1.xpose.msra.mxu0 0.0
    %3341 = vmatprep.subr.mxu0 0.0
    %3342 = vmatpush1.xpose.msra.mxu0 0.0
    %3343 = vmatprep.subr.mxu0 0.0
    %3344 = vmatpush1.xpose.msra.mxu0 0.0
    %3345 = vmatprep.subr.mxu0 0.0
    %3346 = vmatpush1.xpose.msra.mxu0 0.0
    %3347 = vmatprep.subr.mxu0 0.0
    %3348 = vmatpush1.xpose.msra.mxu0 0.0
    %3349 = vmatprep.subr.mxu0 0.0
    %3350 = vmatpush1.xpose.msra.mxu0 0.0
    %3351 = vmatprep.subr.mxu0 0.0
    %3352 = vmatpush1.xpose.msra.mxu0 0.0
    %3353 = vmatprep.subr.mxu0 0.0
    %3354 = vmatpush1.xpose.msra.mxu0 0.0
    %3355 = vmatprep.subr.mxu0 0.0
    %3356 = vmatpush1.xpose.msra.mxu0 0.0
    %3357 = vmatprep.subr.mxu0 0.0
    %3358 = vmatpush1.xpose.msra.mxu0 0.0
    %3359 = vmatprep.subr.mxu0 0.0
    %3360 = vmatpush1.xpose.msra.mxu0 0.0
    %3361 = vmatprep.subr.mxu0 0.0
    %3362 = vmatpush1.xpose.msra.mxu0 0.0
    %3363 = vmatprep.subr.mxu0 0.0
    %3364 = vmatpush1.xpose.msra.mxu0 0.0
    %3365 = vmatprep.subr.mxu0 0.0
    %3366 = vmatpush1.xpose.msra.mxu0 0.0
    %3367 = vmatprep.subr.mxu0 0.0
    %3368 = vmatpush1.xpose.msra.mxu0 0.0
    %3369 = vmatprep.subr.mxu0 0.0
    %3370 = vmatpush1.xpose.msra.mxu0 0.0
    %3371 = vmatprep.mubr.f32.mxu0 0.0
    %3372 = vmatmul.mubr.f32.gmra.mrb[0].mxu0 %v3283
    %v3373 = vpop.f32.mrb[0].mxu0
    %v3374 = vadd.f32 %v204, %v3373
    %v3375 = vpop.f32.mrb[0].mxu0
    %3376 = vmatprep.mubr.f32.mxu0 0.0
    %3377 = vmatmul.mubr.f32.gmra.mrb[0].mxu0 %v3285
    %v3378 = vpop.f32.mrb[0].mxu0
    %v3379 = vadd.f32 %v205, %v3378
    %v3380 = vpop.f32.mrb[0].mxu0
    %3381 = vmatprep.mubr.f32.mxu0 0.0
    %3382 = vmatmul.mubr.f32.gmra.mrb[0].mxu0 %v3287
    %v3383 = vpop.f32.mrb[0].mxu0
    %v3384 = vadd.f32 %v206, %v3383
    %v3385 = vpop.f32.mrb[0].mxu0
    %3386 = vmatprep.mubr.f32.mxu0 0.0
    %3387 = vmatmul.mubr.f32.gmra.mrb[0].mxu0 %v3289
    %v3388 = vpop.f32.mrb[0].mxu0
    %v3389 = vadd.f32 %v207, %v3388
    %v3390 = vpop.f32.mrb[0].mxu0
    %3391 = vmatprep.mubr.f32.mxu0 0.0
    %3392 = vmatmul.mubr.f32.gmra.mrb[0].mxu0 %v3291
    %v3393 = vpop.f32.mrb[0].mxu0
    %v3394 = vadd.f32 %v208, %v3393
    %v3395 = vpop.f32.mrb[0].mxu0
    %3396 = vmatprep.mubr.f32.mxu0 0.0
    %3397 = vmatmul.mubr.f32.gmra.mrb[0].mxu0 %v3293
    %v3398 = vpop.f32.mrb[0].mxu0
    %v3399 = vadd.f32 %v209, %v3398
    %v3400 = vpop.f32.mrb[0].mxu0
    %3401 = vdwg.mxu0
    %v3402 = vsel %vm84, %v3374, -inf
    %3403 = vmax.xlane.f32.xlu0 %v3402
    %v3404 = vpop.xlane.xlu0 %3403
    %v3405 = vsel %vm84, %v3379, -inf
    %3406 = vmax.xlane.f32.xlu0 %v3405
    %v3407 = vpop.xlane.xlu0 %3406
    %v3408 = vsel %vm84, %v3384, -inf
    %3409 = vmax.xlane.f32.xlu0 %v3408
    %v3410 = vpop.xlane.xlu0 %3409
    %v3411 = vsel %vm84, %v3389, -inf
    %3412 = vmax.xlane.f32.xlu0 %v3411
    %v3413 = vpop.xlane.xlu0 %3412
    %v3414 = vsel %vm84, %v3394, -inf
    %3415 = vmax.xlane.f32.xlu0 %v3414
    %v3416 = vpop.xlane.xlu0 %3415
    %v3417 = vsel %vm84, %v3399, -inf
    %3418 = vmax.xlane.f32.xlu0 %v3417
    %v3419 = vpop.xlane.xlu0 %3418
    %v3420 = vsub.f32 %v3374, %v3404
    %v3421 = vsub.f32 %v3379, %v3407
    %v3422 = vsub.f32 %v3384, %v3410
    %v3423 = vsub.f32 %v3389, %v3413
    %v3424 = vsub.f32 %v3394, %v3416
    %v3425 = vsub.f32 %v3399, %v3419
    %v3426 = vmul.f32 %v3420, 1.442695
    %v3427 = vpow.pop %v3426
    %v3428 = vmul.f32 %v3421, 1.442695
    %v3429 = vpow.pop %v3428
    %v3430 = vmul.f32 %v3422, 1.442695
    %v3431 = vpow.pop %v3430
    %v3432 = vmul.f32 %v3423, 1.442695
    %v3433 = vpow.pop %v3432
    %v3434 = vmul.f32 %v3424, 1.442695
    %v3435 = vpow.pop %v3434
    %v3436 = vmul.f32 %v3425, 1.442695
    %v3437 = vpow.pop %v3436
    %v3438 = vsel %vm84, %v3427, 0.0
    %3439 = vadd.xlane.f32.xlu0 %v3438
    %v3440 = vpop.xlane.xlu0 %3439
    %v3441 = vsel %vm84, %v3429, 0.0
    %3442 = vadd.xlane.f32.xlu0 %v3441
    %v3443 = vpop.xlane.xlu0 %3442
    %v3444 = vsel %vm84, %v3431, 0.0
    %3445 = vadd.xlane.f32.xlu0 %v3444
    %v3446 = vpop.xlane.xlu0 %3445
    %v3447 = vsel %vm84, %v3433, 0.0
    %3448 = vadd.xlane.f32.xlu0 %v3447
    %v3449 = vpop.xlane.xlu0 %3448
    %v3450 = vsel %vm84, %v3435, 0.0
    %3451 = vadd.xlane.f32.xlu0 %v3450
    %v3452 = vpop.xlane.xlu0 %3451
    %v3453 = vsel %vm84, %v3437, 0.0
    %3454 = vadd.xlane.f32.xlu0 %v3453
    %v3455 = vpop.xlane.xlu0 %3454
    %v3456 = vrcp.pop %v3440
    %v3457 = vrcp.pop %v3443
    %v3458 = vrcp.pop %v3446
    %v3459 = vrcp.pop %v3449
    %v3460 = vrcp.pop %v3452
    %v3461 = vrcp.pop %v3455
    %v3462 = vmul.f32 %v3427, %v3456
    %v3463 = vmul.f32 %v3429, %v3457
    %v3464 = vmul.f32 %v3431, %v3458
    %v3465 = vmul.f32 %v3433, %v3459
    %v3466 = vmul.f32 %v3435, %v3460
    %v3467 = vmul.f32 %v3437, %v3461
    %3468 = vrot.lane.b32.xlu0 %v2892, 56
    %v3469 = vpop.permute.xlu0 %3468
    %3470 = vrot.lane.b32.xlu0 %v2897, 56
    %v3471 = vpop.permute.xlu0 %3470
    %3472 = vrot.lane.b32.xlu0 %v2902, 56
    %v3473 = vpop.permute.xlu0 %3472
    %3474 = vrot.lane.b32.xlu0 %v2907, 56
    %v3475 = vpop.permute.xlu0 %3474
    %3476 = vrot.lane.b32.xlu0 %v2912, 56
    %v3477 = vpop.permute.xlu0 %3476
    %3478 = vrot.lane.b32.xlu0 %v2917, 56
    %v3479 = vpop.permute.xlu0 %3478
    %v3487 = vsel %vm84, %v3462, 0
    %v3490 = vsel %vm84, %v3463, 0
    %v3493 = vsel %vm84, %v3464, 0
    %v3496 = vsel %vm84, %v3465, 0
    %v3499 = vsel %vm84, %v3466, 0
    %v3502 = vsel %vm84, %v3467, 0
    %3504 = vmatprep.subr.mxu0 0.0
    %3505 = vmatpush1.msra.mxu0 %v3469
    %3506 = vmatprep.subr.mxu0 0.0
    %3507 = vmatpush1.msra.mxu0 %v3471
    %3508 = vmatprep.subr.mxu0 0.0
    %3509 = vmatpush1.msra.mxu0 %v3473
    %3510 = vmatprep.subr.mxu0 0.0
    %3511 = vmatpush1.msra.mxu0 %v3475
    %3512 = vmatprep.subr.mxu0 0.0
    %3513 = vmatpush1.msra.mxu0 %v3477
    %3514 = vmatprep.subr.mxu0 0.0
    %3515 = vmatpush1.msra.mxu0 %v3479
    %3516 = vmatprep.subr.mxu0 0.0
    %3517 = vmatpush1.msra.mxu0 0.0
    %3518 = vmatprep.subr.mxu0 0.0
    %3519 = vmatpush1.msra.mxu0 0.0
    %3520 = vmatprep.subr.mxu0 0.0
    %3521 = vmatpush1.msra.mxu0 0.0
    %3522 = vmatprep.subr.mxu0 0.0
    %3523 = vmatpush1.msra.mxu0 0.0
    %3524 = vmatprep.subr.mxu0 0.0
    %3525 = vmatpush1.msra.mxu0 0.0
    %3526 = vmatprep.subr.mxu0 0.0
    %3527 = vmatpush1.msra.mxu0 0.0
    %3528 = vmatprep.subr.mxu0 0.0
    %3529 = vmatpush1.msra.mxu0 0.0
    %3530 = vmatprep.subr.mxu0 0.0
    %3531 = vmatpush1.msra.mxu0 0.0
    %3532 = vmatprep.subr.mxu0 0.0
    %3533 = vmatpush1.msra.mxu0 0.0
    %3534 = vmatprep.subr.mxu0 0.0
    %3535 = vmatpush1.msra.mxu0 0.0
    %3536 = vmatprep.subr.mxu0 0.0
    %3537 = vmatpush1.msra.mxu0 0.0
    %3538 = vmatprep.subr.mxu0 0.0
    %3539 = vmatpush1.msra.mxu0 0.0
    %3540 = vmatprep.subr.mxu0 0.0
    %3541 = vmatpush1.msra.mxu0 0.0
    %3542 = vmatprep.subr.mxu0 0.0
    %3543 = vmatpush1.msra.mxu0 0.0
    %3544 = vmatprep.subr.mxu0 0.0
    %3545 = vmatpush1.msra.mxu0 0.0
    %3546 = vmatprep.subr.mxu0 0.0
    %3547 = vmatpush1.msra.mxu0 0.0
    %3548 = vmatprep.subr.mxu0 0.0
    %3549 = vmatpush1.msra.mxu0 0.0
    %3550 = vmatprep.subr.mxu0 0.0
    %3551 = vmatpush1.msra.mxu0 0.0
    %3552 = vmatprep.subr.mxu0 0.0
    %3553 = vmatpush1.msra.mxu0 0.0
    %3554 = vmatprep.subr.mxu0 0.0
    %3555 = vmatpush1.msra.mxu0 0.0
    %3556 = vmatprep.subr.mxu0 0.0
    %3557 = vmatpush1.msra.mxu0 0.0
    %3558 = vmatprep.subr.mxu0 0.0
    %3559 = vmatpush1.msra.mxu0 0.0
    %3560 = vmatprep.subr.mxu0 0.0
    %3561 = vmatpush1.msra.mxu0 0.0
    %3562 = vmatprep.subr.mxu0 0.0
    %3563 = vmatpush1.msra.mxu0 0.0
    %3564 = vmatprep.subr.mxu0 0.0
    %3565 = vmatpush1.msra.mxu0 0.0
    %3566 = vmatprep.subr.mxu0 0.0
    %3567 = vmatpush1.msra.mxu0 0.0
    %3568 = vmatprep.mubr.f32.mxu0 0.0
    %3569 = vmatmul.mubr.f32.gmra.mrb[0].mxu0 %v3487
    %v3570 = vpop.f32.mrb[0].mxu0
    %v3571 = vadd.f32 0.0, %v3570
    %v3572 = vpop.f32.mrb[0].mxu0
    %3573 = vmatprep.mubr.f32.mxu0 0.0
    %3574 = vmatmul.mubr.f32.gmra.mrb[0].mxu0 %v3490
    %v3575 = vpop.f32.mrb[0].mxu0
    %v3576 = vadd.f32 0.0, %v3575
    %v3577 = vpop.f32.mrb[0].mxu0
    %3578 = vmatprep.mubr.f32.mxu0 0.0
    %3579 = vmatmul.mubr.f32.gmra.mrb[0].mxu0 %v3493
    %v3580 = vpop.f32.mrb[0].mxu0
    %v3581 = vadd.f32 0.0, %v3580
    %v3582 = vpop.f32.mrb[0].mxu0
    %3583 = vmatprep.mubr.f32.mxu0 0.0
    %3584 = vmatmul.mubr.f32.gmra.mrb[0].mxu0 %v3496
    %v3585 = vpop.f32.mrb[0].mxu0
    %v3586 = vadd.f32 0.0, %v3585
    %v3587 = vpop.f32.mrb[0].mxu0
    %3588 = vmatprep.mubr.f32.mxu0 0.0
    %3589 = vmatmul.mubr.f32.gmra.mrb[0].mxu0 %v3499
    %v3590 = vpop.f32.mrb[0].mxu0
    %v3591 = vadd.f32 0.0, %v3590
    %v3592 = vpop.f32.mrb[0].mxu0
    %3593 = vmatprep.mubr.f32.mxu0 0.0
    %3594 = vmatmul.mubr.f32.gmra.mrb[0].mxu0 %v3502
    %v3595 = vpop.f32.mrb[0].mxu0
    %v3596 = vadd.f32 0.0, %v3595
    %v3597 = vpop.f32.mrb[0].mxu0
    %3598 = vdwg.mxu0
    %v3600 = vsel %vm462, %v3571, 0
    %v3603 = vsel %vm462, %v3576, 0
    %v3606 = vsel %vm462, %v3581, 0
    %v3609 = vsel %vm462, %v3586, 0
    %v3612 = vsel %vm462, %v3591, 0
    %v3615 = vsel %vm462, %v3596, 0
    %3617 = vmatprep.subr.mxu0 0.0
    %3618 = vmatpush1.msra.mxu0 %v2922
    %3619 = vmatprep.subr.mxu0 0.0
    %3620 = vmatpush1.msra.mxu0 0.0
    %3621 = vmatprep.subr.mxu0 0.0
    %3622 = vmatpush1.msra.mxu0 0.0
    %3623 = vmatprep.subr.mxu0 0.0
    %3624 = vmatpush1.msra.mxu0 0.0
    %3625 = vmatprep.subr.mxu0 0.0
    %3626 = vmatpush1.msra.mxu0 0.0
    %3627 = vmatprep.subr.mxu0 0.0
    %3628 = vmatpush1.msra.mxu0 0.0
    %3629 = vmatprep.subr.mxu0 0.0
    %3630 = vmatpush1.msra.mxu0 0.0
    %3631 = vmatprep.subr.mxu0 0.0
    %3632 = vmatpush1.msra.mxu0 0.0
    %3633 = vmatprep.subr.mxu0 0.0
    %3634 = vmatpush1.msra.mxu0 0.0
    %3635 = vmatprep.subr.mxu0 0.0
    %3636 = vmatpush1.msra.mxu0 0.0
    %3637 = vmatprep.subr.mxu0 0.0
    %3638 = vmatpush1.msra.mxu0 0.0
    %3639 = vmatprep.subr.mxu0 0.0
    %3640 = vmatpush1.msra.mxu0 0.0
    %3641 = vmatprep.subr.mxu0 0.0
    %3642 = vmatpush1.msra.mxu0 0.0
    %3643 = vmatprep.subr.mxu0 0.0
    %3644 = vmatpush1.msra.mxu0 0.0
    %3645 = vmatprep.subr.mxu0 0.0
    %3646 = vmatpush1.msra.mxu0 0.0
    %3647 = vmatprep.subr.mxu0 0.0
    %3648 = vmatpush1.msra.mxu0 0.0
    %3649 = vmatprep.subr.mxu0 0.0
    %3650 = vmatpush1.msra.mxu0 0.0
    %3651 = vmatprep.subr.mxu0 0.0
    %3652 = vmatpush1.msra.mxu0 0.0
    %3653 = vmatprep.subr.mxu0 0.0
    %3654 = vmatpush1.msra.mxu0 0.0
    %3655 = vmatprep.subr.mxu0 0.0
    %3656 = vmatpush1.msra.mxu0 0.0
    %3657 = vmatprep.subr.mxu0 0.0
    %3658 = vmatpush1.msra.mxu0 0.0
    %3659 = vmatprep.subr.mxu0 0.0
    %3660 = vmatpush1.msra.mxu0 0.0
    %3661 = vmatprep.subr.mxu0 0.0
    %3662 = vmatpush1.msra.mxu0 0.0
    %3663 = vmatprep.subr.mxu0 0.0
    %3664 = vmatpush1.msra.mxu0 0.0
    %3665 = vmatprep.subr.mxu0 0.0
    %3666 = vmatpush1.msra.mxu0 0.0
    %3667 = vmatprep.subr.mxu0 0.0
    %3668 = vmatpush1.msra.mxu0 0.0
    %3669 = vmatprep.subr.mxu0 0.0
    %3670 = vmatpush1.msra.mxu0 0.0
    %3671 = vmatprep.subr.mxu0 0.0
    %3672 = vmatpush1.msra.mxu0 0.0
    %3673 = vmatprep.subr.mxu0 0.0
    %3674 = vmatpush1.msra.mxu0 0.0
    %3675 = vmatprep.subr.mxu0 0.0
    %3676 = vmatpush1.msra.mxu0 0.0
    %3677 = vmatprep.subr.mxu0 0.0
    %3678 = vmatpush1.msra.mxu0 0.0
    %3679 = vmatprep.subr.mxu0 0.0
    %3680 = vmatpush1.msra.mxu0 0.0
    %3681 = vmatprep.mubr.f32.mxu0 0.0
    %3682 = vmatmul.mubr.f32.gmra.mrb[0].mxu0 %v3600
    %v3683 = vpop.f32.mrb[0].mxu0
    %v3684 = vadd.f32 0.0, %v3683
    %v3685 = vpop.f32.mrb[0].mxu0
    %3686 = vmatprep.mubr.f32.mxu0 0.0
    %3687 = vmatmul.mubr.f32.gmra.mrb[0].mxu0 %v3603
    %v3688 = vpop.f32.mrb[0].mxu0
    %v3689 = vadd.f32 0.0, %v3688
    %v3690 = vpop.f32.mrb[0].mxu0
    %3691 = vmatprep.mubr.f32.mxu0 0.0
    %3692 = vmatmul.mubr.f32.gmra.mrb[0].mxu0 %v3606
    %v3693 = vpop.f32.mrb[0].mxu0
    %v3694 = vadd.f32 0.0, %v3693
    %v3695 = vpop.f32.mrb[0].mxu0
    %3696 = vmatprep.mubr.f32.mxu0 0.0
    %3697 = vmatmul.mubr.f32.gmra.mrb[0].mxu0 %v3609
    %v3698 = vpop.f32.mrb[0].mxu0
    %v3699 = vadd.f32 0.0, %v3698
    %v3700 = vpop.f32.mrb[0].mxu0
    %3701 = vmatprep.mubr.f32.mxu0 0.0
    %3702 = vmatmul.mubr.f32.gmra.mrb[0].mxu0 %v3612
    %v3703 = vpop.f32.mrb[0].mxu0
    %v3704 = vadd.f32 0.0, %v3703
    %v3705 = vpop.f32.mrb[0].mxu0
    %3706 = vmatprep.mubr.f32.mxu0 0.0
    %3707 = vmatmul.mubr.f32.gmra.mrb[0].mxu0 %v3615
    %v3708 = vpop.f32.mrb[0].mxu0
    %v3709 = vadd.f32 0.0, %v3708
    %v3710 = vpop.f32.mrb[0].mxu0
    %3711 = vdwg.mxu0
    %v3713 = vsel %vm462, %v3231, 0
    %v3716 = vsel %vm462, %v3236, 0
    %v3719 = vsel %vm462, %v3241, 0
    %v3722 = vsel %vm462, %v3246, 0
    %v3725 = vsel %vm462, %v3251, 0
    %v3728 = vsel %vm462, %v3256, 0
    %3730 = vmatprep.subr.mxu0 0.0
    %3731 = vmatpush1.msra.mxu0 %v2921
    %3732 = vmatprep.subr.mxu0 0.0
    %3733 = vmatpush1.msra.mxu0 0.0
    %3734 = vmatprep.subr.mxu0 0.0
    %3735 = vmatpush1.msra.mxu0 0.0
    %3736 = vmatprep.subr.mxu0 0.0
    %3737 = vmatpush1.msra.mxu0 0.0
    %3738 = vmatprep.subr.mxu0 0.0
    %3739 = vmatpush1.msra.mxu0 0.0
    %3740 = vmatprep.subr.mxu0 0.0
    %3741 = vmatpush1.msra.mxu0 0.0
    %3742 = vmatprep.subr.mxu0 0.0
    %3743 = vmatpush1.msra.mxu0 0.0
    %3744 = vmatprep.subr.mxu0 0.0
    %3745 = vmatpush1.msra.mxu0 0.0
    %3746 = vmatprep.subr.mxu0 0.0
    %3747 = vmatpush1.msra.mxu0 0.0
    %3748 = vmatprep.subr.mxu0 0.0
    %3749 = vmatpush1.msra.mxu0 0.0
    %3750 = vmatprep.subr.mxu0 0.0
    %3751 = vmatpush1.msra.mxu0 0.0
    %3752 = vmatprep.subr.mxu0 0.0
    %3753 = vmatpush1.msra.mxu0 0.0
    %3754 = vmatprep.subr.mxu0 0.0
    %3755 = vmatpush1.msra.mxu0 0.0
    %3756 = vmatprep.subr.mxu0 0.0
    %3757 = vmatpush1.msra.mxu0 0.0
    %3758 = vmatprep.subr.mxu0 0.0
    %3759 = vmatpush1.msra.mxu0 0.0
    %3760 = vmatprep.subr.mxu0 0.0
    %3761 = vmatpush1.msra.mxu0 0.0
    %3762 = vmatprep.subr.mxu0 0.0
    %3763 = vmatpush1.msra.mxu0 0.0
    %3764 = vmatprep.subr.mxu0 0.0
    %3765 = vmatpush1.msra.mxu0 0.0
    %3766 = vmatprep.subr.mxu0 0.0
    %3767 = vmatpush1.msra.mxu0 0.0
    %3768 = vmatprep.subr.mxu0 0.0
    %3769 = vmatpush1.msra.mxu0 0.0
    %3770 = vmatprep.subr.mxu0 0.0
    %3771 = vmatpush1.msra.mxu0 0.0
    %3772 = vmatprep.subr.mxu0 0.0
    %3773 = vmatpush1.msra.mxu0 0.0
    %3774 = vmatprep.subr.mxu0 0.0
    %3775 = vmatpush1.msra.mxu0 0.0
    %3776 = vmatprep.subr.mxu0 0.0
    %3777 = vmatpush1.msra.mxu0 0.0
    %3778 = vmatprep.subr.mxu0 0.0
    %3779 = vmatpush1.msra.mxu0 0.0
    %3780 = vmatprep.subr.mxu0 0.0
    %3781 = vmatpush1.msra.mxu0 0.0
    %3782 = vmatprep.subr.mxu0 0.0
    %3783 = vmatpush1.msra.mxu0 0.0
    %3784 = vmatprep.subr.mxu0 0.0
    %3785 = vmatpush1.msra.mxu0 0.0
    %3786 = vmatprep.subr.mxu0 0.0
    %3787 = vmatpush1.msra.mxu0 0.0
    %3788 = vmatprep.subr.mxu0 0.0
    %3789 = vmatpush1.msra.mxu0 0.0
    %3790 = vmatprep.subr.mxu0 0.0
    %3791 = vmatpush1.msra.mxu0 0.0
    %3792 = vmatprep.subr.mxu0 0.0
    %3793 = vmatpush1.msra.mxu0 0.0
    %3794 = vmatprep.mubr.f32.mxu0 0.0
    %3795 = vmatmul.mubr.f32.gmra.mrb[0].mxu0 %v3713
    %v3796 = vpop.f32.mrb[0].mxu0
    %v3797 = vadd.f32 %v3684, %v3796
    %v3798 = vpop.f32.mrb[0].mxu0
    %3799 = vmatprep.mubr.f32.mxu0 0.0
    %3800 = vmatmul.mubr.f32.gmra.mrb[0].mxu0 %v3716
    %v3801 = vpop.f32.mrb[0].mxu0
    %v3802 = vadd.f32 %v3689, %v3801
    %v3803 = vpop.f32.mrb[0].mxu0
    %3804 = vmatprep.mubr.f32.mxu0 0.0
    %3805 = vmatmul.mubr.f32.gmra.mrb[0].mxu0 %v3719
    %v3806 = vpop.f32.mrb[0].mxu0
    %v3807 = vadd.f32 %v3694, %v3806
    %v3808 = vpop.f32.mrb[0].mxu0
    %3809 = vmatprep.mubr.f32.mxu0 0.0
    %3810 = vmatmul.mubr.f32.gmra.mrb[0].mxu0 %v3722
    %v3811 = vpop.f32.mrb[0].mxu0
    %v3812 = vadd.f32 %v3699, %v3811
    %v3813 = vpop.f32.mrb[0].mxu0
    %3814 = vmatprep.mubr.f32.mxu0 0.0
    %3815 = vmatmul.mubr.f32.gmra.mrb[0].mxu0 %v3725
    %v3816 = vpop.f32.mrb[0].mxu0
    %v3817 = vadd.f32 %v3704, %v3816
    %v3818 = vpop.f32.mrb[0].mxu0
    %3819 = vmatprep.mubr.f32.mxu0 0.0
    %3820 = vmatmul.mubr.f32.gmra.mrb[0].mxu0 %v3728
    %v3821 = vpop.f32.mrb[0].mxu0
    %v3822 = vadd.f32 %v3709, %v3821
    %v3823 = vpop.f32.mrb[0].mxu0
    %3824 = vdwg.mxu0
    %3825 = vrot.lane.b32.xlu0 %v2892, 112
    %v3826 = vpop.permute.xlu0 %3825
    %3827 = vrot.lane.b32.xlu0 %v2897, 112
    %v3828 = vpop.permute.xlu0 %3827
    %3829 = vrot.lane.b32.xlu0 %v2902, 112
    %v3830 = vpop.permute.xlu0 %3829
    %3831 = vrot.lane.b32.xlu0 %v2907, 112
    %v3832 = vpop.permute.xlu0 %3831
    %3833 = vrot.lane.b32.xlu0 %v2912, 112
    %v3834 = vpop.permute.xlu0 %3833
    %3835 = vrot.lane.b32.xlu0 %v2917, 112
    %v3836 = vpop.permute.xlu0 %3835
    %3837 = vrot.lane.b32.xlu0 %v2892, 80
    %v3838 = vpop.permute.xlu0 %3837
    %3839 = vrot.lane.b32.xlu0 %v2897, 80
    %v3840 = vpop.permute.xlu0 %3839
    %3841 = vrot.lane.b32.xlu0 %v2902, 80
    %v3842 = vpop.permute.xlu0 %3841
    %3843 = vrot.lane.b32.xlu0 %v2907, 80
    %v3844 = vpop.permute.xlu0 %3843
    %3845 = vrot.lane.b32.xlu0 %v2912, 80
    %v3846 = vpop.permute.xlu0 %3845
    %3847 = vrot.lane.b32.xlu0 %v2917, 80
    %v3848 = vpop.permute.xlu0 %3847
    %v3849 = vsel %vm462, %v3826, 0
    %v3851 = vsel %vm462, %v3828, 0
    %v3853 = vsel %vm462, %v3830, 0
    %v3855 = vsel %vm462, %v3832, 0
    %v3857 = vsel %vm462, %v3834, 0
    %v3859 = vsel %vm462, %v3836, 0
    %v3861 = vsel %vm462, %v3838, 0
    %v3863 = vsel %vm462, %v3840, 0
    %v3865 = vsel %vm462, %v3842, 0
    %v3867 = vsel %vm462, %v3844, 0
    %v3869 = vsel %vm462, %v3846, 0
    %v3871 = vsel %vm462, %v3848, 0
    %3873 = vmatprep.subr.mxu0 0.0
    %3874 = vmatpush1.xpose.msra.mxu0 %v3861
    %3875 = vmatprep.subr.mxu0 0.0
    %3876 = vmatpush1.xpose.msra.mxu0 %v3863
    %3877 = vmatprep.subr.mxu0 0.0
    %3878 = vmatpush1.xpose.msra.mxu0 %v3865
    %3879 = vmatprep.subr.mxu0 0.0
    %3880 = vmatpush1.xpose.msra.mxu0 %v3867
    %3881 = vmatprep.subr.mxu0 0.0
    %3882 = vmatpush1.xpose.msra.mxu0 %v3869
    %3883 = vmatprep.subr.mxu0 0.0
    %3884 = vmatpush1.xpose.msra.mxu0 %v3871
    %3885 = vmatprep.subr.mxu0 0.0
    %3886 = vmatpush1.xpose.msra.mxu0 0.0
    %3887 = vmatprep.subr.mxu0 0.0
    %3888 = vmatpush1.xpose.msra.mxu0 0.0
    %3889 = vmatprep.subr.mxu0 0.0
    %3890 = vmatpush1.xpose.msra.mxu0 0.0
    %3891 = vmatprep.subr.mxu0 0.0
    %3892 = vmatpush1.xpose.msra.mxu0 0.0
    %3893 = vmatprep.subr.mxu0 0.0
    %3894 = vmatpush1.xpose.msra.mxu0 0.0
    %3895 = vmatprep.subr.mxu0 0.0
    %3896 = vmatpush1.xpose.msra.mxu0 0.0
    %3897 = vmatprep.subr.mxu0 0.0
    %3898 = vmatpush1.xpose.msra.mxu0 0.0
    %3899 = vmatprep.subr.mxu0 0.0
    %3900 = vmatpush1.xpose.msra.mxu0 0.0
    %3901 = vmatprep.subr.mxu0 0.0
    %3902 = vmatpush1.xpose.msra.mxu0 0.0
    %3903 = vmatprep.subr.mxu0 0.0
    %3904 = vmatpush1.xpose.msra.mxu0 0.0
    %3905 = vmatprep.subr.mxu0 0.0
    %3906 = vmatpush1.xpose.msra.mxu0 0.0
    %3907 = vmatprep.subr.mxu0 0.0
    %3908 = vmatpush1.xpose.msra.mxu0 0.0
    %3909 = vmatprep.subr.mxu0 0.0
    %3910 = vmatpush1.xpose.msra.mxu0 0.0
    %3911 = vmatprep.subr.mxu0 0.0
    %3912 = vmatpush1.xpose.msra.mxu0 0.0
    %3913 = vmatprep.subr.mxu0 0.0
    %3914 = vmatpush1.xpose.msra.mxu0 0.0
    %3915 = vmatprep.subr.mxu0 0.0
    %3916 = vmatpush1.xpose.msra.mxu0 0.0
    %3917 = vmatprep.subr.mxu0 0.0
    %3918 = vmatpush1.xpose.msra.mxu0 0.0
    %3919 = vmatprep.subr.mxu0 0.0
    %3920 = vmatpush1.xpose.msra.mxu0 0.0
    %3921 = vmatprep.subr.mxu0 0.0
    %3922 = vmatpush1.xpose.msra.mxu0 0.0
    %3923 = vmatprep.subr.mxu0 0.0
    %3924 = vmatpush1.xpose.msra.mxu0 0.0
    %3925 = vmatprep.subr.mxu0 0.0
    %3926 = vmatpush1.xpose.msra.mxu0 0.0
    %3927 = vmatprep.subr.mxu0 0.0
    %3928 = vmatpush1.xpose.msra.mxu0 0.0
    %3929 = vmatprep.subr.mxu0 0.0
    %3930 = vmatpush1.xpose.msra.mxu0 0.0
    %3931 = vmatprep.subr.mxu0 0.0
    %3932 = vmatpush1.xpose.msra.mxu0 0.0
    %3933 = vmatprep.subr.mxu0 0.0
    %3934 = vmatpush1.xpose.msra.mxu0 0.0
    %3935 = vmatprep.subr.mxu0 0.0
    %3936 = vmatpush1.xpose.msra.mxu0 0.0
    %3937 = vmatprep.mubr.f32.mxu0 0.0
    %3938 = vmatmul.mubr.f32.gmra.mrb[0].mxu0 %v3849
    %v3939 = vpop.f32.mrb[0].mxu0
    %v3940 = vadd.f32 %v204, %v3939
    %v3941 = vpop.f32.mrb[0].mxu0
    %3942 = vmatprep.mubr.f32.mxu0 0.0
    %3943 = vmatmul.mubr.f32.gmra.mrb[0].mxu0 %v3851
    %v3944 = vpop.f32.mrb[0].mxu0
    %v3945 = vadd.f32 %v205, %v3944
    %v3946 = vpop.f32.mrb[0].mxu0
    %3947 = vmatprep.mubr.f32.mxu0 0.0
    %3948 = vmatmul.mubr.f32.gmra.mrb[0].mxu0 %v3853
    %v3949 = vpop.f32.mrb[0].mxu0
    %v3950 = vadd.f32 %v206, %v3949
    %v3951 = vpop.f32.mrb[0].mxu0
    %3952 = vmatprep.mubr.f32.mxu0 0.0
    %3953 = vmatmul.mubr.f32.gmra.mrb[0].mxu0 %v3855
    %v3954 = vpop.f32.mrb[0].mxu0
    %v3955 = vadd.f32 %v207, %v3954
    %v3956 = vpop.f32.mrb[0].mxu0
    %3957 = vmatprep.mubr.f32.mxu0 0.0
    %3958 = vmatmul.mubr.f32.gmra.mrb[0].mxu0 %v3857
    %v3959 = vpop.f32.mrb[0].mxu0
    %v3960 = vadd.f32 %v208, %v3959
    %v3961 = vpop.f32.mrb[0].mxu0
    %3962 = vmatprep.mubr.f32.mxu0 0.0
    %3963 = vmatmul.mubr.f32.gmra.mrb[0].mxu0 %v3859
    %v3964 = vpop.f32.mrb[0].mxu0
    %v3965 = vadd.f32 %v209, %v3964
    %v3966 = vpop.f32.mrb[0].mxu0
    %3967 = vdwg.mxu0
    %v3968 = vsel %vm84, %v3940, -inf
    %3969 = vmax.xlane.f32.xlu0 %v3968
    %v3970 = vpop.xlane.xlu0 %3969
    %v3971 = vsel %vm84, %v3945, -inf
    %3972 = vmax.xlane.f32.xlu0 %v3971
    %v3973 = vpop.xlane.xlu0 %3972
    %v3974 = vsel %vm84, %v3950, -inf
    %3975 = vmax.xlane.f32.xlu0 %v3974
    %v3976 = vpop.xlane.xlu0 %3975
    %v3977 = vsel %vm84, %v3955, -inf
    %3978 = vmax.xlane.f32.xlu0 %v3977
    %v3979 = vpop.xlane.xlu0 %3978
    %v3980 = vsel %vm84, %v3960, -inf
    %3981 = vmax.xlane.f32.xlu0 %v3980
    %v3982 = vpop.xlane.xlu0 %3981
    %v3983 = vsel %vm84, %v3965, -inf
    %3984 = vmax.xlane.f32.xlu0 %v3983
    %v3985 = vpop.xlane.xlu0 %3984
    %v3986 = vsub.f32 %v3940, %v3970
    %v3987 = vsub.f32 %v3945, %v3973
    %v3988 = vsub.f32 %v3950, %v3976
    %v3989 = vsub.f32 %v3955, %v3979
    %v3990 = vsub.f32 %v3960, %v3982
    %v3991 = vsub.f32 %v3965, %v3985
    %v3992 = vmul.f32 %v3986, 1.442695
    %v3993 = vpow.pop %v3992
    %v3994 = vmul.f32 %v3987, 1.442695
    %v3995 = vpow.pop %v3994
    %v3996 = vmul.f32 %v3988, 1.442695
    %v3997 = vpow.pop %v3996
    %v3998 = vmul.f32 %v3989, 1.442695
    %v3999 = vpow.pop %v3998
    %v4000 = vmul.f32 %v3990, 1.442695
    %v4001 = vpow.pop %v4000
    %v4002 = vmul.f32 %v3991, 1.442695
    %v4003 = vpow.pop %v4002
    %v4004 = vsel %vm84, %v3993, 0.0
    %4005 = vadd.xlane.f32.xlu0 %v4004
    %v4006 = vpop.xlane.xlu0 %4005
    %v4007 = vsel %vm84, %v3995, 0.0
    %4008 = vadd.xlane.f32.xlu0 %v4007
    %v4009 = vpop.xlane.xlu0 %4008
    %v4010 = vsel %vm84, %v3997, 0.0
    %4011 = vadd.xlane.f32.xlu0 %v4010
    %v4012 = vpop.xlane.xlu0 %4011
    %v4013 = vsel %vm84, %v3999, 0.0
    %4014 = vadd.xlane.f32.xlu0 %v4013
    %v4015 = vpop.xlane.xlu0 %4014
    %v4016 = vsel %vm84, %v4001, 0.0
    %4017 = vadd.xlane.f32.xlu0 %v4016
    %v4018 = vpop.xlane.xlu0 %4017
    %v4019 = vsel %vm84, %v4003, 0.0
    %4020 = vadd.xlane.f32.xlu0 %v4019
    %v4021 = vpop.xlane.xlu0 %4020
    %v4022 = vrcp.pop %v4006
    %v4023 = vrcp.pop %v4009
    %v4024 = vrcp.pop %v4012
    %v4025 = vrcp.pop %v4015
    %v4026 = vrcp.pop %v4018
    %v4027 = vrcp.pop %v4021
    %v4028 = vmul.f32 %v3993, %v4022
    %v4029 = vmul.f32 %v3995, %v4023
    %v4030 = vmul.f32 %v3997, %v4024
    %v4031 = vmul.f32 %v3999, %v4025
    %v4032 = vmul.f32 %v4001, %v4026
    %v4033 = vmul.f32 %v4003, %v4027
    %4034 = vrot.lane.b32.xlu0 %v2892, 48
    %v4035 = vpop.permute.xlu0 %4034
    %4036 = vrot.lane.b32.xlu0 %v2897, 48
    %v4037 = vpop.permute.xlu0 %4036
    %4038 = vrot.lane.b32.xlu0 %v2902, 48
    %v4039 = vpop.permute.xlu0 %4038
    %4040 = vrot.lane.b32.xlu0 %v2907, 48
    %v4041 = vpop.permute.xlu0 %4040
    %4042 = vrot.lane.b32.xlu0 %v2912, 48
    %v4043 = vpop.permute.xlu0 %4042
    %4044 = vrot.lane.b32.xlu0 %v2917, 48
    %v4045 = vpop.permute.xlu0 %4044
    %v4053 = vsel %vm84, %v4028, 0
    %v4056 = vsel %vm84, %v4029, 0
    %v4059 = vsel %vm84, %v4030, 0
    %v4062 = vsel %vm84, %v4031, 0
    %v4065 = vsel %vm84, %v4032, 0
    %v4068 = vsel %vm84, %v4033, 0
    %4070 = vmatprep.subr.mxu0 0.0
    %4071 = vmatpush1.msra.mxu0 %v4035
    %4072 = vmatprep.subr.mxu0 0.0
    %4073 = vmatpush1.msra.mxu0 %v4037
    %4074 = vmatprep.subr.mxu0 0.0
    %4075 = vmatpush1.msra.mxu0 %v4039
    %4076 = vmatprep.subr.mxu0 0.0
    %4077 = vmatpush1.msra.mxu0 %v4041
    %4078 = vmatprep.subr.mxu0 0.0
    %4079 = vmatpush1.msra.mxu0 %v4043
    %4080 = vmatprep.subr.mxu0 0.0
    %4081 = vmatpush1.msra.mxu0 %v4045
    %4082 = vmatprep.subr.mxu0 0.0
    %4083 = vmatpush1.msra.mxu0 0.0
    %4084 = vmatprep.subr.mxu0 0.0
    %4085 = vmatpush1.msra.mxu0 0.0
    %4086 = vmatprep.subr.mxu0 0.0
    %4087 = vmatpush1.msra.mxu0 0.0
    %4088 = vmatprep.subr.mxu0 0.0
    %4089 = vmatpush1.msra.mxu0 0.0
    %4090 = vmatprep.subr.mxu0 0.0
    %4091 = vmatpush1.msra.mxu0 0.0
    %4092 = vmatprep.subr.mxu0 0.0
    %4093 = vmatpush1.msra.mxu0 0.0
    %4094 = vmatprep.subr.mxu0 0.0
    %4095 = vmatpush1.msra.mxu0 0.0
    %4096 = vmatprep.subr.mxu0 0.0
    %4097 = vmatpush1.msra.mxu0 0.0
    %4098 = vmatprep.subr.mxu0 0.0
    %4099 = vmatpush1.msra.mxu0 0.0
    %4100 = vmatprep.subr.mxu0 0.0
    %4101 = vmatpush1.msra.mxu0 0.0
    %4102 = vmatprep.subr.mxu0 0.0
    %4103 = vmatpush1.msra.mxu0 0.0
    %4104 = vmatprep.subr.mxu0 0.0
    %4105 = vmatpush1.msra.mxu0 0.0
    %4106 = vmatprep.subr.mxu0 0.0
    %4107 = vmatpush1.msra.mxu0 0.0
    %4108 = vmatprep.subr.mxu0 0.0
    %4109 = vmatpush1.msra.mxu0 0.0
    %4110 = vmatprep.subr.mxu0 0.0
    %4111 = vmatpush1.msra.mxu0 0.0
    %4112 = vmatprep.subr.mxu0 0.0
    %4113 = vmatpush1.msra.mxu0 0.0
    %4114 = vmatprep.subr.mxu0 0.0
    %4115 = vmatpush1.msra.mxu0 0.0
    %4116 = vmatprep.subr.mxu0 0.0
    %4117 = vmatpush1.msra.mxu0 0.0
    %4118 = vmatprep.subr.mxu0 0.0
    %4119 = vmatpush1.msra.mxu0 0.0
    %4120 = vmatprep.subr.mxu0 0.0
    %4121 = vmatpush1.msra.mxu0 0.0
    %4122 = vmatprep.subr.mxu0 0.0
    %4123 = vmatpush1.msra.mxu0 0.0
    %4124 = vmatprep.subr.mxu0 0.0
    %4125 = vmatpush1.msra.mxu0 0.0
    %4126 = vmatprep.subr.mxu0 0.0
    %4127 = vmatpush1.msra.mxu0 0.0
    %4128 = vmatprep.subr.mxu0 0.0
    %4129 = vmatpush1.msra.mxu0 0.0
    %4130 = vmatprep.subr.mxu0 0.0
    %4131 = vmatpush1.msra.mxu0 0.0
    %4132 = vmatprep.subr.mxu0 0.0
    %4133 = vmatpush1.msra.mxu0 0.0
    %4134 = vmatprep.mubr.f32.mxu0 0.0
    %4135 = vmatmul.mubr.f32.gmra.mrb[0].mxu0 %v4053
    %v4136 = vpop.f32.mrb[0].mxu0
    %v4137 = vadd.f32 0.0, %v4136
    %v4138 = vpop.f32.mrb[0].mxu0
    %4139 = vmatprep.mubr.f32.mxu0 0.0
    %4140 = vmatmul.mubr.f32.gmra.mrb[0].mxu0 %v4056
    %v4141 = vpop.f32.mrb[0].mxu0
    %v4142 = vadd.f32 0.0, %v4141
    %v4143 = vpop.f32.mrb[0].mxu0
    %4144 = vmatprep.mubr.f32.mxu0 0.0
    %4145 = vmatmul.mubr.f32.gmra.mrb[0].mxu0 %v4059
    %v4146 = vpop.f32.mrb[0].mxu0
    %v4147 = vadd.f32 0.0, %v4146
    %v4148 = vpop.f32.mrb[0].mxu0
    %4149 = vmatprep.mubr.f32.mxu0 0.0
    %4150 = vmatmul.mubr.f32.gmra.mrb[0].mxu0 %v4062
    %v4151 = vpop.f32.mrb[0].mxu0
    %v4152 = vadd.f32 0.0, %v4151
    %v4153 = vpop.f32.mrb[0].mxu0
    %4154 = vmatprep.mubr.f32.mxu0 0.0
    %4155 = vmatmul.mubr.f32.gmra.mrb[0].mxu0 %v4065
    %v4156 = vpop.f32.mrb[0].mxu0
    %v4157 = vadd.f32 0.0, %v4156
    %v4158 = vpop.f32.mrb[0].mxu0
    %4159 = vmatprep.mubr.f32.mxu0 0.0
    %4160 = vmatmul.mubr.f32.gmra.mrb[0].mxu0 %v4068
    %v4161 = vpop.f32.mrb[0].mxu0
    %v4162 = vadd.f32 0.0, %v4161
    %v4163 = vpop.f32.mrb[0].mxu0
    %4164 = vdwg.mxu0
    %v4166 = vsel %vm462, %v4137, 0
    %v4169 = vsel %vm462, %v4142, 0
    %v4172 = vsel %vm462, %v4147, 0
    %v4175 = vsel %vm462, %v4152, 0
    %v4178 = vsel %vm462, %v4157, 0
    %v4181 = vsel %vm462, %v4162, 0
    %4183 = vmatprep.subr.mxu0 0.0
    %4184 = vmatpush1.msra.mxu0 %v2923
    %4185 = vmatprep.subr.mxu0 0.0
    %4186 = vmatpush1.msra.mxu0 0.0
    %4187 = vmatprep.subr.mxu0 0.0
    %4188 = vmatpush1.msra.mxu0 0.0
    %4189 = vmatprep.subr.mxu0 0.0
    %4190 = vmatpush1.msra.mxu0 0.0
    %4191 = vmatprep.subr.mxu0 0.0
    %4192 = vmatpush1.msra.mxu0 0.0
    %4193 = vmatprep.subr.mxu0 0.0
    %4194 = vmatpush1.msra.mxu0 0.0
    %4195 = vmatprep.subr.mxu0 0.0
    %4196 = vmatpush1.msra.mxu0 0.0
    %4197 = vmatprep.subr.mxu0 0.0
    %4198 = vmatpush1.msra.mxu0 0.0
    %4199 = vmatprep.subr.mxu0 0.0
    %4200 = vmatpush1.msra.mxu0 0.0
    %4201 = vmatprep.subr.mxu0 0.0
    %4202 = vmatpush1.msra.mxu0 0.0
    %4203 = vmatprep.subr.mxu0 0.0
    %4204 = vmatpush1.msra.mxu0 0.0
    %4205 = vmatprep.subr.mxu0 0.0
    %4206 = vmatpush1.msra.mxu0 0.0
    %4207 = vmatprep.subr.mxu0 0.0
    %4208 = vmatpush1.msra.mxu0 0.0
    %4209 = vmatprep.subr.mxu0 0.0
    %4210 = vmatpush1.msra.mxu0 0.0
    %4211 = vmatprep.subr.mxu0 0.0
    %4212 = vmatpush1.msra.mxu0 0.0
    %4213 = vmatprep.subr.mxu0 0.0
    %4214 = vmatpush1.msra.mxu0 0.0
    %4215 = vmatprep.subr.mxu0 0.0
    %4216 = vmatpush1.msra.mxu0 0.0
    %4217 = vmatprep.subr.mxu0 0.0
    %4218 = vmatpush1.msra.mxu0 0.0
    %4219 = vmatprep.subr.mxu0 0.0
    %4220 = vmatpush1.msra.mxu0 0.0
    %4221 = vmatprep.subr.mxu0 0.0
    %4222 = vmatpush1.msra.mxu0 0.0
    %4223 = vmatprep.subr.mxu0 0.0
    %4224 = vmatpush1.msra.mxu0 0.0
    %4225 = vmatprep.subr.mxu0 0.0
    %4226 = vmatpush1.msra.mxu0 0.0
    %4227 = vmatprep.subr.mxu0 0.0
    %4228 = vmatpush1.msra.mxu0 0.0
    %4229 = vmatprep.subr.mxu0 0.0
    %4230 = vmatpush1.msra.mxu0 0.0
    %4231 = vmatprep.subr.mxu0 0.0
    %4232 = vmatpush1.msra.mxu0 0.0
    %4233 = vmatprep.subr.mxu0 0.0
    %4234 = vmatpush1.msra.mxu0 0.0
    %4235 = vmatprep.subr.mxu0 0.0
    %4236 = vmatpush1.msra.mxu0 0.0
    %4237 = vmatprep.subr.mxu0 0.0
    %4238 = vmatpush1.msra.mxu0 0.0
    %4239 = vmatprep.subr.mxu0 0.0
    %4240 = vmatpush1.msra.mxu0 0.0
    %4241 = vmatprep.subr.mxu0 0.0
    %4242 = vmatpush1.msra.mxu0 0.0
    %4243 = vmatprep.subr.mxu0 0.0
    %4244 = vmatpush1.msra.mxu0 0.0
    %4245 = vmatprep.subr.mxu0 0.0
    %4246 = vmatpush1.msra.mxu0 0.0
    %4247 = vmatprep.mubr.f32.mxu0 0.0
    %4248 = vmatmul.mubr.f32.gmra.mrb[0].mxu0 %v4166
    %v4249 = vpop.f32.mrb[0].mxu0
    %v4250 = vadd.f32 0.0, %v4249
    %v4251 = vpop.f32.mrb[0].mxu0
    %4252 = vmatprep.mubr.f32.mxu0 0.0
    %4253 = vmatmul.mubr.f32.gmra.mrb[0].mxu0 %v4169
    %v4254 = vpop.f32.mrb[0].mxu0
    %v4255 = vadd.f32 0.0, %v4254
    %v4256 = vpop.f32.mrb[0].mxu0
    %4257 = vmatprep.mubr.f32.mxu0 0.0
    %4258 = vmatmul.mubr.f32.gmra.mrb[0].mxu0 %v4172
    %v4259 = vpop.f32.mrb[0].mxu0
    %v4260 = vadd.f32 0.0, %v4259
    %v4261 = vpop.f32.mrb[0].mxu0
    %4262 = vmatprep.mubr.f32.mxu0 0.0
    %4263 = vmatmul.mubr.f32.gmra.mrb[0].mxu0 %v4175
    %v4264 = vpop.f32.mrb[0].mxu0
    %v4265 = vadd.f32 0.0, %v4264
    %v4266 = vpop.f32.mrb[0].mxu0
    %4267 = vmatprep.mubr.f32.mxu0 0.0
    %4268 = vmatmul.mubr.f32.gmra.mrb[0].mxu0 %v4178
    %v4269 = vpop.f32.mrb[0].mxu0
    %v4270 = vadd.f32 0.0, %v4269
    %v4271 = vpop.f32.mrb[0].mxu0
    %4272 = vmatprep.mubr.f32.mxu0 0.0
    %4273 = vmatmul.mubr.f32.gmra.mrb[0].mxu0 %v4181
    %v4274 = vpop.f32.mrb[0].mxu0
    %v4275 = vadd.f32 0.0, %v4274
    %v4276 = vpop.f32.mrb[0].mxu0
    %4277 = vdwg.mxu0
    %v4278 = vadd.f32 %v3797, %v4250
    %v4279 = vadd.f32 %v3802, %v4255
    %v4280 = vadd.f32 %v3807, %v4260
    %v4281 = vadd.f32 %v3812, %v4265
    %v4282 = vadd.f32 %v3817, %v4270
    %v4283 = vadd.f32 %v3822, %v4275
    %4284 = vrot.lane.b32.xlu0 %v2892, 104
    %v4285 = vpop.permute.xlu0 %4284
    %4286 = vrot.lane.b32.xlu0 %v2897, 104
    %v4287 = vpop.permute.xlu0 %4286
    %4288 = vrot.lane.b32.xlu0 %v2902, 104
    %v4289 = vpop.permute.xlu0 %4288
    %4290 = vrot.lane.b32.xlu0 %v2907, 104
    %v4291 = vpop.permute.xlu0 %4290
    %4292 = vrot.lane.b32.xlu0 %v2912, 104
    %v4293 = vpop.permute.xlu0 %4292
    %4294 = vrot.lane.b32.xlu0 %v2917, 104
    %v4295 = vpop.permute.xlu0 %4294
    %4296 = vrot.lane.b32.xlu0 %v2892, 72
    %v4297 = vpop.permute.xlu0 %4296
    %4298 = vrot.lane.b32.xlu0 %v2897, 72
    %v4299 = vpop.permute.xlu0 %4298
    %4300 = vrot.lane.b32.xlu0 %v2902, 72
    %v4301 = vpop.permute.xlu0 %4300
    %4302 = vrot.lane.b32.xlu0 %v2907, 72
    %v4303 = vpop.permute.xlu0 %4302
    %4304 = vrot.lane.b32.xlu0 %v2912, 72
    %v4305 = vpop.permute.xlu0 %4304
    %4306 = vrot.lane.b32.xlu0 %v2917, 72
    %v4307 = vpop.permute.xlu0 %4306
    %v4308 = vsel %vm462, %v4285, 0
    %v4310 = vsel %vm462, %v4287, 0
    %v4312 = vsel %vm462, %v4289, 0
    %v4314 = vsel %vm462, %v4291, 0
    %v4316 = vsel %vm462, %v4293, 0
    %v4318 = vsel %vm462, %v4295, 0
    %v4320 = vsel %vm462, %v4297, 0
    %v4322 = vsel %vm462, %v4299, 0
    %v4324 = vsel %vm462, %v4301, 0
    %v4326 = vsel %vm462, %v4303, 0
    %v4328 = vsel %vm462, %v4305, 0
    %v4330 = vsel %vm462, %v4307, 0
    %4332 = vmatprep.subr.mxu0 0.0
    %4333 = vmatpush1.xpose.msra.mxu0 %v4320
    %4334 = vmatprep.subr.mxu0 0.0
    %4335 = vmatpush1.xpose.msra.mxu0 %v4322
    %4336 = vmatprep.subr.mxu0 0.0
    %4337 = vmatpush1.xpose.msra.mxu0 %v4324
    %4338 = vmatprep.subr.mxu0 0.0
    %4339 = vmatpush1.xpose.msra.mxu0 %v4326
    %4340 = vmatprep.subr.mxu0 0.0
    %4341 = vmatpush1.xpose.msra.mxu0 %v4328
    %4342 = vmatprep.subr.mxu0 0.0
    %4343 = vmatpush1.xpose.msra.mxu0 %v4330
    %4344 = vmatprep.subr.mxu0 0.0
    %4345 = vmatpush1.xpose.msra.mxu0 0.0
    %4346 = vmatprep.subr.mxu0 0.0
    %4347 = vmatpush1.xpose.msra.mxu0 0.0
    %4348 = vmatprep.subr.mxu0 0.0
    %4349 = vmatpush1.xpose.msra.mxu0 0.0
    %4350 = vmatprep.subr.mxu0 0.0
    %4351 = vmatpush1.xpose.msra.mxu0 0.0
    %4352 = vmatprep.subr.mxu0 0.0
    %4353 = vmatpush1.xpose.msra.mxu0 0.0
    %4354 = vmatprep.subr.mxu0 0.0
    %4355 = vmatpush1.xpose.msra.mxu0 0.0
    %4356 = vmatprep.subr.mxu0 0.0
    %4357 = vmatpush1.xpose.msra.mxu0 0.0
    %4358 = vmatprep.subr.mxu0 0.0
    %4359 = vmatpush1.xpose.msra.mxu0 0.0
    %4360 = vmatprep.subr.mxu0 0.0
    %4361 = vmatpush1.xpose.msra.mxu0 0.0
    %4362 = vmatprep.subr.mxu0 0.0
    %4363 = vmatpush1.xpose.msra.mxu0 0.0
    %4364 = vmatprep.subr.mxu0 0.0
    %4365 = vmatpush1.xpose.msra.mxu0 0.0
    %4366 = vmatprep.subr.mxu0 0.0
    %4367 = vmatpush1.xpose.msra.mxu0 0.0
    %4368 = vmatprep.subr.mxu0 0.0
    %4369 = vmatpush1.xpose.msra.mxu0 0.0
    %4370 = vmatprep.subr.mxu0 0.0
    %4371 = vmatpush1.xpose.msra.mxu0 0.0
    %4372 = vmatprep.subr.mxu0 0.0
    %4373 = vmatpush1.xpose.msra.mxu0 0.0
    %4374 = vmatprep.subr.mxu0 0.0
    %4375 = vmatpush1.xpose.msra.mxu0 0.0
    %4376 = vmatprep.subr.mxu0 0.0
    %4377 = vmatpush1.xpose.msra.mxu0 0.0
    %4378 = vmatprep.subr.mxu0 0.0
    %4379 = vmatpush1.xpose.msra.mxu0 0.0
    %4380 = vmatprep.subr.mxu0 0.0
    %4381 = vmatpush1.xpose.msra.mxu0 0.0
    %4382 = vmatprep.subr.mxu0 0.0
    %4383 = vmatpush1.xpose.msra.mxu0 0.0
    %4384 = vmatprep.subr.mxu0 0.0
    %4385 = vmatpush1.xpose.msra.mxu0 0.0
    %4386 = vmatprep.subr.mxu0 0.0
    %4387 = vmatpush1.xpose.msra.mxu0 0.0
    %4388 = vmatprep.subr.mxu0 0.0
    %4389 = vmatpush1.xpose.msra.mxu0 0.0
    %4390 = vmatprep.subr.mxu0 0.0
    %4391 = vmatpush1.xpose.msra.mxu0 0.0
    %4392 = vmatprep.subr.mxu0 0.0
    %4393 = vmatpush1.xpose.msra.mxu0 0.0
    %4394 = vmatprep.subr.mxu0 0.0
    %4395 = vmatpush1.xpose.msra.mxu0 0.0
    %4396 = vmatprep.mubr.f32.mxu0 0.0
    %4397 = vmatmul.mubr.f32.gmra.mrb[0].mxu0 %v4308
    %v4398 = vpop.f32.mrb[0].mxu0
    %v4399 = vadd.f32 %v204, %v4398
    %v4400 = vpop.f32.mrb[0].mxu0
    %4401 = vmatprep.mubr.f32.mxu0 0.0
    %4402 = vmatmul.mubr.f32.gmra.mrb[0].mxu0 %v4310
    %v4403 = vpop.f32.mrb[0].mxu0
    %v4404 = vadd.f32 %v205, %v4403
    %v4405 = vpop.f32.mrb[0].mxu0
    %4406 = vmatprep.mubr.f32.mxu0 0.0
    %4407 = vmatmul.mubr.f32.gmra.mrb[0].mxu0 %v4312
    %v4408 = vpop.f32.mrb[0].mxu0
    %v4409 = vadd.f32 %v206, %v4408
    %v4410 = vpop.f32.mrb[0].mxu0
    %4411 = vmatprep.mubr.f32.mxu0 0.0
    %4412 = vmatmul.mubr.f32.gmra.mrb[0].mxu0 %v4314
    %v4413 = vpop.f32.mrb[0].mxu0
    %v4414 = vadd.f32 %v207, %v4413
    %v4415 = vpop.f32.mrb[0].mxu0
    %4416 = vmatprep.mubr.f32.mxu0 0.0
    %4417 = vmatmul.mubr.f32.gmra.mrb[0].mxu0 %v4316
    %v4418 = vpop.f32.mrb[0].mxu0
    %v4419 = vadd.f32 %v208, %v4418
    %v4420 = vpop.f32.mrb[0].mxu0
    %4421 = vmatprep.mubr.f32.mxu0 0.0
    %4422 = vmatmul.mubr.f32.gmra.mrb[0].mxu0 %v4318
    %v4423 = vpop.f32.mrb[0].mxu0
    %v4424 = vadd.f32 %v209, %v4423
    %v4425 = vpop.f32.mrb[0].mxu0
    %4426 = vdwg.mxu0
    %v4427 = vsel %vm84, %v4399, -inf
    %4428 = vmax.xlane.f32.xlu0 %v4427
    %v4429 = vpop.xlane.xlu0 %4428
    %v4430 = vsel %vm84, %v4404, -inf
    %4431 = vmax.xlane.f32.xlu0 %v4430
    %v4432 = vpop.xlane.xlu0 %4431
    %v4433 = vsel %vm84, %v4409, -inf
    %4434 = vmax.xlane.f32.xlu0 %v4433
    %v4435 = vpop.xlane.xlu0 %4434
    %v4436 = vsel %vm84, %v4414, -inf
    %4437 = vmax.xlane.f32.xlu0 %v4436
    %v4438 = vpop.xlane.xlu0 %4437
    %v4439 = vsel %vm84, %v4419, -inf
    %4440 = vmax.xlane.f32.xlu0 %v4439
    %v4441 = vpop.xlane.xlu0 %4440
    %v4442 = vsel %vm84, %v4424, -inf
    %4443 = vmax.xlane.f32.xlu0 %v4442
    %v4444 = vpop.xlane.xlu0 %4443
    %v4445 = vsub.f32 %v4399, %v4429
    %v4446 = vsub.f32 %v4404, %v4432
    %v4447 = vsub.f32 %v4409, %v4435
    %v4448 = vsub.f32 %v4414, %v4438
    %v4449 = vsub.f32 %v4419, %v4441
    %v4450 = vsub.f32 %v4424, %v4444
    %v4451 = vmul.f32 %v4445, 1.442695
    %v4452 = vpow.pop %v4451
    %v4453 = vmul.f32 %v4446, 1.442695
    %v4454 = vpow.pop %v4453
    %v4455 = vmul.f32 %v4447, 1.442695
    %v4456 = vpow.pop %v4455
    %v4457 = vmul.f32 %v4448, 1.442695
    %v4458 = vpow.pop %v4457
    %v4459 = vmul.f32 %v4449, 1.442695
    %v4460 = vpow.pop %v4459
    %v4461 = vmul.f32 %v4450, 1.442695
    %v4462 = vpow.pop %v4461
    %v4463 = vsel %vm84, %v4452, 0.0
    %4464 = vadd.xlane.f32.xlu0 %v4463
    %v4465 = vpop.xlane.xlu0 %4464
    %v4466 = vsel %vm84, %v4454, 0.0
    %4467 = vadd.xlane.f32.xlu0 %v4466
    %v4468 = vpop.xlane.xlu0 %4467
    %v4469 = vsel %vm84, %v4456, 0.0
    %4470 = vadd.xlane.f32.xlu0 %v4469
    %v4471 = vpop.xlane.xlu0 %4470
    %v4472 = vsel %vm84, %v4458, 0.0
    %4473 = vadd.xlane.f32.xlu0 %v4472
    %v4474 = vpop.xlane.xlu0 %4473
    %v4475 = vsel %vm84, %v4460, 0.0
    %4476 = vadd.xlane.f32.xlu0 %v4475
    %v4477 = vpop.xlane.xlu0 %4476
    %v4478 = vsel %vm84, %v4462, 0.0
    %4479 = vadd.xlane.f32.xlu0 %v4478
    %v4480 = vpop.xlane.xlu0 %4479
    %v4481 = vrcp.pop %v4465
    %v4482 = vrcp.pop %v4468
    %v4483 = vrcp.pop %v4471
    %v4484 = vrcp.pop %v4474
    %v4485 = vrcp.pop %v4477
    %v4486 = vrcp.pop %v4480
    %v4487 = vmul.f32 %v4452, %v4481
    %v4488 = vmul.f32 %v4454, %v4482
    %v4489 = vmul.f32 %v4456, %v4483
    %v4490 = vmul.f32 %v4458, %v4484
    %v4491 = vmul.f32 %v4460, %v4485
    %v4492 = vmul.f32 %v4462, %v4486
    %4493 = vrot.lane.b32.xlu0 %v2892, 40
    %v4494 = vpop.permute.xlu0 %4493
    %4495 = vrot.lane.b32.xlu0 %v2897, 40
    %v4496 = vpop.permute.xlu0 %4495
    %4497 = vrot.lane.b32.xlu0 %v2902, 40
    %v4498 = vpop.permute.xlu0 %4497
    %4499 = vrot.lane.b32.xlu0 %v2907, 40
    %v4500 = vpop.permute.xlu0 %4499
    %4501 = vrot.lane.b32.xlu0 %v2912, 40
    %v4502 = vpop.permute.xlu0 %4501
    %4503 = vrot.lane.b32.xlu0 %v2917, 40
    %v4504 = vpop.permute.xlu0 %4503
    %v4512 = vsel %vm84, %v4487, 0
    %v4515 = vsel %vm84, %v4488, 0
    %v4518 = vsel %vm84, %v4489, 0
    %v4521 = vsel %vm84, %v4490, 0
    %v4524 = vsel %vm84, %v4491, 0
    %v4527 = vsel %vm84, %v4492, 0
    %4529 = vmatprep.subr.mxu0 0.0
    %4530 = vmatpush1.msra.mxu0 %v4494
    %4531 = vmatprep.subr.mxu0 0.0
    %4532 = vmatpush1.msra.mxu0 %v4496
    %4533 = vmatprep.subr.mxu0 0.0
    %4534 = vmatpush1.msra.mxu0 %v4498
    %4535 = vmatprep.subr.mxu0 0.0
    %4536 = vmatpush1.msra.mxu0 %v4500
    %4537 = vmatprep.subr.mxu0 0.0
    %4538 = vmatpush1.msra.mxu0 %v4502
    %4539 = vmatprep.subr.mxu0 0.0
    %4540 = vmatpush1.msra.mxu0 %v4504
    %4541 = vmatprep.subr.mxu0 0.0
    %4542 = vmatpush1.msra.mxu0 0.0
    %4543 = vmatprep.subr.mxu0 0.0
    %4544 = vmatpush1.msra.mxu0 0.0
    %4545 = vmatprep.subr.mxu0 0.0
    %4546 = vmatpush1.msra.mxu0 0.0
    %4547 = vmatprep.subr.mxu0 0.0
    %4548 = vmatpush1.msra.mxu0 0.0
    %4549 = vmatprep.subr.mxu0 0.0
    %4550 = vmatpush1.msra.mxu0 0.0
    %4551 = vmatprep.subr.mxu0 0.0
    %4552 = vmatpush1.msra.mxu0 0.0
    %4553 = vmatprep.subr.mxu0 0.0
    %4554 = vmatpush1.msra.mxu0 0.0
    %4555 = vmatprep.subr.mxu0 0.0
    %4556 = vmatpush1.msra.mxu0 0.0
    %4557 = vmatprep.subr.mxu0 0.0
    %4558 = vmatpush1.msra.mxu0 0.0
    %4559 = vmatprep.subr.mxu0 0.0
    %4560 = vmatpush1.msra.mxu0 0.0
    %4561 = vmatprep.subr.mxu0 0.0
    %4562 = vmatpush1.msra.mxu0 0.0
    %4563 = vmatprep.subr.mxu0 0.0
    %4564 = vmatpush1.msra.mxu0 0.0
    %4565 = vmatprep.subr.mxu0 0.0
    %4566 = vmatpush1.msra.mxu0 0.0
    %4567 = vmatprep.subr.mxu0 0.0
    %4568 = vmatpush1.msra.mxu0 0.0
    %4569 = vmatprep.subr.mxu0 0.0
    %4570 = vmatpush1.msra.mxu0 0.0
    %4571 = vmatprep.subr.mxu0 0.0
    %4572 = vmatpush1.msra.mxu0 0.0
    %4573 = vmatprep.subr.mxu0 0.0
    %4574 = vmatpush1.msra.mxu0 0.0
    %4575 = vmatprep.subr.mxu0 0.0
    %4576 = vmatpush1.msra.mxu0 0.0
    %4577 = vmatprep.subr.mxu0 0.0
    %4578 = vmatpush1.msra.mxu0 0.0
    %4579 = vmatprep.subr.mxu0 0.0
    %4580 = vmatpush1.msra.mxu0 0.0
    %4581 = vmatprep.subr.mxu0 0.0
    %4582 = vmatpush1.msra.mxu0 0.0
    %4583 = vmatprep.subr.mxu0 0.0
    %4584 = vmatpush1.msra.mxu0 0.0
    %4585 = vmatprep.subr.mxu0 0.0
    %4586 = vmatpush1.msra.mxu0 0.0
    %4587 = vmatprep.subr.mxu0 0.0
    %4588 = vmatpush1.msra.mxu0 0.0
    %4589 = vmatprep.subr.mxu0 0.0
    %4590 = vmatpush1.msra.mxu0 0.0
    %4591 = vmatprep.subr.mxu0 0.0
    %4592 = vmatpush1.msra.mxu0 0.0
    %4593 = vmatprep.mubr.f32.mxu0 0.0
    %4594 = vmatmul.mubr.f32.gmra.mrb[0].mxu0 %v4512
    %v4595 = vpop.f32.mrb[0].mxu0
    %v4596 = vadd.f32 0.0, %v4595
    %v4597 = vpop.f32.mrb[0].mxu0
    %4598 = vmatprep.mubr.f32.mxu0 0.0
    %4599 = vmatmul.mubr.f32.gmra.mrb[0].mxu0 %v4515
    %v4600 = vpop.f32.mrb[0].mxu0
    %v4601 = vadd.f32 0.0, %v4600
    %v4602 = vpop.f32.mrb[0].mxu0
    %4603 = vmatprep.mubr.f32.mxu0 0.0
    %4604 = vmatmul.mubr.f32.gmra.mrb[0].mxu0 %v4518
    %v4605 = vpop.f32.mrb[0].mxu0
    %v4606 = vadd.f32 0.0, %v4605
    %v4607 = vpop.f32.mrb[0].mxu0
    %4608 = vmatprep.mubr.f32.mxu0 0.0
    %4609 = vmatmul.mubr.f32.gmra.mrb[0].mxu0 %v4521
    %v4610 = vpop.f32.mrb[0].mxu0
    %v4611 = vadd.f32 0.0, %v4610
    %v4612 = vpop.f32.mrb[0].mxu0
    %4613 = vmatprep.mubr.f32.mxu0 0.0
    %4614 = vmatmul.mubr.f32.gmra.mrb[0].mxu0 %v4524
    %v4615 = vpop.f32.mrb[0].mxu0
    %v4616 = vadd.f32 0.0, %v4615
    %v4617 = vpop.f32.mrb[0].mxu0
    %4618 = vmatprep.mubr.f32.mxu0 0.0
    %4619 = vmatmul.mubr.f32.gmra.mrb[0].mxu0 %v4527
    %v4620 = vpop.f32.mrb[0].mxu0
    %v4621 = vadd.f32 0.0, %v4620
    %v4622 = vpop.f32.mrb[0].mxu0
    %4623 = vdwg.mxu0
    %v4625 = vsel %vm462, %v4596, 0
    %v4628 = vsel %vm462, %v4601, 0
    %v4631 = vsel %vm462, %v4606, 0
    %v4634 = vsel %vm462, %v4611, 0
    %v4637 = vsel %vm462, %v4616, 0
    %v4640 = vsel %vm462, %v4621, 0
    %4642 = vmatprep.subr.mxu0 0.0
    %4643 = vmatpush1.msra.mxu0 %v2924
    %4644 = vmatprep.subr.mxu0 0.0
    %4645 = vmatpush1.msra.mxu0 0.0
    %4646 = vmatprep.subr.mxu0 0.0
    %4647 = vmatpush1.msra.mxu0 0.0
    %4648 = vmatprep.subr.mxu0 0.0
    %4649 = vmatpush1.msra.mxu0 0.0
    %4650 = vmatprep.subr.mxu0 0.0
    %4651 = vmatpush1.msra.mxu0 0.0
    %4652 = vmatprep.subr.mxu0 0.0
    %4653 = vmatpush1.msra.mxu0 0.0
    %4654 = vmatprep.subr.mxu0 0.0
    %4655 = vmatpush1.msra.mxu0 0.0
    %4656 = vmatprep.subr.mxu0 0.0
    %4657 = vmatpush1.msra.mxu0 0.0
    %4658 = vmatprep.subr.mxu0 0.0
    %4659 = vmatpush1.msra.mxu0 0.0
    %4660 = vmatprep.subr.mxu0 0.0
    %4661 = vmatpush1.msra.mxu0 0.0
    %4662 = vmatprep.subr.mxu0 0.0
    %4663 = vmatpush1.msra.mxu0 0.0
    %4664 = vmatprep.subr.mxu0 0.0
    %4665 = vmatpush1.msra.mxu0 0.0
    %4666 = vmatprep.subr.mxu0 0.0
    %4667 = vmatpush1.msra.mxu0 0.0
    %4668 = vmatprep.subr.mxu0 0.0
    %4669 = vmatpush1.msra.mxu0 0.0
    %4670 = vmatprep.subr.mxu0 0.0
    %4671 = vmatpush1.msra.mxu0 0.0
    %4672 = vmatprep.subr.mxu0 0.0
    %4673 = vmatpush1.msra.mxu0 0.0
    %4674 = vmatprep.subr.mxu0 0.0
    %4675 = vmatpush1.msra.mxu0 0.0
    %4676 = vmatprep.subr.mxu0 0.0
    %4677 = vmatpush1.msra.mxu0 0.0
    %4678 = vmatprep.subr.mxu0 0.0
    %4679 = vmatpush1.msra.mxu0 0.0
    %4680 = vmatprep.subr.mxu0 0.0
    %4681 = vmatpush1.msra.mxu0 0.0
    %4682 = vmatprep.subr.mxu0 0.0
    %4683 = vmatpush1.msra.mxu0 0.0
    %4684 = vmatprep.subr.mxu0 0.0
    %4685 = vmatpush1.msra.mxu0 0.0
    %4686 = vmatprep.subr.mxu0 0.0
    %4687 = vmatpush1.msra.mxu0 0.0
    %4688 = vmatprep.subr.mxu0 0.0
    %4689 = vmatpush1.msra.mxu0 0.0
    %4690 = vmatprep.subr.mxu0 0.0
    %4691 = vmatpush1.msra.mxu0 0.0
    %4692 = vmatprep.subr.mxu0 0.0
    %4693 = vmatpush1.msra.mxu0 0.0
    %4694 = vmatprep.subr.mxu0 0.0
    %4695 = vmatpush1.msra.mxu0 0.0
    %4696 = vmatprep.subr.mxu0 0.0
    %4697 = vmatpush1.msra.mxu0 0.0
    %4698 = vmatprep.subr.mxu0 0.0
    %4699 = vmatpush1.msra.mxu0 0.0
    %4700 = vmatprep.subr.mxu0 0.0
    %4701 = vmatpush1.msra.mxu0 0.0
    %4702 = vmatprep.subr.mxu0 0.0
    %4703 = vmatpush1.msra.mxu0 0.0
    %4704 = vmatprep.subr.mxu0 0.0
    %4705 = vmatpush1.msra.mxu0 0.0
    %4706 = vmatprep.mubr.f32.mxu0 0.0
    %4707 = vmatmul.mubr.f32.gmra.mrb[0].mxu0 %v4625
    %v4708 = vpop.f32.mrb[0].mxu0
    %v4709 = vadd.f32 0.0, %v4708
    %v4710 = vpop.f32.mrb[0].mxu0
    %4711 = vmatprep.mubr.f32.mxu0 0.0
    %4712 = vmatmul.mubr.f32.gmra.mrb[0].mxu0 %v4628
    %v4713 = vpop.f32.mrb[0].mxu0
    %v4714 = vadd.f32 0.0, %v4713
    %v4715 = vpop.f32.mrb[0].mxu0
    %4716 = vmatprep.mubr.f32.mxu0 0.0
    %4717 = vmatmul.mubr.f32.gmra.mrb[0].mxu0 %v4631
    %v4718 = vpop.f32.mrb[0].mxu0
    %v4719 = vadd.f32 0.0, %v4718
    %v4720 = vpop.f32.mrb[0].mxu0
    %4721 = vmatprep.mubr.f32.mxu0 0.0
    %4722 = vmatmul.mubr.f32.gmra.mrb[0].mxu0 %v4634
    %v4723 = vpop.f32.mrb[0].mxu0
    %v4724 = vadd.f32 0.0, %v4723
    %v4725 = vpop.f32.mrb[0].mxu0
    %4726 = vmatprep.mubr.f32.mxu0 0.0
    %4727 = vmatmul.mubr.f32.gmra.mrb[0].mxu0 %v4637
    %v4728 = vpop.f32.mrb[0].mxu0
    %v4729 = vadd.f32 0.0, %v4728
    %v4730 = vpop.f32.mrb[0].mxu0
    %4731 = vmatprep.mubr.f32.mxu0 0.0
    %4732 = vmatmul.mubr.f32.gmra.mrb[0].mxu0 %v4640
    %v4733 = vpop.f32.mrb[0].mxu0
    %v4734 = vadd.f32 0.0, %v4733
    %v4735 = vpop.f32.mrb[0].mxu0
    %4736 = vdwg.mxu0
    %v4737 = vadd.f32 %v4278, %v4709
    %v4738 = vadd.f32 %v4279, %v4714
    %v4739 = vadd.f32 %v4280, %v4719
    %v4740 = vadd.f32 %v4281, %v4724
    %v4741 = vadd.f32 %v4282, %v4729
    %v4742 = vadd.f32 %v4283, %v4734
    %v4743 = vadd.f32 %v2682, %v4737
    %v4744 = vadd.f32 %v2683, %v4738
    %v4745 = vadd.f32 %v2684, %v4739
    %v4746 = vadd.f32 %v2685, %v4740
    %v4747 = vadd.f32 %v2686, %v4741
    %v4748 = vadd.f32 %v2687, %v4742
    %s4749 = scalar_lea.vmem %s9, 1
    %v4750 = vld [vmem:[%s4749] sm:$0x1]
    %v4752 = vlaneseq
    %v4753 = vshrl.u32 %v4752, 7
    %v4754 = vsub.s32 0, %v4753
    %v4755 = vrot.slane %v4750, %v4754
    %v4757 = vadd.f32 %v4743, %v4755
    %v4758 = vadd.f32 %v4744, %v4755
    %v4759 = vadd.f32 %v4745, %v4755
    %v4760 = vadd.f32 %v4746, %v4755
    %v4761 = vadd.f32 %v4747, %v4755
    %v4762 = vadd.f32 %v4748, %v4755
    %s4763 = scalar_lea.vmem %s10, 1
    %v4764 = vld [vmem:[%s4763] sm:$0x1]
    %s4765 = scalar_lea.vmem %s11, 1
    %v4766 = vld [vmem:[%s4765] sm:$0x1]
    %v4767 = vsel %vm212, %v4757, 0.0
    %4768 = vadd.xlane.f32.xlu0 %v4767
    %v4769 = vpop.xlane.xlu0 %4768
    %v4770 = vsel %vm212, %v4758, 0.0
    %4771 = vadd.xlane.f32.xlu0 %v4770
    %v4772 = vpop.xlane.xlu0 %4771
    %v4773 = vsel %vm212, %v4759, 0.0
    %4774 = vadd.xlane.f32.xlu0 %v4773
    %v4775 = vpop.xlane.xlu0 %4774
    %v4776 = vsel %vm212, %v4760, 0.0
    %4777 = vadd.xlane.f32.xlu0 %v4776
    %v4778 = vpop.xlane.xlu0 %4777
    %v4779 = vsel %vm212, %v4761, 0.0
    %4780 = vadd.xlane.f32.xlu0 %v4779
    %v4781 = vpop.xlane.xlu0 %4780
    %v4782 = vsel %vm212, %v4762, 0.0
    %4783 = vadd.xlane.f32.xlu0 %v4782
    %v4784 = vpop.xlane.xlu0 %4783
    %v4785 = vmul.f32 %v4769, %v231
    %v4786 = vmul.f32 %v4772, %v231
    %v4787 = vmul.f32 %v4775, %v231
    %v4788 = vmul.f32 %v4778, %v231
    %v4789 = vmul.f32 %v4781, %v231
    %v4790 = vmul.f32 %v4784, %v231
    %v4791 = vsub.f32 %v4757, %v4785
    %v4792 = vsub.f32 %v4758, %v4786
    %v4793 = vsub.f32 %v4759, %v4787
    %v4794 = vsub.f32 %v4760, %v4788
    %v4795 = vsub.f32 %v4761, %v4789
    %v4796 = vsub.f32 %v4762, %v4790
    %v4797 = vmul.f32 %v4791, %v4791
    %v4798 = vmul.f32 %v4792, %v4792
    %v4799 = vmul.f32 %v4793, %v4793
    %v4800 = vmul.f32 %v4794, %v4794
    %v4801 = vmul.f32 %v4795, %v4795
    %v4802 = vmul.f32 %v4796, %v4796
    %v4803 = vsel %vm212, %v4797, 0.0
    %4804 = vadd.xlane.f32.xlu0 %v4803
    %v4805 = vpop.xlane.xlu0 %4804
    %v4806 = vsel %vm212, %v4798, 0.0
    %4807 = vadd.xlane.f32.xlu0 %v4806
    %v4808 = vpop.xlane.xlu0 %4807
    %v4809 = vsel %vm212, %v4799, 0.0
    %4810 = vadd.xlane.f32.xlu0 %v4809
    %v4811 = vpop.xlane.xlu0 %4810
    %v4812 = vsel %vm212, %v4800, 0.0
    %4813 = vadd.xlane.f32.xlu0 %v4812
    %v4814 = vpop.xlane.xlu0 %4813
    %v4815 = vsel %vm212, %v4801, 0.0
    %4816 = vadd.xlane.f32.xlu0 %v4815
    %v4817 = vpop.xlane.xlu0 %4816
    %v4818 = vsel %vm212, %v4802, 0.0
    %4819 = vadd.xlane.f32.xlu0 %v4818
    %v4820 = vpop.xlane.xlu0 %4819
    %v4821 = vmul.f32 %v4805, %v231
    %v4822 = vmul.f32 %v4808, %v231
    %v4823 = vmul.f32 %v4811, %v231
    %v4824 = vmul.f32 %v4814, %v231
    %v4825 = vmul.f32 %v4817, %v231
    %v4826 = vmul.f32 %v4820, %v231
    %v4827 = vadd.f32 %v4821, 1e-06
    %v4828 = vadd.f32 %v4822, 1e-06
    %v4829 = vadd.f32 %v4823, 1e-06
    %v4830 = vadd.f32 %v4824, 1e-06
    %v4831 = vadd.f32 %v4825, 1e-06
    %v4832 = vadd.f32 %v4826, 1e-06
    %v4833 = vrsqrt.pop %v4827
    %v4834 = vrsqrt.pop %v4828
    %v4835 = vrsqrt.pop %v4829
    %v4836 = vrsqrt.pop %v4830
    %v4837 = vrsqrt.pop %v4831
    %v4838 = vrsqrt.pop %v4832
    %v4839 = vmul.f32 %v4791, %v4833
    %v4840 = vmul.f32 %v4792, %v4834
    %v4841 = vmul.f32 %v4793, %v4835
    %v4842 = vmul.f32 %v4794, %v4836
    %v4843 = vmul.f32 %v4795, %v4837
    %v4844 = vmul.f32 %v4796, %v4838
    %v4846 = vlaneseq
    %v4847 = vshrl.u32 %v4846, 7
    %v4848 = vsub.s32 0, %v4847
    %v4849 = vrot.slane %v4764, %v4848
    %v4851 = vmul.f32 %v4839, %v4849
    %v4852 = vmul.f32 %v4840, %v4849
    %v4853 = vmul.f32 %v4841, %v4849
    %v4854 = vmul.f32 %v4842, %v4849
    %v4855 = vmul.f32 %v4843, %v4849
    %v4856 = vmul.f32 %v4844, %v4849
    %v4858 = vlaneseq
    %v4859 = vshrl.u32 %v4858, 7
    %v4860 = vsub.s32 0, %v4859
    %v4861 = vrot.slane %v4766, %v4860
    %v4863 = vadd.f32 %v4851, %v4861
    %v4864 = vadd.f32 %v4852, %v4861
    %v4865 = vadd.f32 %v4853, %v4861
    %v4866 = vadd.f32 %v4854, %v4861
    %v4867 = vadd.f32 %v4855, %v4861
    %v4868 = vadd.f32 %v4856, %v4861
    %s4869 = scalar_lea.vmem %s12, 32
    %v4870 = vld [vmem:[%s4869] sm:$0xff]
    %v4871 = vld [vmem:[%s4869 + $0x8] sm:$0xff]
    %v4872 = vld [vmem:[%s4869 + $0x10] sm:$0xff]
    %v4873 = vld [vmem:[%s4869 + $0x18] sm:$0xff]
    %s4874 = scalar_lea.vmem %s13, 1
    %v4875 = vld [vmem:[%s4874] sm:$0x1]
    %v4877 = vlaneseq
    %v4878 = vshrl.u32 %v4877, 7
    %v4879 = vsub.s32 0, %v4878
    %v4880 = vrot.slane %v4875, %v4879
    %v4883 = vsel %vm212, %v4863, 0
    %v4886 = vsel %vm212, %v4864, 0
    %v4889 = vsel %vm212, %v4865, 0
    %v4892 = vsel %vm212, %v4866, 0
    %v4895 = vsel %vm212, %v4867, 0
    %v4898 = vsel %vm212, %v4868, 0
    %4900 = vmatprep.subr.mxu0 0.0
    %4901 = vmatpush1.msra.mxu0 %v4870
    %4902 = vmatprep.subr.mxu0 0.0
    %4903 = vmatpush1.msra.mxu0 %v4871
    %4904 = vmatprep.subr.mxu0 0.0
    %4905 = vmatpush1.msra.mxu0 %v4872
    %4906 = vmatprep.subr.mxu0 0.0
    %4907 = vmatpush1.msra.mxu0 %v4873
    %4908 = vmatprep.subr.mxu0 0.0
    %4909 = vmatpush1.msra.mxu0 0.0
    %4910 = vmatprep.subr.mxu0 0.0
    %4911 = vmatpush1.msra.mxu0 0.0
    %4912 = vmatprep.subr.mxu0 0.0
    %4913 = vmatpush1.msra.mxu0 0.0
    %4914 = vmatprep.subr.mxu0 0.0
    %4915 = vmatpush1.msra.mxu0 0.0
    %4916 = vmatprep.subr.mxu0 0.0
    %4917 = vmatpush1.msra.mxu0 0.0
    %4918 = vmatprep.subr.mxu0 0.0
    %4919 = vmatpush1.msra.mxu0 0.0
    %4920 = vmatprep.subr.mxu0 0.0
    %4921 = vmatpush1.msra.mxu0 0.0
    %4922 = vmatprep.subr.mxu0 0.0
    %4923 = vmatpush1.msra.mxu0 0.0
    %4924 = vmatprep.subr.mxu0 0.0
    %4925 = vmatpush1.msra.mxu0 0.0
    %4926 = vmatprep.subr.mxu0 0.0
    %4927 = vmatpush1.msra.mxu0 0.0
    %4928 = vmatprep.subr.mxu0 0.0
    %4929 = vmatpush1.msra.mxu0 0.0
    %4930 = vmatprep.subr.mxu0 0.0
    %4931 = vmatpush1.msra.mxu0 0.0
    %4932 = vmatprep.subr.mxu0 0.0
    %4933 = vmatpush1.msra.mxu0 0.0
    %4934 = vmatprep.subr.mxu0 0.0
    %4935 = vmatpush1.msra.mxu0 0.0
    %4936 = vmatprep.subr.mxu0 0.0
    %4937 = vmatpush1.msra.mxu0 0.0
    %4938 = vmatprep.subr.mxu0 0.0
    %4939 = vmatpush1.msra.mxu0 0.0
    %4940 = vmatprep.subr.mxu0 0.0
    %4941 = vmatpush1.msra.mxu0 0.0
    %4942 = vmatprep.subr.mxu0 0.0
    %4943 = vmatpush1.msra.mxu0 0.0
    %4944 = vmatprep.subr.mxu0 0.0
    %4945 = vmatpush1.msra.mxu0 0.0
    %4946 = vmatprep.subr.mxu0 0.0
    %4947 = vmatpush1.msra.mxu0 0.0
    %4948 = vmatprep.subr.mxu0 0.0
    %4949 = vmatpush1.msra.mxu0 0.0
    %4950 = vmatprep.subr.mxu0 0.0
    %4951 = vmatpush1.msra.mxu0 0.0
    %4952 = vmatprep.subr.mxu0 0.0
    %4953 = vmatpush1.msra.mxu0 0.0
    %4954 = vmatprep.subr.mxu0 0.0
    %4955 = vmatpush1.msra.mxu0 0.0
    %4956 = vmatprep.subr.mxu0 0.0
    %4957 = vmatpush1.msra.mxu0 0.0
    %4958 = vmatprep.subr.mxu0 0.0
    %4959 = vmatpush1.msra.mxu0 0.0
    %4960 = vmatprep.subr.mxu0 0.0
    %4961 = vmatpush1.msra.mxu0 0.0
    %4962 = vmatprep.subr.mxu0 0.0
    %4963 = vmatpush1.msra.mxu0 0.0
    %4964 = vmatprep.mubr.f32.mxu0 0.0
    %4965 = vmatmul.mubr.f32.gmra.mrb[0].mxu0 %v4883
    %v4966 = vpop.f32.mrb[0].mxu0
    %v4967 = vadd.f32 %v4880, %v4966
    %v4968 = vpop.f32.mrb[0].mxu0
    %4969 = vmatprep.mubr.f32.mxu0 0.0
    %4970 = vmatmul.mubr.f32.gmra.mrb[0].mxu0 %v4886
    %v4971 = vpop.f32.mrb[0].mxu0
    %v4972 = vadd.f32 %v4880, %v4971
    %v4973 = vpop.f32.mrb[0].mxu0
    %4974 = vmatprep.mubr.f32.mxu0 0.0
    %4975 = vmatmul.mubr.f32.gmra.mrb[0].mxu0 %v4889
    %v4976 = vpop.f32.mrb[0].mxu0
    %v4977 = vadd.f32 %v4880, %v4976
    %v4978 = vpop.f32.mrb[0].mxu0
    %4979 = vmatprep.mubr.f32.mxu0 0.0
    %4980 = vmatmul.mubr.f32.gmra.mrb[0].mxu0 %v4892
    %v4981 = vpop.f32.mrb[0].mxu0
    %v4982 = vadd.f32 %v4880, %v4981
    %v4983 = vpop.f32.mrb[0].mxu0
    %4984 = vmatprep.mubr.f32.mxu0 0.0
    %4985 = vmatmul.mubr.f32.gmra.mrb[0].mxu0 %v4895
    %v4986 = vpop.f32.mrb[0].mxu0
    %v4987 = vadd.f32 %v4880, %v4986
    %v4988 = vpop.f32.mrb[0].mxu0
    %4989 = vmatprep.mubr.f32.mxu0 0.0
    %4990 = vmatmul.mubr.f32.gmra.mrb[0].mxu0 %v4898
    %v4991 = vpop.f32.mrb[0].mxu0
    %v4992 = vadd.f32 %v4880, %v4991
    %v4993 = vpop.f32.mrb[0].mxu0
    %4994 = vdwg.mxu0
    %v4995 = vmul.f32 %v4967, 0.5
    %v4996 = vmul.f32 %v4972, 0.5
    %v4997 = vmul.f32 %v4977, 0.5
    %v4998 = vmul.f32 %v4982, 0.5
    %v4999 = vmul.f32 %v4987, 0.5
    %v5000 = vmul.f32 %v4992, 0.5
    %v5001 = vmul.f32 %v4967, 0.044715
    %v5002 = vmul.f32 %v4972, 0.044715
    %v5003 = vmul.f32 %v4977, 0.044715
    %v5004 = vmul.f32 %v4982, 0.044715
    %v5005 = vmul.f32 %v4987, 0.044715
    %v5006 = vmul.f32 %v4992, 0.044715
    %v5007 = vmul.f32 %v5001, %v4967
    %v5008 = vmul.f32 %v5002, %v4972
    %v5009 = vmul.f32 %v5003, %v4977
    %v5010 = vmul.f32 %v5004, %v4982
    %v5011 = vmul.f32 %v5005, %v4987
    %v5012 = vmul.f32 %v5006, %v4992
    %v5013 = vmul.f32 %v5007, %v4967
    %v5014 = vmul.f32 %v5008, %v4972
    %v5015 = vmul.f32 %v5009, %v4977
    %v5016 = vmul.f32 %v5010, %v4982
    %v5017 = vmul.f32 %v5011, %v4987
    %v5018 = vmul.f32 %v5012, %v4992
    %v5019 = vadd.f32 %v4967, %v5013
    %v5020 = vadd.f32 %v4972, %v5014
    %v5021 = vadd.f32 %v4977, %v5015
    %v5022 = vadd.f32 %v4982, %v5016
    %v5023 = vadd.f32 %v4987, %v5017
    %v5024 = vadd.f32 %v4992, %v5018
    %v5025 = vmul.f32 %v5019, 0.7978846
    %v5026 = vmul.f32 %v5020, 0.7978846
    %v5027 = vmul.f32 %v5021, 0.7978846
    %v5028 = vmul.f32 %v5022, 0.7978846
    %v5029 = vmul.f32 %v5023, 0.7978846
    %v5030 = vmul.f32 %v5024, 0.7978846
    %v5031 = vtanh.pop %v5025
    %v5032 = vtanh.pop %v5026
    %v5033 = vtanh.pop %v5027
    %v5034 = vtanh.pop %v5028
    %v5035 = vtanh.pop %v5029
    %v5036 = vtanh.pop %v5030
    %v5037 = vadd.f32 %v5031, 1.0
    %v5038 = vadd.f32 %v5032, 1.0
    %v5039 = vadd.f32 %v5033, 1.0
    %v5040 = vadd.f32 %v5034, 1.0
    %v5041 = vadd.f32 %v5035, 1.0
    %v5042 = vadd.f32 %v5036, 1.0
    %v5043 = vmul.f32 %v4995, %v5037
    %v5044 = vmul.f32 %v4996, %v5038
    %v5045 = vmul.f32 %v4997, %v5039
    %v5046 = vmul.f32 %v4998, %v5040
    %v5047 = vmul.f32 %v4999, %v5041
    %v5048 = vmul.f32 %v5000, %v5042
    %s5049 = scalar_lea.vmem %s14, 128
    %v5050 = vld [vmem:[%s5049] sm:$0xff]
    %v5051 = vld [vmem:[%s5049 + $0x8] sm:$0xff]
    %v5052 = vld [vmem:[%s5049 + $0x10] sm:$0xff]
    %v5053 = vld [vmem:[%s5049 + $0x18] sm:$0xff]
    %v5054 = vld [vmem:[%s5049 + $0x20] sm:$0xff]
    %v5055 = vld [vmem:[%s5049 + $0x28] sm:$0xff]
    %v5056 = vld [vmem:[%s5049 + $0x30] sm:$0xff]
    %v5057 = vld [vmem:[%s5049 + $0x38] sm:$0xff]
    %v5058 = vld [vmem:[%s5049 + $0x40] sm:$0xff]
    %v5059 = vld [vmem:[%s5049 + $0x48] sm:$0xff]
    %v5060 = vld [vmem:[%s5049 + $0x50] sm:$0xff]
    %v5061 = vld [vmem:[%s5049 + $0x58] sm:$0xff]
    %v5062 = vld [vmem:[%s5049 + $0x60] sm:$0xff]
    %v5063 = vld [vmem:[%s5049 + $0x68] sm:$0xff]
    %v5064 = vld [vmem:[%s5049 + $0x70] sm:$0xff]
    %v5065 = vld [vmem:[%s5049 + $0x78] sm:$0xff]
    %s5066 = scalar_lea.vmem %s15, 1
    %v5067 = vld [vmem:[%s5066] sm:$0x1]
    %v5069 = vlaneseq
    %v5070 = vshrl.u32 %v5069, 7
    %v5071 = vsub.s32 0, %v5070
    %v5072 = vrot.slane %v5067, %v5071
    %5074 = vmatprep.subr.mxu0 0.0
    %5075 = vmatpush1.msra.mxu0 %v5050
    %5076 = vmatprep.subr.mxu0 0.0
    %5077 = vmatpush1.msra.mxu0 %v5051
    %5078 = vmatprep.subr.mxu0 0.0
    %5079 = vmatpush1.msra.mxu0 %v5052
    %5080 = vmatprep.subr.mxu0 0.0
    %5081 = vmatpush1.msra.mxu0 %v5053
    %5082 = vmatprep.subr.mxu0 0.0
    %5083 = vmatpush1.msra.mxu0 %v5054
    %5084 = vmatprep.subr.mxu0 0.0
    %5085 = vmatpush1.msra.mxu0 %v5055
    %5086 = vmatprep.subr.mxu0 0.0
    %5087 = vmatpush1.msra.mxu0 %v5056
    %5088 = vmatprep.subr.mxu0 0.0
    %5089 = vmatpush1.msra.mxu0 %v5057
    %5090 = vmatprep.subr.mxu0 0.0
    %5091 = vmatpush1.msra.mxu0 %v5058
    %5092 = vmatprep.subr.mxu0 0.0
    %5093 = vmatpush1.msra.mxu0 %v5059
    %5094 = vmatprep.subr.mxu0 0.0
    %5095 = vmatpush1.msra.mxu0 %v5060
    %5096 = vmatprep.subr.mxu0 0.0
    %5097 = vmatpush1.msra.mxu0 %v5061
    %5098 = vmatprep.subr.mxu0 0.0
    %5099 = vmatpush1.msra.mxu0 %v5062
    %5100 = vmatprep.subr.mxu0 0.0
    %5101 = vmatpush1.msra.mxu0 %v5063
    %5102 = vmatprep.subr.mxu0 0.0
    %5103 = vmatpush1.msra.mxu0 %v5064
    %5104 = vmatprep.subr.mxu0 0.0
    %5105 = vmatpush1.msra.mxu0 %v5065
    %5106 = vmatprep.subr.mxu0 0.0
    %5107 = vmatpush1.msra.mxu0 0.0
    %5108 = vmatprep.subr.mxu0 0.0
    %5109 = vmatpush1.msra.mxu0 0.0
    %5110 = vmatprep.subr.mxu0 0.0
    %5111 = vmatpush1.msra.mxu0 0.0
    %5112 = vmatprep.subr.mxu0 0.0
    %5113 = vmatpush1.msra.mxu0 0.0
    %5114 = vmatprep.subr.mxu0 0.0
    %5115 = vmatpush1.msra.mxu0 0.0
    %5116 = vmatprep.subr.mxu0 0.0
    %5117 = vmatpush1.msra.mxu0 0.0
    %5118 = vmatprep.subr.mxu0 0.0
    %5119 = vmatpush1.msra.mxu0 0.0
    %5120 = vmatprep.subr.mxu0 0.0
    %5121 = vmatpush1.msra.mxu0 0.0
    %5122 = vmatprep.subr.mxu0 0.0
    %5123 = vmatpush1.msra.mxu0 0.0
    %5124 = vmatprep.subr.mxu0 0.0
    %5125 = vmatpush1.msra.mxu0 0.0
    %5126 = vmatprep.subr.mxu0 0.0
    %5127 = vmatpush1.msra.mxu0 0.0
    %5128 = vmatprep.subr.mxu0 0.0
    %5129 = vmatpush1.msra.mxu0 0.0
    %5130 = vmatprep.subr.mxu0 0.0
    %5131 = vmatpush1.msra.mxu0 0.0
    %5132 = vmatprep.subr.mxu0 0.0
    %5133 = vmatpush1.msra.mxu0 0.0
    %5134 = vmatprep.subr.mxu0 0.0
    %5135 = vmatpush1.msra.mxu0 0.0
    %5136 = vmatprep.subr.mxu0 0.0
    %5137 = vmatpush1.msra.mxu0 0.0
    %5138 = vmatprep.mubr.f32.mxu0 0.0
    %5139 = vmatmul.mubr.f32.gmra.mrb[0].mxu0 %v5043
    %v5140 = vpop.f32.mrb[0].mxu0
    %v5141 = vadd.f32 %v5072, %v5140
    %v5142 = vpop.f32.mrb[0].mxu0
    %5143 = vmatprep.mubr.f32.mxu0 0.0
    %5144 = vmatmul.mubr.f32.gmra.mrb[0].mxu0 %v5044
    %v5145 = vpop.f32.mrb[0].mxu0
    %v5146 = vpop.f32.mrb[0].mxu0
    %5147 = vmatprep.mubr.f32.mxu0 0.0
    %5148 = vmatmul.mubr.f32.gmra.mrb[0].mxu0 %v5045
    %v5149 = vpop.f32.mrb[0].mxu0
    %v5150 = vpop.f32.mrb[0].mxu0
    %5151 = vmatprep.mubr.f32.mxu0 0.0
    %5152 = vmatmul.mubr.f32.gmra.mrb[0].mxu0 %v5046
    %v5153 = vpop.f32.mrb[0].mxu0
    %v5154 = vadd.f32 %v5072, %v5153
    %v5155 = vpop.f32.mrb[0].mxu0
    %5156 = vmatprep.mubr.f32.mxu0 0.0
    %5157 = vmatmul.mubr.f32.gmra.mrb[0].mxu0 %v5047
    %v5158 = vpop.f32.mrb[0].mxu0
    %v5159 = vpop.f32.mrb[0].mxu0
    %5160 = vmatprep.mubr.f32.mxu0 0.0
    %5161 = vmatmul.mubr.f32.gmra.mrb[0].mxu0 %v5048
    %v5162 = vpop.f32.mrb[0].mxu0
    %v5163 = vpop.f32.mrb[0].mxu0
    %5164 = vdwg.mxu0
    %v5165 = vadd.f32 %v4757, %v5141
    %v5166 = vadd.f32 %v4760, %v5154
    %v5168 = vrot.slane %v5166, 7
    %vm5170 = vcmask 1040384
    %v5171 = vsel %vm5170, %v5165, %v5168
    %v5172 = vld [vmem:[%s16] sm:$0x1]
    %v5173 = vld [vmem:[%s17] sm:$0x1]
    %vm5174 = vcmask 254976
    %v5175 = vsel %vm5174, %v5171, 0.0
    %5176 = vadd.xlane.f32.xlu0 %v5175
    %v5177 = vpop.xlane.xlu0 %5176
    %v5178 = vmul.f32 %v5177, %v231
    %v5179 = vsub.f32 %v5171, %v5178
    %v5180 = vmul.f32 %v5179, %v5179
    %v5181 = vsel %vm5174, %v5180, 0.0
    %5182 = vadd.xlane.f32.xlu0 %v5181
    %v5183 = vpop.xlane.xlu0 %5182
    %v5184 = vmul.f32 %v5183, %v231
    %v5185 = vadd.f32 %v5184, 1e-06
    %v5186 = vrsqrt.pop %v5185
    %v5187 = vmul.f32 %v5179, %v5186
    %v5189 = vlaneseq
    %v5190 = vshrl.u32 %v5189, 7
    %v5191 = vsub.s32 0, %v5190
    %v5192 = vrot.slane %v5172, %v5191
    %v5194 = vmul.f32 %v5187, %v5192
    %v5196 = vlaneseq
    %v5197 = vshrl.u32 %v5196, 7
    %v5198 = vsub.s32 0, %v5197
    %v5199 = vrot.slane %v5173, %v5198
    %v5201 = vadd.f32 %v5194, %v5199
    %v5202 = vld [vmem:[%s18] sm:$0xff]
    %v5203 = vld [vmem:[%s18 + $0x8] sm:$0xff]
    %v5204 = vld [vmem:[%s18 + $0x10] sm:$0xff]
    %v5205 = vld [vmem:[%s18 + $0x18] sm:$0xff]
    %v5206 = vld [vmem:[%s19] sm:$0x1]
    %v5208 = vlaneseq
    %v5209 = vshrl.u32 %v5208, 7
    %v5210 = vsub.s32 0, %v5209
    %v5211 = vrot.slane %v5206, %v5210
    %v5214 = vsel %vm212, %v5201, 0
    %5216 = vmatprep.subr.mxu0 0.0
    %5217 = vmatpush1.msra.mxu0 %v5202
    %5218 = vmatprep.subr.mxu0 0.0
    %5219 = vmatpush1.msra.mxu0 %v5203
    %5220 = vmatprep.subr.mxu0 0.0
    %5221 = vmatpush1.msra.mxu0 %v5204
    %5222 = vmatprep.subr.mxu0 0.0
    %5223 = vmatpush1.msra.mxu0 %v5205
    %5224 = vmatprep.subr.mxu0 0.0
    %5225 = vmatpush1.msra.mxu0 0.0
    %5226 = vmatprep.subr.mxu0 0.0
    %5227 = vmatpush1.msra.mxu0 0.0
    %5228 = vmatprep.subr.mxu0 0.0
    %5229 = vmatpush1.msra.mxu0 0.0
    %5230 = vmatprep.subr.mxu0 0.0
    %5231 = vmatpush1.msra.mxu0 0.0
    %5232 = vmatprep.subr.mxu0 0.0
    %5233 = vmatpush1.msra.mxu0 0.0
    %5234 = vmatprep.subr.mxu0 0.0
    %5235 = vmatpush1.msra.mxu0 0.0
    %5236 = vmatprep.subr.mxu0 0.0
    %5237 = vmatpush1.msra.mxu0 0.0
    %5238 = vmatprep.subr.mxu0 0.0
    %5239 = vmatpush1.msra.mxu0 0.0
    %5240 = vmatprep.subr.mxu0 0.0
    %5241 = vmatpush1.msra.mxu0 0.0
    %5242 = vmatprep.subr.mxu0 0.0
    %5243 = vmatpush1.msra.mxu0 0.0
    %5244 = vmatprep.subr.mxu0 0.0
    %5245 = vmatpush1.msra.mxu0 0.0
    %5246 = vmatprep.subr.mxu0 0.0
    %5247 = vmatpush1.msra.mxu0 0.0
    %5248 = vmatprep.subr.mxu0 0.0
    %5249 = vmatpush1.msra.mxu0 0.0
    %5250 = vmatprep.subr.mxu0 0.0
    %5251 = vmatpush1.msra.mxu0 0.0
    %5252 = vmatprep.subr.mxu0 0.0
    %5253 = vmatpush1.msra.mxu0 0.0
    %5254 = vmatprep.subr.mxu0 0.0
    %5255 = vmatpush1.msra.mxu0 0.0
    %5256 = vmatprep.subr.mxu0 0.0
    %5257 = vmatpush1.msra.mxu0 0.0
    %5258 = vmatprep.subr.mxu0 0.0
    %5259 = vmatpush1.msra.mxu0 0.0
    %5260 = vmatprep.subr.mxu0 0.0
    %5261 = vmatpush1.msra.mxu0 0.0
    %5262 = vmatprep.subr.mxu0 0.0
    %5263 = vmatpush1.msra.mxu0 0.0
    %5264 = vmatprep.subr.mxu0 0.0
    %5265 = vmatpush1.msra.mxu0 0.0
    %5266 = vmatprep.subr.mxu0 0.0
    %5267 = vmatpush1.msra.mxu0 0.0
    %5268 = vmatprep.subr.mxu0 0.0
    %5269 = vmatpush1.msra.mxu0 0.0
    %5270 = vmatprep.subr.mxu0 0.0
    %5271 = vmatpush1.msra.mxu0 0.0
    %5272 = vmatprep.subr.mxu0 0.0
    %5273 = vmatpush1.msra.mxu0 0.0
    %5274 = vmatprep.subr.mxu0 0.0
    %5275 = vmatpush1.msra.mxu0 0.0
    %5276 = vmatprep.subr.mxu0 0.0
    %5277 = vmatpush1.msra.mxu0 0.0
    %5278 = vmatprep.subr.mxu0 0.0
    %5279 = vmatpush1.msra.mxu0 0.0
    %5280 = vmatprep.mubr.f32.mxu0 0.0
    %5281 = vmatmul.mubr.f32.gmra.mrb[0].mxu0 %v5214
    %v5282 = vpop.f32.mrb[0].mxu0
    %v5283 = vadd.f32 %v5211, %v5282
    %v5284 = vpop.f32.mrb[0].mxu0
    %5285 = vdwg.mxu0
    %5286 = vst [vmem:[#allocation2] sm:$0x3] %v5283
    // Predicated region
    $region82: #{tpu_custom_call.1} parent=1 // pred_check
      _
    $region83: #{tpu_custom_call.1} parent=1 // pred_check_branch
      %5288 = sbr.rel (0) target = $region85
    $region84: #{tpu_custom_call.1} parent=1 // pred_region
      %s5290 = ssub.s32 32, 32
      %5291 = vsyncadd [#allocation3], %s5290
      %s5293 = sshll.u32 [#allocation2], 4
      %s5294 = int_to_ptr.vmem [resolvable:$true] %s5293
      %5296 = dma.vmem_to_hbm [thread:$0]  %s5294, 32, %s20, [#allocation3]
    $region85: #{tpu_custom_call.1} parent=1 // pred_fallthru
      _
    // Predicated region
    $region86: #{tpu_custom_call.1} parent=1 // pred_check
      _
    $region87: #{tpu_custom_call.1} parent=1 // pred_check_branch
      %5298 = sbr.rel (0) target = $region89
    $region88: #{tpu_custom_call.1} parent=1 // pred_region
      %5299 = dma.done [#allocation3], 32
    $region89: #{tpu_custom_call.1} parent=1 // pred_fallthru
      _
    %5300 = vsyncpa [#allocation3], 1

</llo_original>
